<compile_context>
chip_gen: v6e
topology: v6e:2x2x1
jax: 0.10.0
libtpu: 0.0.40
codegen_flags: <defaults>
</compile_context>

<pallas_src>
import functools
import math

import jax
import jax.numpy as jnp
from jax import lax
from jax.experimental import pallas as pl
from jax.experimental.pallas import tpu as pltpu

BN_EPS = 1e-5          # nn.BatchNorm1d default eps
LEAKY_SLOPE = 0.01     # nn.LeakyReLU default negative_slope


def _elu(t):
    # nn.ELU(alpha=1.0)
    return jnp.where(t > 0.0, t, jnp.exp(jnp.minimum(t, 0.0)) - 1.0)


def _batchnorm_train(t):
    # nn.BatchNorm1d(C) on a (B, C, L) tensor, training-mode batch statistics,
    # weight=1, bias=0 (matches bn_init), biased variance, eps=1e-5.
    # mean-of-means == global mean because every (b, c) group has length L.
    m = jnp.mean(jnp.mean(t, axis=-1, keepdims=True), axis=0, keepdims=True)
    v = jnp.mean(jnp.mean((t - m) ** 2, axis=-1, keepdims=True),
                 axis=0, keepdims=True)
    return (t - m) * lax.rsqrt(v + BN_EPS)


def _gat_layer(x, edge, wh_t, we_t, wp_sd_t, wp_e_t, wa, b, n, d):
    # x: (B, N, D) node features, edge: (B, E, D) edge features, E = N*N.
    # Edge index e = i*N + j, i = target node (e // N), j = source (e % N),
    # matching the PyTorch create_e_matrix convention.
    e = n * n

    # fc_h / fc_e as single 2-D MXU matmuls (M = B*N and B*E rows).
    z_h2 = jnp.dot(x.reshape(b * n, d), wh_t,
                   preferred_element_type=jnp.float32)            # (B*N, D)
    z_e2 = jnp.dot(edge.reshape(b * e, d), we_t,
                   preferred_element_type=jnp.float32)            # (B*E, D)

    # fc_proj, split: src/dst thirds evaluated at N rows, edge third at E rows.
    proj_sd = jnp.dot(z_h2, wp_sd_t,
                      preferred_element_type=jnp.float32)         # (B*N, 2D)
    proj_e = jnp.dot(z_e2, wp_e_t,
                     preferred_element_type=jnp.float32)          # (B*E, D)

    z_h = z_h2.reshape(b, n, d)
    z_e4 = z_e2.reshape(b, n, n, d)
    proj_sd = proj_sd.reshape(b, n, 2 * d)
    proj_src = proj_sd[:, :, :d]      # contribution of the source node j
    proj_dst = proj_sd[:, :, d:]      # contribution of the target node i
    # fc_proj(concat(src, dst, z_e))[b, i*N+j]
    #   = proj_src[b, j] + proj_dst[b, i] + proj_e[b, i, j]
    z_e_proj = (proj_src[:, None, :, :] + proj_dst[:, :, None, :]
                + proj_e.reshape(b, n, n, d)).reshape(b, e, d)

    # attn_fc(concat(src, dst, z_e)), split the same way (VPU dot products).
    wa_src = wa[0].reshape(1, 1, d)
    wa_dst = wa[1].reshape(1, 1, d)
    wa_e = wa[2].reshape(1, 1, 1, d)
    s_src = jnp.sum(z_h * wa_src, axis=-1)            # (B, N), indexed by j
    s_dst = jnp.sum(z_h * wa_dst, axis=-1)            # (B, N), indexed by i
    s_e = jnp.sum(z_e4 * wa_e, axis=-1)               # (B, N, N)  [i, j]
    s = s_src[:, None, :] + s_dst[:, :, None] + s_e   # (B, N, N)
    s = jnp.where(s > 0.0, s, LEAKY_SLOPE * s)        # LeakyReLU

    # softmax over the source axis j (dim 2), as in nn.Softmax(2).
    mx = jnp.max(s, axis=2, keepdims=True)
    p = jnp.exp(s - mx)
    attn = p / jnp.sum(p, axis=2, keepdims=True)      # (B, N, N)

    # aggregation (end.T @ (attn * source_z_h)) as a segment-sum:
    #   agg[b, i, :] = sum_j attn[b, i, j] * z_h[b, j, :]
    weighted = attn[:, :, :, None] * z_h[:, None, :, :]   # (B, N, N, D)
    agg = jnp.sum(weighted, axis=2)                        # (B, N, D)
    return agg, z_e_proj


def gat_kernel(b, n, d,
               x_ref, e_ref,
               wh1_ref, we1_ref, wpsd1_ref, wpe1_ref, wa1_ref,
               wh2_ref, we2_ref, wpsd2_ref, wpe2_ref, wa2_ref,
               x_out_ref, e_out_ref):
    x = x_ref[...]
    edge = e_ref[...]

    # ---- layer 1 ----
    agg1, ze1 = _gat_layer(x, edge, wh1_ref[...], we1_ref[...],
                           wpsd1_ref[...], wpe1_ref[...], wa1_ref[...],
                           b, n, d)
    x1 = _elu(x + _batchnorm_train(agg1))        # act(res + bnv1(z_h))
    e1 = _elu(_batchnorm_train(ze1))             # act(bne1(z_e))

    # ---- layer 2 ----
    agg2, ze2 = _gat_layer(x1, e1, wh2_ref[...], we2_ref[...],
                           wpsd2_ref[...], wpe2_ref[...], wa2_ref[...],
                           b, n, d)
    x2 = _elu(x1 + _batchnorm_train(agg2))
    e2 = _elu(_batchnorm_train(ze2))

    x_out_ref[...] = x2
    e_out_ref[...] = e2


def _prep_layer_weights(w_h, w_e, w_proj, w_attn, d):
    # nn.Linear weights are (out, in); the kernel consumes (in, out).
    wh_t = jnp.transpose(w_h)                                      # (D, D)
    we_t = jnp.transpose(w_e)                                      # (D, D)
    wp_t = jnp.transpose(w_proj)                                   # (3D, D)
    wp_sd_t = jnp.concatenate([wp_t[:d], wp_t[d:2 * d]], axis=1)   # (D, 2D)
    wp_e_t = wp_t[2 * d:]                                          # (D, D)
    wa3 = w_attn.reshape(3, d)                  # rows: src, dst, edge chunks
    return wh_t, we_t, wp_sd_t, wp_e_t, wa3


def gat_forward(x, edge, params, num_classes):
    b, n, d = x.shape
    assert n == num_classes and edge.shape == (b, n * n, d)
    e = n * n

    ins = (x, edge)
    ins += _prep_layer_weights(params['w_h1'], params['w_e1'],
                               params['w_proj1'], params['w_attn1'], d)
    ins += _prep_layer_weights(params['w_h2'], params['w_e2'],
                               params['w_proj2'], params['w_attn2'], d)

    vmem = pl.BlockSpec(memory_space=pltpu.MemorySpace.VMEM)
    return pl.pallas_call(
        functools.partial(gat_kernel, b, n, d),
        out_shape=(jax.ShapeDtypeStruct((b, n, d), jnp.float32),
                   jax.ShapeDtypeStruct((b, e, d), jnp.float32)),
        in_specs=[vmem] * len(ins),
        out_specs=(vmem, vmem),
    )(*ins)


if __name__ == "__main__":
    B, N, D = 2, 4, 128            # batch, num_classes (nodes), in_channels
    key = jax.random.PRNGKey(0)
    keys = jax.random.split(key, 10)
    scale = math.sqrt(2.0 / D)     # init_weights_linear: gain * sqrt(2/dim_in)
    params = {
        'w_h1':    jax.random.normal(keys[0], (D, D), jnp.float32) * scale,
        'w_e1':    jax.random.normal(keys[1], (D, D), jnp.float32) * scale,
        'w_proj1': jax.random.normal(keys[2], (D, 3 * D), jnp.float32) * scale,
        'w_attn1': jax.random.normal(keys[3], (1, 3 * D), jnp.float32) * scale,
        'w_h2':    jax.random.normal(keys[4], (D, D), jnp.float32) * scale,
        'w_e2':    jax.random.normal(keys[5], (D, D), jnp.float32) * scale,
        'w_proj2': jax.random.normal(keys[6], (D, 3 * D), jnp.float32) * scale,
        'w_attn2': jax.random.normal(keys[7], (1, 3 * D), jnp.float32) * scale,
    }
    x = jax.random.normal(keys[8], (B, N, D), jnp.float32)
    edge = jax.random.normal(keys[9], (B, N * N, D), jnp.float32)

    x_out, e_out = gat_forward(x, edge, params, num_classes=N)
    jax.block_until_ready((x_out, e_out))

    assert x_out.shape == (B, N, D) and e_out.shape == (B, N * N, D)
    assert bool(jnp.all(jnp.isfinite(x_out))) and bool(jnp.all(jnp.isfinite(e_out)))
    print("KERNEL_OK")
</pallas_src>

<mosaic_0001>
module attributes {stable_mosaic.version = 11 : i64} {
  func.func @gat_kernel(%arg0: memref<2x4x128xf32, #tpu.memory_space<vmem>>, %arg1: memref<2x16x128xf32, #tpu.memory_space<vmem>>, %arg2: memref<128x128xf32, #tpu.memory_space<vmem>>, %arg3: memref<128x128xf32, #tpu.memory_space<vmem>>, %arg4: memref<128x256xf32, #tpu.memory_space<vmem>>, %arg5: memref<128x128xf32, #tpu.memory_space<vmem>>, %arg6: memref<3x128xf32, #tpu.memory_space<vmem>>, %arg7: memref<128x128xf32, #tpu.memory_space<vmem>>, %arg8: memref<128x128xf32, #tpu.memory_space<vmem>>, %arg9: memref<128x256xf32, #tpu.memory_space<vmem>>, %arg10: memref<128x128xf32, #tpu.memory_space<vmem>>, %arg11: memref<3x128xf32, #tpu.memory_space<vmem>>, %arg12: memref<2x4x128xf32, #tpu.memory_space<vmem>>, %arg13: memref<2x16x128xf32, #tpu.memory_space<vmem>>) attributes {dimension_semantics = [], scalar_prefetch = 0 : i64, scratch_operands = 0 : i64, tpu.core_type = #tpu.core_type<tc>} {
    %c0 = arith.constant 0 : index
    %c0_0 = arith.constant 0 : index
    %c0_1 = arith.constant 0 : index
    %0 = vector.load %arg0[%c0, %c0_0, %c0_1] : memref<2x4x128xf32, #tpu.memory_space<vmem>>, vector<2x4x128xf32>
    %c0_2 = arith.constant 0 : index
    %c0_3 = arith.constant 0 : index
    %c0_4 = arith.constant 0 : index
    %1 = vector.load %arg1[%c0_2, %c0_3, %c0_4] : memref<2x16x128xf32, #tpu.memory_space<vmem>>, vector<2x16x128xf32>
    %c0_5 = arith.constant 0 : index
    %c0_6 = arith.constant 0 : index
    %2 = vector.load %arg2[%c0_5, %c0_6] : memref<128x128xf32, #tpu.memory_space<vmem>>, vector<128x128xf32>
    %c0_7 = arith.constant 0 : index
    %c0_8 = arith.constant 0 : index
    %3 = vector.load %arg3[%c0_7, %c0_8] : memref<128x128xf32, #tpu.memory_space<vmem>>, vector<128x128xf32>
    %c0_9 = arith.constant 0 : index
    %c0_10 = arith.constant 0 : index
    %4 = vector.load %arg4[%c0_9, %c0_10] : memref<128x256xf32, #tpu.memory_space<vmem>>, vector<128x256xf32>
    %c0_11 = arith.constant 0 : index
    %c0_12 = arith.constant 0 : index
    %5 = vector.load %arg5[%c0_11, %c0_12] : memref<128x128xf32, #tpu.memory_space<vmem>>, vector<128x128xf32>
    %c0_13 = arith.constant 0 : index
    %c0_14 = arith.constant 0 : index
    %6 = vector.load %arg6[%c0_13, %c0_14] : memref<3x128xf32, #tpu.memory_space<vmem>>, vector<3x128xf32>
    %7 = vector.shape_cast %0 : vector<2x4x128xf32> to vector<8x128xf32>
    %cst = arith.constant dense<0.000000e+00> : vector<8x128xf32>
    %8 = tpu.matmul %7, %2, %cst {dimension_numbers = #tpu.dot_dimension_numbers<[1], [0], [0], [1], [0, 0, 1, 1], [], []>} : vector<8x128xf32>, vector<128x128xf32>, vector<8x128xf32> -> vector<8x128xf32>
    %9 = vector.shape_cast %1 : vector<2x16x128xf32> to vector<32x128xf32>
    %cst_15 = arith.constant dense<0.000000e+00> : vector<32x128xf32>
    %10 = tpu.matmul %9, %3, %cst_15 {dimension_numbers = #tpu.dot_dimension_numbers<[1], [0], [0], [1], [0, 0, 1, 1], [], []>} : vector<32x128xf32>, vector<128x128xf32>, vector<32x128xf32> -> vector<32x128xf32>
    %cst_16 = arith.constant dense<0.000000e+00> : vector<8x256xf32>
    %11 = tpu.matmul %8, %4, %cst_16 {dimension_numbers = #tpu.dot_dimension_numbers<[1], [0], [0], [1], [0, 0, 1, 1], [], []>} : vector<8x128xf32>, vector<128x256xf32>, vector<8x256xf32> -> vector<8x256xf32>
    %cst_17 = arith.constant dense<0.000000e+00> : vector<32x128xf32>
    %12 = tpu.matmul %10, %5, %cst_17 {dimension_numbers = #tpu.dot_dimension_numbers<[1], [0], [0], [1], [0, 0, 1, 1], [], []>} : vector<32x128xf32>, vector<128x128xf32>, vector<32x128xf32> -> vector<32x128xf32>
    %13 = vector.shape_cast %8 : vector<8x128xf32> to vector<2x4x128xf32>
    %14 = vector.shape_cast %10 : vector<32x128xf32> to vector<2x4x4x128xf32>
    %15 = vector.shape_cast %11 : vector<8x256xf32> to vector<2x4x256xf32>
    %16 = vector.extract_strided_slice %15 {offsets = [0, 0, 0], sizes = [2, 4, 128], strides = [1, 1, 1]} : vector<2x4x256xf32> to vector<2x4x128xf32>
    %17 = vector.extract_strided_slice %15 {offsets = [0, 0, 128], sizes = [2, 4, 128], strides = [1, 1, 1]} : vector<2x4x256xf32> to vector<2x4x128xf32>
    %18 = vector.shape_cast %16 : vector<2x4x128xf32> to vector<2x1x4x128xf32>
    %19 = vector.shape_cast %17 : vector<2x4x128xf32> to vector<2x4x1x128xf32>
    %20 = vector.broadcast %18 : vector<2x1x4x128xf32> to vector<2x4x4x128xf32>
    %21 = vector.broadcast %19 : vector<2x4x1x128xf32> to vector<2x4x4x128xf32>
    %22 = arith.addf %20, %21 : vector<2x4x4x128xf32>
    %23 = vector.shape_cast %12 : vector<32x128xf32> to vector<2x4x4x128xf32>
    %24 = arith.addf %22, %23 : vector<2x4x4x128xf32>
    %25 = vector.shape_cast %24 : vector<2x4x4x128xf32> to vector<2x16x128xf32>
    %26 = vector.extract_strided_slice %6 {offsets = [0, 0], sizes = [1, 128], strides = [1, 1]} : vector<3x128xf32> to vector<1x128xf32>
    %27 = vector.shape_cast %26 : vector<1x128xf32> to vector<128xf32>
    %28 = vector.shape_cast %27 : vector<128xf32> to vector<1x1x128xf32>
    %29 = vector.extract_strided_slice %6 {offsets = [1, 0], sizes = [1, 128], strides = [1, 1]} : vector<3x128xf32> to vector<1x128xf32>
    %30 = vector.shape_cast %29 : vector<1x128xf32> to vector<128xf32>
    %31 = vector.shape_cast %30 : vector<128xf32> to vector<1x1x128xf32>
    %32 = vector.extract_strided_slice %6 {offsets = [2, 0], sizes = [1, 128], strides = [1, 1]} : vector<3x128xf32> to vector<1x128xf32>
    %33 = vector.shape_cast %32 : vector<1x128xf32> to vector<128xf32>
    %34 = vector.shape_cast %33 : vector<128xf32> to vector<1x1x1x128xf32>
    %35 = vector.broadcast %28 : vector<1x1x128xf32> to vector<2x4x128xf32>
    %36 = arith.mulf %13, %35 : vector<2x4x128xf32>
    %cst_18 = arith.constant dense<0.000000e+00> : vector<2x4xf32>
    %37 = vector.multi_reduction <add>, %36, %cst_18 [2] : vector<2x4x128xf32> to vector<2x4xf32>
    %38 = vector.broadcast %31 : vector<1x1x128xf32> to vector<2x4x128xf32>
    %39 = arith.mulf %13, %38 : vector<2x4x128xf32>
    %cst_19 = arith.constant dense<0.000000e+00> : vector<2x4xf32>
    %40 = vector.multi_reduction <add>, %39, %cst_19 [2] : vector<2x4x128xf32> to vector<2x4xf32>
    %41 = vector.broadcast %34 : vector<1x1x1x128xf32> to vector<2x4x4x128xf32>
    %42 = arith.mulf %14, %41 : vector<2x4x4x128xf32>
    %cst_20 = arith.constant dense<0.000000e+00> : vector<2x4x4xf32>
    %43 = vector.multi_reduction <add>, %42, %cst_20 [3] : vector<2x4x4x128xf32> to vector<2x4x4xf32>
    %44 = vector.shape_cast %37 : vector<2x4xf32> to vector<2x1x4xf32>
    %45 = vector.shape_cast %40 : vector<2x4xf32> to vector<2x4x1xf32>
    %46 = vector.broadcast %44 : vector<2x1x4xf32> to vector<2x4x4xf32>
    %47 = vector.broadcast %45 : vector<2x4x1xf32> to vector<2x4x4xf32>
    %48 = arith.addf %46, %47 : vector<2x4x4xf32>
    %49 = arith.addf %48, %43 : vector<2x4x4xf32>
    %cst_21 = arith.constant 0.000000e+00 : f32
    %50 = vector.broadcast %cst_21 : f32 to vector<2x4x4xf32>
    %51 = arith.cmpf ogt, %49, %50 : vector<2x4x4xf32>
    %cst_22 = arith.constant 0.00999999977 : f32
    %52 = vector.broadcast %cst_22 : f32 to vector<2x4x4xf32>
    %53 = arith.mulf %52, %49 : vector<2x4x4xf32>
    %54 = arith.select %51, %49, %53 : vector<2x4x4xi1>, vector<2x4x4xf32>
    %cst_23 = arith.constant dense<0xFF800000> : vector<2x4xf32>
    %55 = vector.multi_reduction <maximumf>, %54, %cst_23 [2] : vector<2x4x4xf32> to vector<2x4xf32>
    %56 = vector.shape_cast %55 : vector<2x4xf32> to vector<2x4x1xf32>
    %57 = vector.broadcast %56 : vector<2x4x1xf32> to vector<2x4x4xf32>
    %58 = arith.subf %54, %57 : vector<2x4x4xf32>
    %59 = math.exp %58 : vector<2x4x4xf32>
    %cst_24 = arith.constant dense<0.000000e+00> : vector<2x4xf32>
    %60 = vector.multi_reduction <add>, %59, %cst_24 [2] : vector<2x4x4xf32> to vector<2x4xf32>
    %61 = vector.shape_cast %60 : vector<2x4xf32> to vector<2x4x1xf32>
    %62 = vector.broadcast %61 : vector<2x4x1xf32> to vector<2x4x4xf32>
    %63 = arith.divf %59, %62 : vector<2x4x4xf32>
    %64 = vector.shape_cast %63 : vector<2x4x4xf32> to vector<2x4x4x1xf32>
    %65 = vector.shape_cast %13 : vector<2x4x128xf32> to vector<2x1x4x128xf32>
    %66 = vector.broadcast %64 : vector<2x4x4x1xf32> to vector<2x4x4x128xf32>
    %67 = vector.broadcast %65 : vector<2x1x4x128xf32> to vector<2x4x4x128xf32>
    %68 = arith.mulf %66, %67 : vector<2x4x4x128xf32>
    %cst_25 = arith.constant dense<0.000000e+00> : vector<2x4x128xf32>
    %69 = vector.multi_reduction <add>, %68, %cst_25 [2] : vector<2x4x4x128xf32> to vector<2x4x128xf32>
    %cst_26 = arith.constant dense<0.000000e+00> : vector<2x4xf32>
    %70 = vector.multi_reduction <add>, %69, %cst_26 [2] : vector<2x4x128xf32> to vector<2x4xf32>
    %71 = vector.shape_cast %70 : vector<2x4xf32> to vector<2x4x1xf32>
    %cst_27 = arith.constant 1.280000e+02 : f32
    %72 = vector.broadcast %cst_27 : f32 to vector<2x4x1xf32>
    %73 = arith.divf %71, %72 : vector<2x4x1xf32>
    %cst_28 = arith.constant dense<0.000000e+00> : vector<4x1xf32>
    %74 = vector.multi_reduction <add>, %73, %cst_28 [0] : vector<2x4x1xf32> to vector<4x1xf32>
    %75 = vector.shape_cast %74 : vector<4x1xf32> to vector<1x4x1xf32>
    %cst_29 = arith.constant 2.000000e+00 : f32
    %76 = vector.broadcast %cst_29 : f32 to vector<1x4x1xf32>
    %77 = arith.divf %75, %76 : vector<1x4x1xf32>
    %78 = vector.broadcast %77 : vector<1x4x1xf32> to vector<2x4x128xf32>
    %79 = arith.subf %69, %78 : vector<2x4x128xf32>
    %80 = arith.mulf %79, %79 : vector<2x4x128xf32>
    %cst_30 = arith.constant dense<0.000000e+00> : vector<2x4xf32>
    %81 = vector.multi_reduction <add>, %80, %cst_30 [2] : vector<2x4x128xf32> to vector<2x4xf32>
    %82 = vector.shape_cast %81 : vector<2x4xf32> to vector<2x4x1xf32>
    %cst_31 = arith.constant 1.280000e+02 : f32
    %83 = vector.broadcast %cst_31 : f32 to vector<2x4x1xf32>
    %84 = arith.divf %82, %83 : vector<2x4x1xf32>
    %cst_32 = arith.constant dense<0.000000e+00> : vector<4x1xf32>
    %85 = vector.multi_reduction <add>, %84, %cst_32 [0] : vector<2x4x1xf32> to vector<4x1xf32>
    %86 = vector.shape_cast %85 : vector<4x1xf32> to vector<1x4x1xf32>
    %cst_33 = arith.constant 2.000000e+00 : f32
    %87 = vector.broadcast %cst_33 : f32 to vector<1x4x1xf32>
    %88 = arith.divf %86, %87 : vector<1x4x1xf32>
    %89 = vector.broadcast %77 : vector<1x4x1xf32> to vector<2x4x128xf32>
    %90 = arith.subf %69, %89 : vector<2x4x128xf32>
    %cst_34 = arith.constant 9.99999974E-6 : f32
    %91 = vector.broadcast %cst_34 : f32 to vector<1x4x1xf32>
    %92 = arith.addf %88, %91 : vector<1x4x1xf32>
    %93 = math.rsqrt %92 : vector<1x4x1xf32>
    %94 = vector.broadcast %93 : vector<1x4x1xf32> to vector<2x4x128xf32>
    %95 = arith.mulf %90, %94 : vector<2x4x128xf32>
    %96 = arith.addf %0, %95 : vector<2x4x128xf32>
    %cst_35 = arith.constant 0.000000e+00 : f32
    %97 = vector.broadcast %cst_35 : f32 to vector<2x4x128xf32>
    %98 = arith.cmpf ogt, %96, %97 : vector<2x4x128xf32>
    %cst_36 = arith.constant 0.000000e+00 : f32
    %99 = vector.broadcast %cst_36 : f32 to vector<2x4x128xf32>
    %100 = arith.minimumf %96, %99 : vector<2x4x128xf32>
    %101 = math.exp %100 : vector<2x4x128xf32>
    %cst_37 = arith.constant 1.000000e+00 : f32
    %102 = vector.broadcast %cst_37 : f32 to vector<2x4x128xf32>
    %103 = arith.subf %101, %102 : vector<2x4x128xf32>
    %104 = arith.select %98, %96, %103 : vector<2x4x128xi1>, vector<2x4x128xf32>
    %cst_38 = arith.constant dense<0.000000e+00> : vector<2x16xf32>
    %105 = vector.multi_reduction <add>, %25, %cst_38 [2] : vector<2x16x128xf32> to vector<2x16xf32>
    %106 = vector.shape_cast %105 : vector<2x16xf32> to vector<2x16x1xf32>
    %cst_39 = arith.constant 1.280000e+02 : f32
    %107 = vector.broadcast %cst_39 : f32 to vector<2x16x1xf32>
    %108 = arith.divf %106, %107 : vector<2x16x1xf32>
    %cst_40 = arith.constant dense<0.000000e+00> : vector<16x1xf32>
    %109 = vector.multi_reduction <add>, %108, %cst_40 [0] : vector<2x16x1xf32> to vector<16x1xf32>
    %110 = vector.shape_cast %109 : vector<16x1xf32> to vector<1x16x1xf32>
    %cst_41 = arith.constant 2.000000e+00 : f32
    %111 = vector.broadcast %cst_41 : f32 to vector<1x16x1xf32>
    %112 = arith.divf %110, %111 : vector<1x16x1xf32>
    %113 = vector.broadcast %112 : vector<1x16x1xf32> to vector<2x16x128xf32>
    %114 = arith.subf %25, %113 : vector<2x16x128xf32>
    %115 = arith.mulf %114, %114 : vector<2x16x128xf32>
    %cst_42 = arith.constant dense<0.000000e+00> : vector<2x16xf32>
    %116 = vector.multi_reduction <add>, %115, %cst_42 [2] : vector<2x16x128xf32> to vector<2x16xf32>
    %117 = vector.shape_cast %116 : vector<2x16xf32> to vector<2x16x1xf32>
    %cst_43 = arith.constant 1.280000e+02 : f32
    %118 = vector.broadcast %cst_43 : f32 to vector<2x16x1xf32>
    %119 = arith.divf %117, %118 : vector<2x16x1xf32>
    %cst_44 = arith.constant dense<0.000000e+00> : vector<16x1xf32>
    %120 = vector.multi_reduction <add>, %119, %cst_44 [0] : vector<2x16x1xf32> to vector<16x1xf32>
    %121 = vector.shape_cast %120 : vector<16x1xf32> to vector<1x16x1xf32>
    %cst_45 = arith.constant 2.000000e+00 : f32
    %122 = vector.broadcast %cst_45 : f32 to vector<1x16x1xf32>
    %123 = arith.divf %121, %122 : vector<1x16x1xf32>
    %124 = vector.broadcast %112 : vector<1x16x1xf32> to vector<2x16x128xf32>
    %125 = arith.subf %25, %124 : vector<2x16x128xf32>
    %cst_46 = arith.constant 9.99999974E-6 : f32
    %126 = vector.broadcast %cst_46 : f32 to vector<1x16x1xf32>
    %127 = arith.addf %123, %126 : vector<1x16x1xf32>
    %128 = math.rsqrt %127 : vector<1x16x1xf32>
    %129 = vector.broadcast %128 : vector<1x16x1xf32> to vector<2x16x128xf32>
    %130 = arith.mulf %125, %129 : vector<2x16x128xf32>
    %cst_47 = arith.constant 0.000000e+00 : f32
    %131 = vector.broadcast %cst_47 : f32 to vector<2x16x128xf32>
    %132 = arith.cmpf ogt, %130, %131 : vector<2x16x128xf32>
    %cst_48 = arith.constant 0.000000e+00 : f32
    %133 = vector.broadcast %cst_48 : f32 to vector<2x16x128xf32>
    %134 = arith.minimumf %130, %133 : vector<2x16x128xf32>
    %135 = math.exp %134 : vector<2x16x128xf32>
    %cst_49 = arith.constant 1.000000e+00 : f32
    %136 = vector.broadcast %cst_49 : f32 to vector<2x16x128xf32>
    %137 = arith.subf %135, %136 : vector<2x16x128xf32>
    %138 = arith.select %132, %130, %137 : vector<2x16x128xi1>, vector<2x16x128xf32>
    %c0_50 = arith.constant 0 : index
    %c0_51 = arith.constant 0 : index
    %139 = vector.load %arg7[%c0_50, %c0_51] : memref<128x128xf32, #tpu.memory_space<vmem>>, vector<128x128xf32>
    %c0_52 = arith.constant 0 : index
    %c0_53 = arith.constant 0 : index
    %140 = vector.load %arg8[%c0_52, %c0_53] : memref<128x128xf32, #tpu.memory_space<vmem>>, vector<128x128xf32>
    %c0_54 = arith.constant 0 : index
    %c0_55 = arith.constant 0 : index
    %141 = vector.load %arg9[%c0_54, %c0_55] : memref<128x256xf32, #tpu.memory_space<vmem>>, vector<128x256xf32>
    %c0_56 = arith.constant 0 : index
    %c0_57 = arith.constant 0 : index
    %142 = vector.load %arg10[%c0_56, %c0_57] : memref<128x128xf32, #tpu.memory_space<vmem>>, vector<128x128xf32>
    %c0_58 = arith.constant 0 : index
    %c0_59 = arith.constant 0 : index
    %143 = vector.load %arg11[%c0_58, %c0_59] : memref<3x128xf32, #tpu.memory_space<vmem>>, vector<3x128xf32>
    %144 = vector.shape_cast %104 : vector<2x4x128xf32> to vector<8x128xf32>
    %cst_60 = arith.constant dense<0.000000e+00> : vector<8x128xf32>
    %145 = tpu.matmul %144, %139, %cst_60 {dimension_numbers = #tpu.dot_dimension_numbers<[1], [0], [0], [1], [0, 0, 1, 1], [], []>} : vector<8x128xf32>, vector<128x128xf32>, vector<8x128xf32> -> vector<8x128xf32>
    %146 = vector.shape_cast %138 : vector<2x16x128xf32> to vector<32x128xf32>
    %cst_61 = arith.constant dense<0.000000e+00> : vector<32x128xf32>
    %147 = tpu.matmul %146, %140, %cst_61 {dimension_numbers = #tpu.dot_dimension_numbers<[1], [0], [0], [1], [0, 0, 1, 1], [], []>} : vector<32x128xf32>, vector<128x128xf32>, vector<32x128xf32> -> vector<32x128xf32>
    %cst_62 = arith.constant dense<0.000000e+00> : vector<8x256xf32>
    %148 = tpu.matmul %145, %141, %cst_62 {dimension_numbers = #tpu.dot_dimension_numbers<[1], [0], [0], [1], [0, 0, 1, 1], [], []>} : vector<8x128xf32>, vector<128x256xf32>, vector<8x256xf32> -> vector<8x256xf32>
    %cst_63 = arith.constant dense<0.000000e+00> : vector<32x128xf32>
    %149 = tpu.matmul %147, %142, %cst_63 {dimension_numbers = #tpu.dot_dimension_numbers<[1], [0], [0], [1], [0, 0, 1, 1], [], []>} : vector<32x128xf32>, vector<128x128xf32>, vector<32x128xf32> -> vector<32x128xf32>
    %150 = vector.shape_cast %145 : vector<8x128xf32> to vector<2x4x128xf32>
    %151 = vector.shape_cast %147 : vector<32x128xf32> to vector<2x4x4x128xf32>
    %152 = vector.shape_cast %148 : vector<8x256xf32> to vector<2x4x256xf32>
    %153 = vector.extract_strided_slice %152 {offsets = [0, 0, 0], sizes = [2, 4, 128], strides = [1, 1, 1]} : vector<2x4x256xf32> to vector<2x4x128xf32>
    %154 = vector.extract_strided_slice %152 {offsets = [0, 0, 128], sizes = [2, 4, 128], strides = [1, 1, 1]} : vector<2x4x256xf32> to vector<2x4x128xf32>
    %155 = vector.shape_cast %153 : vector<2x4x128xf32> to vector<2x1x4x128xf32>
    %156 = vector.shape_cast %154 : vector<2x4x128xf32> to vector<2x4x1x128xf32>
    %157 = vector.broadcast %155 : vector<2x1x4x128xf32> to vector<2x4x4x128xf32>
    %158 = vector.broadcast %156 : vector<2x4x1x128xf32> to vector<2x4x4x128xf32>
    %159 = arith.addf %157, %158 : vector<2x4x4x128xf32>
    %160 = vector.shape_cast %149 : vector<32x128xf32> to vector<2x4x4x128xf32>
    %161 = arith.addf %159, %160 : vector<2x4x4x128xf32>
    %162 = vector.shape_cast %161 : vector<2x4x4x128xf32> to vector<2x16x128xf32>
    %163 = vector.extract_strided_slice %143 {offsets = [0, 0], sizes = [1, 128], strides = [1, 1]} : vector<3x128xf32> to vector<1x128xf32>
    %164 = vector.shape_cast %163 : vector<1x128xf32> to vector<128xf32>
    %165 = vector.shape_cast %164 : vector<128xf32> to vector<1x1x128xf32>
    %166 = vector.extract_strided_slice %143 {offsets = [1, 0], sizes = [1, 128], strides = [1, 1]} : vector<3x128xf32> to vector<1x128xf32>
    %167 = vector.shape_cast %166 : vector<1x128xf32> to vector<128xf32>
    %168 = vector.shape_cast %167 : vector<128xf32> to vector<1x1x128xf32>
    %169 = vector.extract_strided_slice %143 {offsets = [2, 0], sizes = [1, 128], strides = [1, 1]} : vector<3x128xf32> to vector<1x128xf32>
    %170 = vector.shape_cast %169 : vector<1x128xf32> to vector<128xf32>
    %171 = vector.shape_cast %170 : vector<128xf32> to vector<1x1x1x128xf32>
    %172 = vector.broadcast %165 : vector<1x1x128xf32> to vector<2x4x128xf32>
    %173 = arith.mulf %150, %172 : vector<2x4x128xf32>
    %cst_64 = arith.constant dense<0.000000e+00> : vector<2x4xf32>
    %174 = vector.multi_reduction <add>, %173, %cst_64 [2] : vector<2x4x128xf32> to vector<2x4xf32>
    %175 = vector.broadcast %168 : vector<1x1x128xf32> to vector<2x4x128xf32>
    %176 = arith.mulf %150, %175 : vector<2x4x128xf32>
    %cst_65 = arith.constant dense<0.000000e+00> : vector<2x4xf32>
    %177 = vector.multi_reduction <add>, %176, %cst_65 [2] : vector<2x4x128xf32> to vector<2x4xf32>
    %178 = vector.broadcast %171 : vector<1x1x1x128xf32> to vector<2x4x4x128xf32>
    %179 = arith.mulf %151, %178 : vector<2x4x4x128xf32>
    %cst_66 = arith.constant dense<0.000000e+00> : vector<2x4x4xf32>
    %180 = vector.multi_reduction <add>, %179, %cst_66 [3] : vector<2x4x4x128xf32> to vector<2x4x4xf32>
    %181 = vector.shape_cast %174 : vector<2x4xf32> to vector<2x1x4xf32>
    %182 = vector.shape_cast %177 : vector<2x4xf32> to vector<2x4x1xf32>
    %183 = vector.broadcast %181 : vector<2x1x4xf32> to vector<2x4x4xf32>
    %184 = vector.broadcast %182 : vector<2x4x1xf32> to vector<2x4x4xf32>
    %185 = arith.addf %183, %184 : vector<2x4x4xf32>
    %186 = arith.addf %185, %180 : vector<2x4x4xf32>
    %cst_67 = arith.constant 0.000000e+00 : f32
    %187 = vector.broadcast %cst_67 : f32 to vector<2x4x4xf32>
    %188 = arith.cmpf ogt, %186, %187 : vector<2x4x4xf32>
    %cst_68 = arith.constant 0.00999999977 : f32
    %189 = vector.broadcast %cst_68 : f32 to vector<2x4x4xf32>
    %190 = arith.mulf %189, %186 : vector<2x4x4xf32>
    %191 = arith.select %188, %186, %190 : vector<2x4x4xi1>, vector<2x4x4xf32>
    %cst_69 = arith.constant dense<0xFF800000> : vector<2x4xf32>
    %192 = vector.multi_reduction <maximumf>, %191, %cst_69 [2] : vector<2x4x4xf32> to vector<2x4xf32>
    %193 = vector.shape_cast %192 : vector<2x4xf32> to vector<2x4x1xf32>
    %194 = vector.broadcast %193 : vector<2x4x1xf32> to vector<2x4x4xf32>
    %195 = arith.subf %191, %194 : vector<2x4x4xf32>
    %196 = math.exp %195 : vector<2x4x4xf32>
    %cst_70 = arith.constant dense<0.000000e+00> : vector<2x4xf32>
    %197 = vector.multi_reduction <add>, %196, %cst_70 [2] : vector<2x4x4xf32> to vector<2x4xf32>
    %198 = vector.shape_cast %197 : vector<2x4xf32> to vector<2x4x1xf32>
    %199 = vector.broadcast %198 : vector<2x4x1xf32> to vector<2x4x4xf32>
    %200 = arith.divf %196, %199 : vector<2x4x4xf32>
    %201 = vector.shape_cast %200 : vector<2x4x4xf32> to vector<2x4x4x1xf32>
    %202 = vector.shape_cast %150 : vector<2x4x128xf32> to vector<2x1x4x128xf32>
    %203 = vector.broadcast %201 : vector<2x4x4x1xf32> to vector<2x4x4x128xf32>
    %204 = vector.broadcast %202 : vector<2x1x4x128xf32> to vector<2x4x4x128xf32>
    %205 = arith.mulf %203, %204 : vector<2x4x4x128xf32>
    %cst_71 = arith.constant dense<0.000000e+00> : vector<2x4x128xf32>
    %206 = vector.multi_reduction <add>, %205, %cst_71 [2] : vector<2x4x4x128xf32> to vector<2x4x128xf32>
    %cst_72 = arith.constant dense<0.000000e+00> : vector<2x4xf32>
    %207 = vector.multi_reduction <add>, %206, %cst_72 [2] : vector<2x4x128xf32> to vector<2x4xf32>
    %208 = vector.shape_cast %207 : vector<2x4xf32> to vector<2x4x1xf32>
    %cst_73 = arith.constant 1.280000e+02 : f32
    %209 = vector.broadcast %cst_73 : f32 to vector<2x4x1xf32>
    %210 = arith.divf %208, %209 : vector<2x4x1xf32>
    %cst_74 = arith.constant dense<0.000000e+00> : vector<4x1xf32>
    %211 = vector.multi_reduction <add>, %210, %cst_74 [0] : vector<2x4x1xf32> to vector<4x1xf32>
    %212 = vector.shape_cast %211 : vector<4x1xf32> to vector<1x4x1xf32>
    %cst_75 = arith.constant 2.000000e+00 : f32
    %213 = vector.broadcast %cst_75 : f32 to vector<1x4x1xf32>
    %214 = arith.divf %212, %213 : vector<1x4x1xf32>
    %215 = vector.broadcast %214 : vector<1x4x1xf32> to vector<2x4x128xf32>
    %216 = arith.subf %206, %215 : vector<2x4x128xf32>
    %217 = arith.mulf %216, %216 : vector<2x4x128xf32>
    %cst_76 = arith.constant dense<0.000000e+00> : vector<2x4xf32>
    %218 = vector.multi_reduction <add>, %217, %cst_76 [2] : vector<2x4x128xf32> to vector<2x4xf32>
    %219 = vector.shape_cast %218 : vector<2x4xf32> to vector<2x4x1xf32>
    %cst_77 = arith.constant 1.280000e+02 : f32
    %220 = vector.broadcast %cst_77 : f32 to vector<2x4x1xf32>
    %221 = arith.divf %219, %220 : vector<2x4x1xf32>
    %cst_78 = arith.constant dense<0.000000e+00> : vector<4x1xf32>
    %222 = vector.multi_reduction <add>, %221, %cst_78 [0] : vector<2x4x1xf32> to vector<4x1xf32>
    %223 = vector.shape_cast %222 : vector<4x1xf32> to vector<1x4x1xf32>
    %cst_79 = arith.constant 2.000000e+00 : f32
    %224 = vector.broadcast %cst_79 : f32 to vector<1x4x1xf32>
    %225 = arith.divf %223, %224 : vector<1x4x1xf32>
    %226 = vector.broadcast %214 : vector<1x4x1xf32> to vector<2x4x128xf32>
    %227 = arith.subf %206, %226 : vector<2x4x128xf32>
    %cst_80 = arith.constant 9.99999974E-6 : f32
    %228 = vector.broadcast %cst_80 : f32 to vector<1x4x1xf32>
    %229 = arith.addf %225, %228 : vector<1x4x1xf32>
    %230 = math.rsqrt %229 : vector<1x4x1xf32>
    %231 = vector.broadcast %230 : vector<1x4x1xf32> to vector<2x4x128xf32>
    %232 = arith.mulf %227, %231 : vector<2x4x128xf32>
    %233 = arith.addf %104, %232 : vector<2x4x128xf32>
    %cst_81 = arith.constant 0.000000e+00 : f32
    %234 = vector.broadcast %cst_81 : f32 to vector<2x4x128xf32>
    %235 = arith.cmpf ogt, %233, %234 : vector<2x4x128xf32>
    %cst_82 = arith.constant 0.000000e+00 : f32
    %236 = vector.broadcast %cst_82 : f32 to vector<2x4x128xf32>
    %237 = arith.minimumf %233, %236 : vector<2x4x128xf32>
    %238 = math.exp %237 : vector<2x4x128xf32>
    %cst_83 = arith.constant 1.000000e+00 : f32
    %239 = vector.broadcast %cst_83 : f32 to vector<2x4x128xf32>
    %240 = arith.subf %238, %239 : vector<2x4x128xf32>
    %241 = arith.select %235, %233, %240 : vector<2x4x128xi1>, vector<2x4x128xf32>
    %cst_84 = arith.constant dense<0.000000e+00> : vector<2x16xf32>
    %242 = vector.multi_reduction <add>, %162, %cst_84 [2] : vector<2x16x128xf32> to vector<2x16xf32>
    %243 = vector.shape_cast %242 : vector<2x16xf32> to vector<2x16x1xf32>
    %cst_85 = arith.constant 1.280000e+02 : f32
    %244 = vector.broadcast %cst_85 : f32 to vector<2x16x1xf32>
    %245 = arith.divf %243, %244 : vector<2x16x1xf32>
    %cst_86 = arith.constant dense<0.000000e+00> : vector<16x1xf32>
    %246 = vector.multi_reduction <add>, %245, %cst_86 [0] : vector<2x16x1xf32> to vector<16x1xf32>
    %247 = vector.shape_cast %246 : vector<16x1xf32> to vector<1x16x1xf32>
    %cst_87 = arith.constant 2.000000e+00 : f32
    %248 = vector.broadcast %cst_87 : f32 to vector<1x16x1xf32>
    %249 = arith.divf %247, %248 : vector<1x16x1xf32>
    %250 = vector.broadcast %249 : vector<1x16x1xf32> to vector<2x16x128xf32>
    %251 = arith.subf %162, %250 : vector<2x16x128xf32>
    %252 = arith.mulf %251, %251 : vector<2x16x128xf32>
    %cst_88 = arith.constant dense<0.000000e+00> : vector<2x16xf32>
    %253 = vector.multi_reduction <add>, %252, %cst_88 [2] : vector<2x16x128xf32> to vector<2x16xf32>
    %254 = vector.shape_cast %253 : vector<2x16xf32> to vector<2x16x1xf32>
    %cst_89 = arith.constant 1.280000e+02 : f32
    %255 = vector.broadcast %cst_89 : f32 to vector<2x16x1xf32>
    %256 = arith.divf %254, %255 : vector<2x16x1xf32>
    %cst_90 = arith.constant dense<0.000000e+00> : vector<16x1xf32>
    %257 = vector.multi_reduction <add>, %256, %cst_90 [0] : vector<2x16x1xf32> to vector<16x1xf32>
    %258 = vector.shape_cast %257 : vector<16x1xf32> to vector<1x16x1xf32>
    %cst_91 = arith.constant 2.000000e+00 : f32
    %259 = vector.broadcast %cst_91 : f32 to vector<1x16x1xf32>
    %260 = arith.divf %258, %259 : vector<1x16x1xf32>
    %261 = vector.broadcast %249 : vector<1x16x1xf32> to vector<2x16x128xf32>
    %262 = arith.subf %162, %261 : vector<2x16x128xf32>
    %cst_92 = arith.constant 9.99999974E-6 : f32
    %263 = vector.broadcast %cst_92 : f32 to vector<1x16x1xf32>
    %264 = arith.addf %260, %263 : vector<1x16x1xf32>
    %265 = math.rsqrt %264 : vector<1x16x1xf32>
    %266 = vector.broadcast %265 : vector<1x16x1xf32> to vector<2x16x128xf32>
    %267 = arith.mulf %262, %266 : vector<2x16x128xf32>
    %cst_93 = arith.constant 0.000000e+00 : f32
    %268 = vector.broadcast %cst_93 : f32 to vector<2x16x128xf32>
    %269 = arith.cmpf ogt, %267, %268 : vector<2x16x128xf32>
    %cst_94 = arith.constant 0.000000e+00 : f32
    %270 = vector.broadcast %cst_94 : f32 to vector<2x16x128xf32>
    %271 = arith.minimumf %267, %270 : vector<2x16x128xf32>
    %272 = math.exp %271 : vector<2x16x128xf32>
    %cst_95 = arith.constant 1.000000e+00 : f32
    %273 = vector.broadcast %cst_95 : f32 to vector<2x16x128xf32>
    %274 = arith.subf %272, %273 : vector<2x16x128xf32>
    %275 = arith.select %269, %267, %274 : vector<2x16x128xi1>, vector<2x16x128xf32>
    %c0_96 = arith.constant 0 : index
    %c0_97 = arith.constant 0 : index
    %c0_98 = arith.constant 0 : index
    %276 = vector.load %arg12[%c0_96, %c0_97, %c0_98] : memref<2x4x128xf32, #tpu.memory_space<vmem>>, vector<2x4x128xf32>
    tpu.vector_store %arg12[%c0_96, %c0_97, %c0_98], %241 {strides = array<i32>} : memref<2x4x128xf32, #tpu.memory_space<vmem>>, vector<2x4x128xf32>,
    %c0_99 = arith.constant 0 : index
    %c0_100 = arith.constant 0 : index
    %c0_101 = arith.constant 0 : index
    %277 = vector.load %arg13[%c0_99, %c0_100, %c0_101] : memref<2x16x128xf32, #tpu.memory_space<vmem>>, vector<2x16x128xf32>
    tpu.vector_store %arg13[%c0_99, %c0_100, %c0_101], %275 {strides = array<i32>} : memref<2x16x128xf32, #tpu.memory_space<vmem>>, vector<2x16x128xf32>,
    return
  }
}

</mosaic_0001>

<llo_original>
// kernel: tpu_custom_call.1
$region0: #{tpu_custom_call.1}
  #allocation0 [shape = 'u32[]', space=smem, size = 0x4, offset = 0x4, fixed_abs, tag = 'smem constant byte address 0x4 - core index']
  #allocation1 [shape = 'u32[144,128]{1,0:T(1,128)}', space=vmem, size = 0x12000, scoped, tag = 'internal scratch']
  %s0 = inlined_call_operand.hbm [shape: f32[2,4,128], index: 0, kind: input, shape index: {}]
  %s1 = inlined_call_operand.hbm [shape: f32[2,16,128], index: 1, kind: input, shape index: {}]
  %s2 = inlined_call_operand.hbm [shape: f32[128,128], index: 2, kind: input, shape index: {}]
  %s3 = inlined_call_operand.hbm [shape: f32[128,128], index: 3, kind: input, shape index: {}]
  %s4 = inlined_call_operand.hbm [shape: f32[128,256], index: 4, kind: input, shape index: {}]
  %s5 = inlined_call_operand.hbm [shape: f32[128,128], index: 5, kind: input, shape index: {}]
  %s6 = inlined_call_operand.vmem [shape: f32[3,128], index: 6, kind: input, shape index: {}]
  %s7 = inlined_call_operand.hbm [shape: f32[128,128], index: 7, kind: input, shape index: {}]
  %s8 = inlined_call_operand.hbm [shape: f32[128,128], index: 8, kind: input, shape index: {}]
  %s9 = inlined_call_operand.hbm [shape: f32[128,256], index: 9, kind: input, shape index: {}]
  %s10 = inlined_call_operand.hbm [shape: f32[128,128], index: 10, kind: input, shape index: {}]
  %s11 = inlined_call_operand.vmem [shape: f32[3,128], index: 11, kind: input, shape index: {}]
  %s12 = inlined_call_operand.hbm [shape: f32[2,4,128], index: 12, kind: output, shape index: {0}]
  %s13 = inlined_call_operand.hbm [shape: f32[2,16,128], index: 13, kind: output, shape index: {1}]
  %14 = xla_tuple %s12, %s13
  %s15 = sld [smem:[#allocation0]]
  $region106: #{tpu_custom_call.1} parent=0
    _
  %s17 = ssub.s32 1, %s15
  %s18 = scalar_select 0, %s17, %s15
  $region1: #{tpu_custom_call.1} parent=0
    #allocation2 [shape = 'u8[4096]{0}', space=vmem, size = 0x1000, scoped, tag = 'input window, operand 0, single buffered']
    #allocation3 [shape = 's32[1]{0}', space=sflag, size = 0x4, scoped, tag = 'scoped memory for tpu_custom_call.1']
    #allocation4 [shape = 's32[1]{0}', space=sflag, size = 0x4, scoped, tag = 'scoped memory for tpu_custom_call.1']
    #allocation5 [shape = 'u8[16384]{0}', space=vmem, size = 0x4000, scoped, tag = 'input window, operand 1, single buffered']
    #allocation6 [shape = 's32[1]{0}', space=sflag, size = 0x4, scoped, tag = 'scoped memory for tpu_custom_call.1']
    #allocation7 [shape = 'u8[65536]{0}', space=vmem, size = 0x10000, scoped, tag = 'input window, operand 2, single buffered']
    #allocation8 [shape = 'u8[65536]{0}', space=vmem, size = 0x10000, scoped, tag = 'input window, operand 3, single buffered']
    #allocation9 [shape = 's32[1]{0}', space=sflag, size = 0x4, scoped, tag = 'scoped memory for tpu_custom_call.1']
    #allocation10 [shape = 'u8[131072]{0}', space=vmem, size = 0x20000, scoped, tag = 'input window, operand 4, single buffered']
    #allocation11 [shape = 'u8[65536]{0}', space=vmem, size = 0x10000, scoped, tag = 'input window, operand 5, single buffered']
    #allocation12 [shape = 's32[1]{0}', space=sflag, size = 0x4, scoped, tag = 'scoped memory for tpu_custom_call.1']
    #allocation13 [shape = 'u8[65536]{0}', space=vmem, size = 0x10000, scoped, tag = 'input window, operand 7, single buffered']
    #allocation14 [shape = 'u8[65536]{0}', space=vmem, size = 0x10000, scoped, tag = 'input window, operand 8, single buffered']
    #allocation15 [shape = 's32[1]{0}', space=sflag, size = 0x4, scoped, tag = 'scoped memory for tpu_custom_call.1']
    #allocation16 [shape = 'u8[131072]{0}', space=vmem, size = 0x20000, scoped, tag = 'input window, operand 9, single buffered']
    #allocation17 [shape = 'u8[65536]{0}', space=vmem, size = 0x10000, scoped, tag = 'input window, operand 10, single buffered']
    #allocation18 [shape = 's32[1]{0}', space=sflag, size = 0x4, scoped, tag = 'scoped memory for tpu_custom_call.1']
    #allocation19 [shape = 'u8[4096]{0}', space=vmem, size = 0x1000, scoped, tag = 'output window, operand 0, single buffered']
    #allocation20 [shape = 'u8[16384]{0}', space=vmem, size = 0x4000, scoped, tag = 'output window, operand 1, single buffered']
    #allocation21 [shape = 's32[1]{0}', space=sflag, size = 0x4, scoped, tag = 'scoped memory for tpu_custom_call.1']
    %19 = vsyncpa [#allocation3], 0
    %20 = vsyncpa [#allocation6], 0
    %21 = vsyncpa [#allocation9], 0
    %22 = vsyncpa [#allocation12], 0
    %23 = vsyncpa [#allocation15], 0
    %24 = vsyncpa [#allocation18], 0
    %25 = vsyncpa [#allocation4], 0
    %26 = vsyncpa [#allocation21], 0
    // Predicated region
    $region2: #{tpu_custom_call.1} parent=1 // pred_check
      _
    $region3: #{tpu_custom_call.1} parent=1 // pred_check_branch
      %28 = sbr.rel (0) target = $region5
    $region4: #{tpu_custom_call.1} parent=1 // pred_region
      %s30 = ssub.s32 128, 128
      %31 = vsyncadd [#allocation3], %s30
      %s32 = sshll.u32 [#allocation2], 4
      %s33 = int_to_ptr.vmem [resolvable:$true] %s32
      %38 = dma.hbm_to_vmem [thread:$0]  %s0, 128, %s33, [#allocation3], 64, 64, 4
    $region5: #{tpu_custom_call.1} parent=1 // pred_fallthru
      _
    // Predicated region
    $region6: #{tpu_custom_call.1} parent=1 // pred_check
      _
    $region7: #{tpu_custom_call.1} parent=1 // pred_check_branch
      %40 = sbr.rel (0) target = $region9
    $region8: #{tpu_custom_call.1} parent=1 // pred_region
      %s42 = ssub.s32 512, 512
      %43 = vsyncadd [#allocation6], %s42
      %s44 = sshll.u32 [#allocation5], 4
      %s45 = int_to_ptr.vmem [resolvable:$true] %s44
      %50 = dma.hbm_to_vmem [thread:$0]  %s1, 512, %s45, [#allocation6], 128, 128, 8
    $region9: #{tpu_custom_call.1} parent=1 // pred_fallthru
      _
    // Predicated region
    $region10: #{tpu_custom_call.1} parent=1 // pred_check
      _
    $region11: #{tpu_custom_call.1} parent=1 // pred_check_branch
      %52 = sbr.rel (0) target = $region13
    $region12: #{tpu_custom_call.1} parent=1 // pred_region
      %s54 = ssub.s32 2048, 2048
      %55 = vsyncadd [#allocation6], %s54
      %s56 = sshll.u32 [#allocation7], 4
      %s57 = int_to_ptr.vmem [resolvable:$true] %s56
      %62 = dma.hbm_to_vmem [thread:$0]  %s2, 2048, %s57, [#allocation6], 128, 128, 8
    $region13: #{tpu_custom_call.1} parent=1 // pred_fallthru
      _
    // Predicated region
    $region14: #{tpu_custom_call.1} parent=1 // pred_check
      _
    $region15: #{tpu_custom_call.1} parent=1 // pred_check_branch
      %64 = sbr.rel (0) target = $region17
    $region16: #{tpu_custom_call.1} parent=1 // pred_region
      %s66 = ssub.s32 2048, 2048
      %67 = vsyncadd [#allocation9], %s66
      %s68 = sshll.u32 [#allocation8], 4
      %s69 = int_to_ptr.vmem [resolvable:$true] %s68
      %74 = dma.hbm_to_vmem [thread:$0]  %s3, 2048, %s69, [#allocation9], 128, 128, 8
    $region17: #{tpu_custom_call.1} parent=1 // pred_fallthru
      _
    // Predicated region
    $region18: #{tpu_custom_call.1} parent=1 // pred_check
      _
    $region19: #{tpu_custom_call.1} parent=1 // pred_check_branch
      %76 = sbr.rel (0) target = $region21
    $region20: #{tpu_custom_call.1} parent=1 // pred_region
      %s78 = ssub.s32 4096, 4096
      %79 = vsyncadd [#allocation9], %s78
      %s80 = sshll.u32 [#allocation10], 4
      %s81 = int_to_ptr.vmem [resolvable:$true] %s80
      %86 = dma.hbm_to_vmem [thread:$0]  %s4, 4096, %s81, [#allocation9], 256, 256, 16
    $region21: #{tpu_custom_call.1} parent=1 // pred_fallthru
      _
    // Predicated region
    $region22: #{tpu_custom_call.1} parent=1 // pred_check
      _
    $region23: #{tpu_custom_call.1} parent=1 // pred_check_branch
      %88 = sbr.rel (0) target = $region25
    $region24: #{tpu_custom_call.1} parent=1 // pred_region
      %s90 = ssub.s32 2048, 2048
      %91 = vsyncadd [#allocation12], %s90
      %s92 = sshll.u32 [#allocation11], 4
      %s93 = int_to_ptr.vmem [resolvable:$true] %s92
      %98 = dma.hbm_to_vmem [thread:$0]  %s5, 2048, %s93, [#allocation12], 128, 128, 8
    $region25: #{tpu_custom_call.1} parent=1 // pred_fallthru
      _
    // Predicated region
    $region26: #{tpu_custom_call.1} parent=1 // pred_check
      _
    $region27: #{tpu_custom_call.1} parent=1 // pred_check_branch
      %100 = sbr.rel (0) target = $region29
    $region28: #{tpu_custom_call.1} parent=1 // pred_region
      _
    $region29: #{tpu_custom_call.1} parent=1 // pred_fallthru
      _
    // Predicated region
    $region30: #{tpu_custom_call.1} parent=1 // pred_check
      _
    $region31: #{tpu_custom_call.1} parent=1 // pred_check_branch
      %102 = sbr.rel (0) target = $region33
    $region32: #{tpu_custom_call.1} parent=1 // pred_region
      %s104 = ssub.s32 2048, 2048
      %105 = vsyncadd [#allocation12], %s104
      %s106 = sshll.u32 [#allocation13], 4
      %s107 = int_to_ptr.vmem [resolvable:$true] %s106
      %112 = dma.hbm_to_vmem [thread:$0]  %s7, 2048, %s107, [#allocation12], 128, 128, 8
    $region33: #{tpu_custom_call.1} parent=1 // pred_fallthru
      _
    // Predicated region
    $region34: #{tpu_custom_call.1} parent=1 // pred_check
      _
    $region35: #{tpu_custom_call.1} parent=1 // pred_check_branch
      %114 = sbr.rel (0) target = $region37
    $region36: #{tpu_custom_call.1} parent=1 // pred_region
      %s116 = ssub.s32 2048, 2048
      %117 = vsyncadd [#allocation15], %s116
      %s118 = sshll.u32 [#allocation14], 4
      %s119 = int_to_ptr.vmem [resolvable:$true] %s118
      %124 = dma.hbm_to_vmem [thread:$0]  %s8, 2048, %s119, [#allocation15], 128, 128, 8
    $region37: #{tpu_custom_call.1} parent=1 // pred_fallthru
      _
    // Predicated region
    $region38: #{tpu_custom_call.1} parent=1 // pred_check
      _
    $region39: #{tpu_custom_call.1} parent=1 // pred_check_branch
      %126 = sbr.rel (0) target = $region41
    $region40: #{tpu_custom_call.1} parent=1 // pred_region
      %s128 = ssub.s32 4096, 4096
      %129 = vsyncadd [#allocation15], %s128
      %s130 = sshll.u32 [#allocation16], 4
      %s131 = int_to_ptr.vmem [resolvable:$true] %s130
      %136 = dma.hbm_to_vmem [thread:$0]  %s9, 4096, %s131, [#allocation15], 256, 256, 16
    $region41: #{tpu_custom_call.1} parent=1 // pred_fallthru
      _
    // Predicated region
    $region42: #{tpu_custom_call.1} parent=1 // pred_check
      _
    $region43: #{tpu_custom_call.1} parent=1 // pred_check_branch
      %138 = sbr.rel (0) target = $region45
    $region44: #{tpu_custom_call.1} parent=1 // pred_region
      %s140 = ssub.s32 2048, 2048
      %141 = vsyncadd [#allocation18], %s140
      %s142 = sshll.u32 [#allocation17], 4
      %s143 = int_to_ptr.vmem [resolvable:$true] %s142
      %148 = dma.hbm_to_vmem [thread:$0]  %s10, 2048, %s143, [#allocation18], 128, 128, 8
    $region45: #{tpu_custom_call.1} parent=1 // pred_fallthru
      _
    // Predicated region
    $region46: #{tpu_custom_call.1} parent=1 // pred_check
      _
    $region47: #{tpu_custom_call.1} parent=1 // pred_check_branch
      %150 = sbr.rel (0) target = $region49
    $region48: #{tpu_custom_call.1} parent=1 // pred_region
      _
    $region49: #{tpu_custom_call.1} parent=1 // pred_fallthru
      _
    // Predicated region
    $region50: #{tpu_custom_call.1} parent=1 // pred_check
      _
    $region51: #{tpu_custom_call.1} parent=1 // pred_check_branch
      %152 = sbr.rel (0) target = $region53
    $region52: #{tpu_custom_call.1} parent=1 // pred_region
      %153 = dma.done [#allocation3], 128
    $region53: #{tpu_custom_call.1} parent=1 // pred_fallthru
      _
    // Predicated region
    $region54: #{tpu_custom_call.1} parent=1 // pred_check
      _
    $region55: #{tpu_custom_call.1} parent=1 // pred_check_branch
      %155 = sbr.rel (0) target = $region57
    $region56: #{tpu_custom_call.1} parent=1 // pred_region
      %156 = dma.done [#allocation6], 512
    $region57: #{tpu_custom_call.1} parent=1 // pred_fallthru
      _
    // Predicated region
    $region58: #{tpu_custom_call.1} parent=1 // pred_check
      _
    $region59: #{tpu_custom_call.1} parent=1 // pred_check_branch
      %158 = sbr.rel (0) target = $region61
    $region60: #{tpu_custom_call.1} parent=1 // pred_region
      %159 = dma.done [#allocation6], 2048
    $region61: #{tpu_custom_call.1} parent=1 // pred_fallthru
      _
    // Predicated region
    $region62: #{tpu_custom_call.1} parent=1 // pred_check
      _
    $region63: #{tpu_custom_call.1} parent=1 // pred_check_branch
      %161 = sbr.rel (0) target = $region65
    $region64: #{tpu_custom_call.1} parent=1 // pred_region
      %162 = dma.done [#allocation9], 2048
    $region65: #{tpu_custom_call.1} parent=1 // pred_fallthru
      _
    // Predicated region
    $region66: #{tpu_custom_call.1} parent=1 // pred_check
      _
    $region67: #{tpu_custom_call.1} parent=1 // pred_check_branch
      %164 = sbr.rel (0) target = $region69
    $region68: #{tpu_custom_call.1} parent=1 // pred_region
      %165 = dma.done [#allocation9], 4096
    $region69: #{tpu_custom_call.1} parent=1 // pred_fallthru
      _
    // Predicated region
    $region70: #{tpu_custom_call.1} parent=1 // pred_check
      _
    $region71: #{tpu_custom_call.1} parent=1 // pred_check_branch
      %167 = sbr.rel (0) target = $region73
    $region72: #{tpu_custom_call.1} parent=1 // pred_region
      %168 = dma.done [#allocation12], 2048
    $region73: #{tpu_custom_call.1} parent=1 // pred_fallthru
      _
    // Predicated region
    $region74: #{tpu_custom_call.1} parent=1 // pred_check
      _
    $region75: #{tpu_custom_call.1} parent=1 // pred_check_branch
      %170 = sbr.rel (0) target = $region77
    $region76: #{tpu_custom_call.1} parent=1 // pred_region
      %171 = dma.done [#allocation12], 2048
    $region77: #{tpu_custom_call.1} parent=1 // pred_fallthru
      _
    // Predicated region
    $region78: #{tpu_custom_call.1} parent=1 // pred_check
      _
    $region79: #{tpu_custom_call.1} parent=1 // pred_check_branch
      %173 = sbr.rel (0) target = $region81
    $region80: #{tpu_custom_call.1} parent=1 // pred_region
      %174 = dma.done [#allocation15], 2048
    $region81: #{tpu_custom_call.1} parent=1 // pred_fallthru
      _
    // Predicated region
    $region82: #{tpu_custom_call.1} parent=1 // pred_check
      _
    $region83: #{tpu_custom_call.1} parent=1 // pred_check_branch
      %176 = sbr.rel (0) target = $region85
    $region84: #{tpu_custom_call.1} parent=1 // pred_region
      %177 = dma.done [#allocation15], 4096
    $region85: #{tpu_custom_call.1} parent=1 // pred_fallthru
      _
    // Predicated region
    $region86: #{tpu_custom_call.1} parent=1 // pred_check
      _
    $region87: #{tpu_custom_call.1} parent=1 // pred_check_branch
      %179 = sbr.rel (0) target = $region89
    $region88: #{tpu_custom_call.1} parent=1 // pred_region
      %180 = dma.done [#allocation18], 2048
    $region89: #{tpu_custom_call.1} parent=1 // pred_fallthru
      _
    %v181 = vld [vmem:[#allocation2] sm:$0xf]
    %v182 = vld [vmem:[#allocation2 + $0x4] sm:$0xf]
    %v183 = vld [vmem:[#allocation5] sm:$0xff]
    %v184 = vld [vmem:[#allocation5 + $0x8] sm:$0xff]
    %v185 = vld [vmem:[#allocation5 + $0x10] sm:$0xff]
    %v186 = vld [vmem:[#allocation5 + $0x18] sm:$0xff]
    %v187 = vld [vmem:[#allocation7] sm:$0xff]
    %v188 = vld [vmem:[#allocation7 + $0x8] sm:$0xff]
    %v189 = vld [vmem:[#allocation7 + $0x10] sm:$0xff]
    %v190 = vld [vmem:[#allocation7 + $0x18] sm:$0xff]
    %v191 = vld [vmem:[#allocation7 + $0x20] sm:$0xff]
    %v192 = vld [vmem:[#allocation7 + $0x28] sm:$0xff]
    %v193 = vld [vmem:[#allocation7 + $0x30] sm:$0xff]
    %v194 = vld [vmem:[#allocation7 + $0x38] sm:$0xff]
    %v195 = vld [vmem:[#allocation7 + $0x40] sm:$0xff]
    %v196 = vld [vmem:[#allocation7 + $0x48] sm:$0xff]
    %v197 = vld [vmem:[#allocation7 + $0x50] sm:$0xff]
    %v198 = vld [vmem:[#allocation7 + $0x58] sm:$0xff]
    %v199 = vld [vmem:[#allocation7 + $0x60] sm:$0xff]
    %v200 = vld [vmem:[#allocation7 + $0x68] sm:$0xff]
    %v201 = vld [vmem:[#allocation7 + $0x70] sm:$0xff]
    %v202 = vld [vmem:[#allocation7 + $0x78] sm:$0xff]
    %v203 = vld [vmem:[#allocation8] sm:$0xff]
    %v204 = vld [vmem:[#allocation8 + $0x8] sm:$0xff]
    %v205 = vld [vmem:[#allocation8 + $0x10] sm:$0xff]
    %v206 = vld [vmem:[#allocation8 + $0x18] sm:$0xff]
    %v207 = vld [vmem:[#allocation8 + $0x20] sm:$0xff]
    %v208 = vld [vmem:[#allocation8 + $0x28] sm:$0xff]
    %v209 = vld [vmem:[#allocation8 + $0x30] sm:$0xff]
    %v210 = vld [vmem:[#allocation8 + $0x38] sm:$0xff]
    %v211 = vld [vmem:[#allocation8 + $0x40] sm:$0xff]
    %v212 = vld [vmem:[#allocation8 + $0x48] sm:$0xff]
    %v213 = vld [vmem:[#allocation8 + $0x50] sm:$0xff]
    %v214 = vld [vmem:[#allocation8 + $0x58] sm:$0xff]
    %v215 = vld [vmem:[#allocation8 + $0x60] sm:$0xff]
    %v216 = vld [vmem:[#allocation8 + $0x68] sm:$0xff]
    %v217 = vld [vmem:[#allocation8 + $0x70] sm:$0xff]
    %v218 = vld [vmem:[#allocation8 + $0x78] sm:$0xff]
    %v219 = vld [vmem:[#allocation10] sm:$0xff]
    %v220 = vld [vmem:[#allocation10 + $0x8] sm:$0xff]
    %v221 = vld [vmem:[#allocation10 + $0x10] sm:$0xff]
    %v222 = vld [vmem:[#allocation10 + $0x18] sm:$0xff]
    %v223 = vld [vmem:[#allocation10 + $0x20] sm:$0xff]
    %v224 = vld [vmem:[#allocation10 + $0x28] sm:$0xff]
    %v225 = vld [vmem:[#allocation10 + $0x30] sm:$0xff]
    %v226 = vld [vmem:[#allocation10 + $0x38] sm:$0xff]
    %v227 = vld [vmem:[#allocation10 + $0x40] sm:$0xff]
    %v228 = vld [vmem:[#allocation10 + $0x48] sm:$0xff]
    %v229 = vld [vmem:[#allocation10 + $0x50] sm:$0xff]
    %v230 = vld [vmem:[#allocation10 + $0x58] sm:$0xff]
    %v231 = vld [vmem:[#allocation10 + $0x60] sm:$0xff]
    %v232 = vld [vmem:[#allocation10 + $0x68] sm:$0xff]
    %v233 = vld [vmem:[#allocation10 + $0x70] sm:$0xff]
    %v234 = vld [vmem:[#allocation10 + $0x78] sm:$0xff]
    %v235 = vld [vmem:[#allocation10 + $0x80] sm:$0xff]
    %v236 = vld [vmem:[#allocation10 + $0x88] sm:$0xff]
    %v237 = vld [vmem:[#allocation10 + $0x90] sm:$0xff]
    %v238 = vld [vmem:[#allocation10 + $0x98] sm:$0xff]
    %v239 = vld [vmem:[#allocation10 + $0xa0] sm:$0xff]
    %v240 = vld [vmem:[#allocation10 + $0xa8] sm:$0xff]
    %v241 = vld [vmem:[#allocation10 + $0xb0] sm:$0xff]
    %v242 = vld [vmem:[#allocation10 + $0xb8] sm:$0xff]
    %v243 = vld [vmem:[#allocation10 + $0xc0] sm:$0xff]
    %v244 = vld [vmem:[#allocation10 + $0xc8] sm:$0xff]
    %v245 = vld [vmem:[#allocation10 + $0xd0] sm:$0xff]
    %v246 = vld [vmem:[#allocation10 + $0xd8] sm:$0xff]
    %v247 = vld [vmem:[#allocation10 + $0xe0] sm:$0xff]
    %v248 = vld [vmem:[#allocation10 + $0xe8] sm:$0xff]
    %v249 = vld [vmem:[#allocation10 + $0xf0] sm:$0xff]
    %v250 = vld [vmem:[#allocation10 + $0xf8] sm:$0xff]
    %v251 = vld [vmem:[#allocation11] sm:$0xff]
    %v252 = vld [vmem:[#allocation11 + $0x8] sm:$0xff]
    %v253 = vld [vmem:[#allocation11 + $0x10] sm:$0xff]
    %v254 = vld [vmem:[#allocation11 + $0x18] sm:$0xff]
    %v255 = vld [vmem:[#allocation11 + $0x20] sm:$0xff]
    %v256 = vld [vmem:[#allocation11 + $0x28] sm:$0xff]
    %v257 = vld [vmem:[#allocation11 + $0x30] sm:$0xff]
    %v258 = vld [vmem:[#allocation11 + $0x38] sm:$0xff]
    %v259 = vld [vmem:[#allocation11 + $0x40] sm:$0xff]
    %v260 = vld [vmem:[#allocation11 + $0x48] sm:$0xff]
    %v261 = vld [vmem:[#allocation11 + $0x50] sm:$0xff]
    %v262 = vld [vmem:[#allocation11 + $0x58] sm:$0xff]
    %v263 = vld [vmem:[#allocation11 + $0x60] sm:$0xff]
    %v264 = vld [vmem:[#allocation11 + $0x68] sm:$0xff]
    %v265 = vld [vmem:[#allocation11 + $0x70] sm:$0xff]
    %v266 = vld [vmem:[#allocation11 + $0x78] sm:$0xff]
    %v267 = vld [vmem:[%s6] sm:$0x7]
    %v270 = vcombine.low %v181, %v182
    %272 = vmatprep.subr.mxu0 0.0
    %273 = vmatpush1.msra.mxu0 %v202
    %274 = vmatprep.subr.mxu0 0.0
    %275 = vmatpush1.msra.mxu0 %v201
    %276 = vmatprep.subr.mxu0 0.0
    %277 = vmatpush1.msra.mxu0 %v200
    %278 = vmatprep.subr.mxu0 0.0
    %279 = vmatpush1.msra.mxu0 %v199
    %280 = vmatprep.subr.mxu0 0.0
    %281 = vmatpush1.msra.mxu0 %v198
    %282 = vmatprep.subr.mxu0 0.0
    %283 = vmatpush1.msra.mxu0 %v197
    %284 = vmatprep.subr.mxu0 0.0
    %285 = vmatpush1.msra.mxu0 %v196
    %286 = vmatprep.subr.mxu0 0.0
    %287 = vmatpush1.msra.mxu0 %v195
    %288 = vmatprep.subr.mxu0 0.0
    %289 = vmatpush1.msra.mxu0 %v194
    %290 = vmatprep.subr.mxu0 0.0
    %291 = vmatpush1.msra.mxu0 %v193
    %292 = vmatprep.subr.mxu0 0.0
    %293 = vmatpush1.msra.mxu0 %v192
    %294 = vmatprep.subr.mxu0 0.0
    %295 = vmatpush1.msra.mxu0 %v191
    %296 = vmatprep.subr.mxu0 0.0
    %297 = vmatpush1.msra.mxu0 %v190
    %298 = vmatprep.subr.mxu0 0.0
    %299 = vmatpush1.msra.mxu0 %v189
    %300 = vmatprep.subr.mxu0 0.0
    %301 = vmatpush1.msra.mxu0 %v188
    %302 = vmatprep.subr.mxu0 0.0
    %303 = vmatpush1.msra.mxu0 %v187
    %304 = vmatprep.subr.mxu0 0.0
    %305 = vmatpush2.msra.mxu0 0.0
    %306 = vmatprep.subr.mxu0 0.0
    %307 = vmatpush2.msra.mxu0 0.0
    %308 = vmatprep.subr.mxu0 0.0
    %309 = vmatpush2.msra.mxu0 0.0
    %310 = vmatprep.subr.mxu0 0.0
    %311 = vmatpush2.msra.mxu0 0.0
    %312 = vmatprep.subr.mxu0 0.0
    %313 = vmatpush2.msra.mxu0 0.0
    %314 = vmatprep.subr.mxu0 0.0
    %315 = vmatpush2.msra.mxu0 0.0
    %316 = vmatprep.subr.mxu0 0.0
    %317 = vmatpush2.msra.mxu0 0.0
    %318 = vmatprep.subr.mxu0 0.0
    %319 = vmatpush2.msra.mxu0 0.0
    %320 = vmatprep.subr.mxu0 0.0
    %321 = vmatpush2.msra.mxu0 0.0
    %322 = vmatprep.subr.mxu0 0.0
    %323 = vmatpush2.msra.mxu0 0.0
    %324 = vmatprep.subr.mxu0 0.0
    %325 = vmatpush2.msra.mxu0 0.0
    %326 = vmatprep.subr.mxu0 0.0
    %327 = vmatpush2.msra.mxu0 0.0
    %328 = vmatprep.subr.mxu0 0.0
    %329 = vmatpush2.msra.mxu0 0.0
    %330 = vmatprep.subr.mxu0 0.0
    %331 = vmatpush2.msra.mxu0 0.0
    %332 = vmatprep.subr.mxu0 0.0
    %333 = vmatpush2.msra.mxu0 0.0
    %334 = vmatprep.subr.mxu0 0.0
    %335 = vmatpush2.msra.mxu0 0.0
    %336 = vmatprep.mubr.f32.mxu0 0.0
    %337 = vmatmul.mubr.f32.gmra.mxu0 %v270
    %v338 = vpop.f32.mrf.mxu0
    %v339 = vadd.f32 0.0, %v338
    %v340 = vpop.f32.mrf.mxu0
    %341 = vdwg.mxu0
    %342 = vmatprep.subr.mxu0 0.0
    %343 = vmatpush1.msra.mxu0 %v218
    %344 = vmatprep.subr.mxu0 0.0
    %345 = vmatpush1.msra.mxu0 %v217
    %346 = vmatprep.subr.mxu0 0.0
    %347 = vmatpush1.msra.mxu0 %v216
    %348 = vmatprep.subr.mxu0 0.0
    %349 = vmatpush1.msra.mxu0 %v215
    %350 = vmatprep.subr.mxu0 0.0
    %351 = vmatpush1.msra.mxu0 %v214
    %352 = vmatprep.subr.mxu0 0.0
    %353 = vmatpush1.msra.mxu0 %v213
    %354 = vmatprep.subr.mxu0 0.0
    %355 = vmatpush1.msra.mxu0 %v212
    %356 = vmatprep.subr.mxu0 0.0
    %357 = vmatpush1.msra.mxu0 %v211
    %358 = vmatprep.subr.mxu0 0.0
    %359 = vmatpush1.msra.mxu0 %v210
    %360 = vmatprep.subr.mxu0 0.0
    %361 = vmatpush1.msra.mxu0 %v209
    %362 = vmatprep.subr.mxu0 0.0
    %363 = vmatpush1.msra.mxu0 %v208
    %364 = vmatprep.subr.mxu0 0.0
    %365 = vmatpush1.msra.mxu0 %v207
    %366 = vmatprep.subr.mxu0 0.0
    %367 = vmatpush1.msra.mxu0 %v206
    %368 = vmatprep.subr.mxu0 0.0
    %369 = vmatpush1.msra.mxu0 %v205
    %370 = vmatprep.subr.mxu0 0.0
    %371 = vmatpush1.msra.mxu0 %v204
    %372 = vmatprep.subr.mxu0 0.0
    %373 = vmatpush1.msra.mxu0 %v203
    %374 = vmatprep.subr.mxu0 0.0
    %375 = vmatpush2.msra.mxu0 0.0
    %376 = vmatprep.subr.mxu0 0.0
    %377 = vmatpush2.msra.mxu0 0.0
    %378 = vmatprep.subr.mxu0 0.0
    %379 = vmatpush2.msra.mxu0 0.0
    %380 = vmatprep.subr.mxu0 0.0
    %381 = vmatpush2.msra.mxu0 0.0
    %382 = vmatprep.subr.mxu0 0.0
    %383 = vmatpush2.msra.mxu0 0.0
    %384 = vmatprep.subr.mxu0 0.0
    %385 = vmatpush2.msra.mxu0 0.0
    %386 = vmatprep.subr.mxu0 0.0
    %387 = vmatpush2.msra.mxu0 0.0
    %388 = vmatprep.subr.mxu0 0.0
    %389 = vmatpush2.msra.mxu0 0.0
    %390 = vmatprep.subr.mxu0 0.0
    %391 = vmatpush2.msra.mxu0 0.0
    %392 = vmatprep.subr.mxu0 0.0
    %393 = vmatpush2.msra.mxu0 0.0
    %394 = vmatprep.subr.mxu0 0.0
    %395 = vmatpush2.msra.mxu0 0.0
    %396 = vmatprep.subr.mxu0 0.0
    %397 = vmatpush2.msra.mxu0 0.0
    %398 = vmatprep.subr.mxu0 0.0
    %399 = vmatpush2.msra.mxu0 0.0
    %400 = vmatprep.subr.mxu0 0.0
    %401 = vmatpush2.msra.mxu0 0.0
    %402 = vmatprep.subr.mxu0 0.0
    %403 = vmatpush2.msra.mxu0 0.0
    %404 = vmatprep.subr.mxu0 0.0
    %405 = vmatpush2.msra.mxu0 0.0
    %406 = vmatprep.mubr.f32.mxu0 0.0
    %407 = vmatmul.mubr.f32.gmra.mxu0 %v183
    %v408 = vpop.f32.mrf.mxu0
    %v409 = vadd.f32 0.0, %v408
    %v410 = vpop.f32.mrf.mxu0
    %411 = vmatprep.mubr.f32.mxu0 0.0
    %412 = vmatmul.mubr.f32.gmra.mxu0 %v184
    %v413 = vpop.f32.mrf.mxu0
    %v414 = vadd.f32 0.0, %v413
    %v415 = vpop.f32.mrf.mxu0
    %416 = vmatprep.mubr.f32.mxu0 0.0
    %417 = vmatmul.mubr.f32.gmra.mxu0 %v185
    %v418 = vpop.f32.mrf.mxu0
    %v419 = vadd.f32 0.0, %v418
    %v420 = vpop.f32.mrf.mxu0
    %421 = vmatprep.mubr.f32.mxu0 0.0
    %422 = vmatmul.mubr.f32.gmra.mxu0 %v186
    %v423 = vpop.f32.mrf.mxu0
    %v424 = vadd.f32 0.0, %v423
    %v425 = vpop.f32.mrf.mxu0
    %426 = vdwg.mxu0
    %427 = vmatprep.subr.mxu0 %v250
    %428 = vmatpush1.msra.mxu0 %v249
    %429 = vmatprep.subr.mxu0 %v248
    %430 = vmatpush1.msra.mxu0 %v247
    %431 = vmatprep.subr.mxu0 %v246
    %432 = vmatpush1.msra.mxu0 %v245
    %433 = vmatprep.subr.mxu0 %v244
    %434 = vmatpush1.msra.mxu0 %v243
    %435 = vmatprep.subr.mxu0 %v242
    %436 = vmatpush1.msra.mxu0 %v241
    %437 = vmatprep.subr.mxu0 %v240
    %438 = vmatpush1.msra.mxu0 %v239
    %439 = vmatprep.subr.mxu0 %v238
    %440 = vmatpush1.msra.mxu0 %v237
    %441 = vmatprep.subr.mxu0 %v236
    %442 = vmatpush1.msra.mxu0 %v235
    %443 = vmatprep.subr.mxu0 %v234
    %444 = vmatpush1.msra.mxu0 %v233
    %445 = vmatprep.subr.mxu0 %v232
    %446 = vmatpush1.msra.mxu0 %v231
    %447 = vmatprep.subr.mxu0 %v230
    %448 = vmatpush1.msra.mxu0 %v229
    %449 = vmatprep.subr.mxu0 %v228
    %450 = vmatpush1.msra.mxu0 %v227
    %451 = vmatprep.subr.mxu0 %v226
    %452 = vmatpush1.msra.mxu0 %v225
    %453 = vmatprep.subr.mxu0 %v224
    %454 = vmatpush1.msra.mxu0 %v223
    %455 = vmatprep.subr.mxu0 %v222
    %456 = vmatpush1.msra.mxu0 %v221
    %457 = vmatprep.subr.mxu0 %v220
    %458 = vmatpush1.msra.mxu0 %v219
    %459 = vmatprep.subr.mxu0 0.0
    %460 = vmatpush2.msra.mxu0 0.0
    %461 = vmatprep.subr.mxu0 0.0
    %462 = vmatpush2.msra.mxu0 0.0
    %463 = vmatprep.subr.mxu0 0.0
    %464 = vmatpush2.msra.mxu0 0.0
    %465 = vmatprep.subr.mxu0 0.0
    %466 = vmatpush2.msra.mxu0 0.0
    %467 = vmatprep.subr.mxu0 0.0
    %468 = vmatpush2.msra.mxu0 0.0
    %469 = vmatprep.subr.mxu0 0.0
    %470 = vmatpush2.msra.mxu0 0.0
    %471 = vmatprep.subr.mxu0 0.0
    %472 = vmatpush2.msra.mxu0 0.0
    %473 = vmatprep.subr.mxu0 0.0
    %474 = vmatpush2.msra.mxu0 0.0
    %475 = vmatprep.subr.mxu0 0.0
    %476 = vmatpush2.msra.mxu0 0.0
    %477 = vmatprep.subr.mxu0 0.0
    %478 = vmatpush2.msra.mxu0 0.0
    %479 = vmatprep.subr.mxu0 0.0
    %480 = vmatpush2.msra.mxu0 0.0
    %481 = vmatprep.subr.mxu0 0.0
    %482 = vmatpush2.msra.mxu0 0.0
    %483 = vmatprep.subr.mxu0 0.0
    %484 = vmatpush2.msra.mxu0 0.0
    %485 = vmatprep.subr.mxu0 0.0
    %486 = vmatpush2.msra.mxu0 0.0
    %487 = vmatprep.subr.mxu0 0.0
    %488 = vmatpush2.msra.mxu0 0.0
    %489 = vmatprep.subr.mxu0 0.0
    %490 = vmatpush2.msra.mxu0 0.0
    %491 = vmatprep.mubr.f32.mxu0 0.0
    %492 = vmatmul.mubr.f32.gmra.mxu0 %v339
    %v493 = vpop.f32.mrf.mxu0
    %v494 = vadd.f32 0.0, %v493
    %v495 = vpop.f32.mrf.mxu0
    %v496 = vadd.f32 0.0, %v495
    %497 = vdwg.mxu0
    %498 = vmatprep.subr.mxu0 0.0
    %499 = vmatpush1.msra.mxu0 %v266
    %500 = vmatprep.subr.mxu0 0.0
    %501 = vmatpush1.msra.mxu0 %v265
    %502 = vmatprep.subr.mxu0 0.0
    %503 = vmatpush1.msra.mxu0 %v264
    %504 = vmatprep.subr.mxu0 0.0
    %505 = vmatpush1.msra.mxu0 %v263
    %506 = vmatprep.subr.mxu0 0.0
    %507 = vmatpush1.msra.mxu0 %v262
    %508 = vmatprep.subr.mxu0 0.0
    %509 = vmatpush1.msra.mxu0 %v261
    %510 = vmatprep.subr.mxu0 0.0
    %511 = vmatpush1.msra.mxu0 %v260
    %512 = vmatprep.subr.mxu0 0.0
    %513 = vmatpush1.msra.mxu0 %v259
    %514 = vmatprep.subr.mxu0 0.0
    %515 = vmatpush1.msra.mxu0 %v258
    %516 = vmatprep.subr.mxu0 0.0
    %517 = vmatpush1.msra.mxu0 %v257
    %518 = vmatprep.subr.mxu0 0.0
    %519 = vmatpush1.msra.mxu0 %v256
    %520 = vmatprep.subr.mxu0 0.0
    %521 = vmatpush1.msra.mxu0 %v255
    %522 = vmatprep.subr.mxu0 0.0
    %523 = vmatpush1.msra.mxu0 %v254
    %524 = vmatprep.subr.mxu0 0.0
    %525 = vmatpush1.msra.mxu0 %v253
    %526 = vmatprep.subr.mxu0 0.0
    %527 = vmatpush1.msra.mxu0 %v252
    %528 = vmatprep.subr.mxu0 0.0
    %529 = vmatpush1.msra.mxu0 %v251
    %530 = vmatprep.subr.mxu0 0.0
    %531 = vmatpush2.msra.mxu0 0.0
    %532 = vmatprep.subr.mxu0 0.0
    %533 = vmatpush2.msra.mxu0 0.0
    %534 = vmatprep.subr.mxu0 0.0
    %535 = vmatpush2.msra.mxu0 0.0
    %536 = vmatprep.subr.mxu0 0.0
    %537 = vmatpush2.msra.mxu0 0.0
    %538 = vmatprep.subr.mxu0 0.0
    %539 = vmatpush2.msra.mxu0 0.0
    %540 = vmatprep.subr.mxu0 0.0
    %541 = vmatpush2.msra.mxu0 0.0
    %542 = vmatprep.subr.mxu0 0.0
    %543 = vmatpush2.msra.mxu0 0.0
    %544 = vmatprep.subr.mxu0 0.0
    %545 = vmatpush2.msra.mxu0 0.0
    %546 = vmatprep.subr.mxu0 0.0
    %547 = vmatpush2.msra.mxu0 0.0
    %548 = vmatprep.subr.mxu0 0.0
    %549 = vmatpush2.msra.mxu0 0.0
    %550 = vmatprep.subr.mxu0 0.0
    %551 = vmatpush2.msra.mxu0 0.0
    %552 = vmatprep.subr.mxu0 0.0
    %553 = vmatpush2.msra.mxu0 0.0
    %554 = vmatprep.subr.mxu0 0.0
    %555 = vmatpush2.msra.mxu0 0.0
    %556 = vmatprep.subr.mxu0 0.0
    %557 = vmatpush2.msra.mxu0 0.0
    %558 = vmatprep.subr.mxu0 0.0
    %559 = vmatpush2.msra.mxu0 0.0
    %560 = vmatprep.subr.mxu0 0.0
    %561 = vmatpush2.msra.mxu0 0.0
    %562 = vmatprep.mubr.f32.mxu0 0.0
    %563 = vmatmul.mubr.f32.gmra.mxu0 %v409
    %v564 = vpop.f32.mrf.mxu0
    %v565 = vadd.f32 0.0, %v564
    %v566 = vpop.f32.mrf.mxu0
    %567 = vmatprep.mubr.f32.mxu0 0.0
    %568 = vmatmul.mubr.f32.gmra.mxu0 %v414
    %v569 = vpop.f32.mrf.mxu0
    %v570 = vadd.f32 0.0, %v569
    %v571 = vpop.f32.mrf.mxu0
    %572 = vmatprep.mubr.f32.mxu0 0.0
    %573 = vmatmul.mubr.f32.gmra.mxu0 %v419
    %v574 = vpop.f32.mrf.mxu0
    %v575 = vadd.f32 0.0, %v574
    %v576 = vpop.f32.mrf.mxu0
    %577 = vmatprep.mubr.f32.mxu0 0.0
    %578 = vmatmul.mubr.f32.gmra.mxu0 %v424
    %v579 = vpop.f32.mrf.mxu0
    %v580 = vadd.f32 0.0, %v579
    %v581 = vpop.f32.mrf.mxu0
    %582 = vdwg.mxu0
    %v584 = vcombine.high %v339, %v339
    %v590 = vcombine.high %v409, %v409
    %v591 = vcombine.high %v414, %v414
    %v592 = vcombine.high %v419, %v419
    %v593 = vcombine.high %v424, %v424
    %v600 = vcombine.low %v494, %v496
    %v601 = vcombine.high %v494, %v496
    %v605 = vunpack.c.l.s4 1966171168
    %v606 = vunpack.c.0.s8 %v605
    %v607 = vlaneseq
    %v608 = vshrl.u32 %v607, 7
    %v609 = vsub.s32 %v606, %v608
    %v610 = vrot.slane %v600, %v609
    %v611 = vcombine.high %v610, %v610
    %v613 = vunpack.c.l.s4 1966171168
    %v614 = vunpack.c.0.s8 %v613
    %v615 = vlaneseq
    %v616 = vshrl.u32 %v615, 7
    %v617 = vsub.s32 %v614, %v616
    %v618 = vrot.slane %v610, %v617
    %v620 = vunpack.c.l.s4 1966171168
    %v621 = vunpack.c.0.s8 %v620
    %v622 = vlaneseq
    %v623 = vshrl.u32 %v622, 7
    %v624 = vsub.s32 %v621, %v623
    %v625 = vrot.slane %v611, %v624
    %v626 = vcombine.high %v618, %v618
    %v627 = vcombine.high %v625, %v625
    %v629 = vunpack.c.l.s4 1966171168
    %v630 = vunpack.c.0.s8 %v629
    %v631 = vlaneseq
    %v632 = vshrl.u32 %v631, 7
    %v633 = vsub.s32 %v630, %v632
    %v634 = vrot.slane %v601, %v633
    %v635 = vcombine.high %v634, %v634
    %v637 = vunpack.c.l.s4 1966171168
    %v638 = vunpack.c.0.s8 %v637
    %v639 = vlaneseq
    %v640 = vshrl.u32 %v639, 7
    %v641 = vsub.s32 %v638, %v640
    %v642 = vrot.slane %v634, %v641
    %v644 = vunpack.c.l.s4 1966171168
    %v645 = vunpack.c.0.s8 %v644
    %v646 = vlaneseq
    %v647 = vshrl.u32 %v646, 7
    %v648 = vsub.s32 %v645, %v647
    %v649 = vrot.slane %v635, %v648
    %v650 = vcombine.high %v642, %v642
    %v651 = vcombine.high %v649, %v649
    %v652 = vrot.slane %v618, 1
    %v653 = vrot.slane %v625, 1
    %v654 = vrot.slane %v626, 1
    %v655 = vrot.slane %v627, 1
    %v656 = vrot.slane %v642, 1
    %v657 = vrot.slane %v649, 1
    %v658 = vrot.slane %v650, 1
    %v659 = vrot.slane %v651, 1
    %v660 = vlaneseq
    %v661 = vshrl.u32 %v660, 7
    %v662 = vsub.s32 0, %v661
    %v663 = vrot.slane %v652, %v662
    %v664 = vlaneseq
    %v665 = vshrl.u32 %v664, 7
    %v666 = vsub.s32 0, %v665
    %v667 = vrot.slane %v653, %v666
    %v668 = vlaneseq
    %v669 = vshrl.u32 %v668, 7
    %v670 = vsub.s32 0, %v669
    %v671 = vrot.slane %v654, %v670
    %v672 = vlaneseq
    %v673 = vshrl.u32 %v672, 7
    %v674 = vsub.s32 0, %v673
    %v675 = vrot.slane %v655, %v674
    %v676 = vlaneseq
    %v677 = vshrl.u32 %v676, 7
    %v678 = vsub.s32 0, %v677
    %v679 = vrot.slane %v656, %v678
    %v680 = vlaneseq
    %v681 = vshrl.u32 %v680, 7
    %v682 = vsub.s32 0, %v681
    %v683 = vrot.slane %v657, %v682
    %v684 = vlaneseq
    %v685 = vshrl.u32 %v684, 7
    %v686 = vsub.s32 0, %v685
    %v687 = vrot.slane %v658, %v686
    %v688 = vlaneseq
    %v689 = vshrl.u32 %v688, 7
    %v690 = vsub.s32 0, %v689
    %v691 = vrot.slane %v659, %v690
    %v700 = vadd.f32 %v600, %v663
    %v701 = vadd.f32 %v600, %v667
    %v702 = vadd.f32 %v600, %v671
    %v703 = vadd.f32 %v600, %v675
    %v704 = vadd.f32 %v601, %v679
    %v705 = vadd.f32 %v601, %v683
    %v706 = vadd.f32 %v601, %v687
    %v707 = vadd.f32 %v601, %v691
    %v712 = vcombine.high %v565, %v565
    %v713 = vcombine.high %v570, %v570
    %v714 = vcombine.high %v575, %v575
    %v715 = vcombine.high %v580, %v580
    %v720 = vadd.f32 %v700, %v565
    %v721 = vadd.f32 %v701, %v712
    %v722 = vadd.f32 %v702, %v570
    %v723 = vadd.f32 %v703, %v713
    %v724 = vadd.f32 %v704, %v575
    %v725 = vadd.f32 %v705, %v714
    %v726 = vadd.f32 %v706, %v580
    %v727 = vadd.f32 %v707, %v715
    %v728 = vlaneseq
    %v729 = vshrl.u32 %v728, 7
    %v730 = vsub.s32 0, %v729
    %v731 = vrot.slane %v267, %v730
    %v732 = vmul.f32 %v339, %v731
    %v733 = vmul.f32 %v584, %v731
    %vm734 = vcmask 1043456
    %v735 = vsel %vm734, %v732, 0.0
    %736 = vadd.xlane.f32.xlu0 %v735
    %v737 = vpop.xlane.xlu0 %736
    %v738 = vsel %vm734, %v733, 0.0
    %739 = vadd.xlane.f32.xlu0 %v738
    %v740 = vpop.xlane.xlu0 %739
    %v741 = vlaneseq
    %v742 = vshrl.u32 %v741, 7
    %v743 = vsub.s32 1, %v742
    %v744 = vrot.slane %v267, %v743
    %v745 = vmul.f32 %v339, %v744
    %v746 = vmul.f32 %v584, %v744
    %v747 = vsel %vm734, %v745, 0.0
    %748 = vadd.xlane.f32.xlu0 %v747
    %v749 = vpop.xlane.xlu0 %748
    %v750 = vsel %vm734, %v746, 0.0
    %751 = vadd.xlane.f32.xlu0 %v750
    %v752 = vpop.xlane.xlu0 %751
    %v753 = vlaneseq
    %v754 = vshrl.u32 %v753, 7
    %v755 = vsub.s32 2, %v754
    %v756 = vrot.slane %v267, %v755
    %v757 = vmul.f32 %v409, %v756
    %v758 = vmul.f32 %v590, %v756
    %v759 = vmul.f32 %v414, %v756
    %v760 = vmul.f32 %v591, %v756
    %v761 = vmul.f32 %v419, %v756
    %v762 = vmul.f32 %v592, %v756
    %v763 = vmul.f32 %v424, %v756
    %v764 = vmul.f32 %v593, %v756
    %v765 = vsel %vm734, %v757, 0.0
    %766 = vadd.xlane.f32.xlu0 %v765
    %v767 = vpop.xlane.xlu0 %766
    %v768 = vsel %vm734, %v758, 0.0
    %769 = vadd.xlane.f32.xlu0 %v768
    %v770 = vpop.xlane.xlu0 %769
    %v771 = vsel %vm734, %v759, 0.0
    %772 = vadd.xlane.f32.xlu0 %v771
    %v773 = vpop.xlane.xlu0 %772
    %v774 = vsel %vm734, %v760, 0.0
    %775 = vadd.xlane.f32.xlu0 %v774
    %v776 = vpop.xlane.xlu0 %775
    %v777 = vsel %vm734, %v761, 0.0
    %778 = vadd.xlane.f32.xlu0 %v777
    %v779 = vpop.xlane.xlu0 %778
    %v780 = vsel %vm734, %v762, 0.0
    %781 = vadd.xlane.f32.xlu0 %v780
    %v782 = vpop.xlane.xlu0 %781
    %v783 = vsel %vm734, %v763, 0.0
    %784 = vadd.xlane.f32.xlu0 %v783
    %v785 = vpop.xlane.xlu0 %784
    %v786 = vsel %vm734, %v764, 0.0
    %787 = vadd.xlane.f32.xlu0 %v786
    %v788 = vpop.xlane.xlu0 %787
    %v791 = vlaneseq
    %v792 = vshrl.u32 %v791, 7
    %v793 = vsub.s32 0, %v792
    %v794 = vrot.slane %v749, %v793
    %v795 = vlaneseq
    %v796 = vshrl.u32 %v795, 7
    %v797 = vsub.s32 1, %v796
    %v798 = vrot.slane %v749, %v797
    %v799 = vlaneseq
    %v800 = vshrl.u32 %v799, 7
    %v801 = vsub.s32 2, %v800
    %v802 = vrot.slane %v749, %v801
    %v803 = vlaneseq
    %v804 = vshrl.u32 %v803, 7
    %v805 = vsub.s32 3, %v804
    %v806 = vrot.slane %v749, %v805
    %v807 = vlaneseq
    %v808 = vshrl.u32 %v807, 7
    %v809 = vsub.s32 0, %v808
    %v810 = vrot.slane %v752, %v809
    %v811 = vlaneseq
    %v812 = vshrl.u32 %v811, 7
    %v813 = vsub.s32 1, %v812
    %v814 = vrot.slane %v752, %v813
    %v815 = vlaneseq
    %v816 = vshrl.u32 %v815, 7
    %v817 = vsub.s32 2, %v816
    %v818 = vrot.slane %v752, %v817
    %v819 = vlaneseq
    %v820 = vshrl.u32 %v819, 7
    %v821 = vsub.s32 3, %v820
    %v822 = vrot.slane %v752, %v821
    %v831 = vadd.f32 %v737, %v794
    %v832 = vadd.f32 %v737, %v798
    %v833 = vadd.f32 %v737, %v802
    %v834 = vadd.f32 %v737, %v806
    %v835 = vadd.f32 %v740, %v810
    %v836 = vadd.f32 %v740, %v814
    %v837 = vadd.f32 %v740, %v818
    %v838 = vadd.f32 %v740, %v822
    %v839 = vadd.f32 %v831, %v767
    %v840 = vadd.f32 %v832, %v770
    %v841 = vadd.f32 %v833, %v773
    %v842 = vadd.f32 %v834, %v776
    %v843 = vadd.f32 %v835, %v779
    %v844 = vadd.f32 %v836, %v782
    %v845 = vadd.f32 %v837, %v785
    %v846 = vadd.f32 %v838, %v788
    %vm847 = vcmp.gt.f32.partialorder %v839, 0.0
    %vm848 = vcmp.gt.f32.partialorder %v840, 0.0
    %vm849 = vcmp.gt.f32.partialorder %v841, 0.0
    %vm850 = vcmp.gt.f32.partialorder %v842, 0.0
    %vm851 = vcmp.gt.f32.partialorder %v843, 0.0
    %vm852 = vcmp.gt.f32.partialorder %v844, 0.0
    %vm853 = vcmp.gt.f32.partialorder %v845, 0.0
    %vm854 = vcmp.gt.f32.partialorder %v846, 0.0
    %v855 = vmul.f32 %v839, 0.01
    %v856 = vmul.f32 %v840, 0.01
    %v857 = vmul.f32 %v841, 0.01
    %v858 = vmul.f32 %v842, 0.01
    %v859 = vmul.f32 %v843, 0.01
    %v860 = vmul.f32 %v844, 0.01
    %v861 = vmul.f32 %v845, 0.01
    %v862 = vmul.f32 %v846, 0.01
    %v863 = vsel %vm847, %v839, %v855
    %v864 = vsel %vm848, %v840, %v856
    %v865 = vsel %vm849, %v841, %v857
    %v866 = vsel %vm850, %v842, %v858
    %v867 = vsel %vm851, %v843, %v859
    %v868 = vsel %vm852, %v844, %v860
    %v869 = vsel %vm853, %v845, %v861
    %v870 = vsel %vm854, %v846, %v862
    %879 = vset.pattern.permute.xlu0 0
    %880 = vperm.xlu0 %879, %v863
    %v881 = vpop.permute.xlu0 %880
    %882 = vset.pattern.permute.xlu0 0
    %883 = vperm.xlu0 %882, %v864
    %v884 = vpop.permute.xlu0 %883
    %885 = vset.pattern.permute.xlu0 0
    %886 = vperm.xlu0 %885, %v865
    %v887 = vpop.permute.xlu0 %886
    %888 = vset.pattern.permute.xlu0 0
    %889 = vperm.xlu0 %888, %v866
    %v890 = vpop.permute.xlu0 %889
    %891 = vset.pattern.permute.xlu0 0
    %892 = vperm.xlu0 %891, %v867
    %v893 = vpop.permute.xlu0 %892
    %894 = vset.pattern.permute.xlu0 0
    %895 = vperm.xlu0 %894, %v868
    %v896 = vpop.permute.xlu0 %895
    %897 = vset.pattern.permute.xlu0 0
    %898 = vperm.xlu0 %897, %v869
    %v899 = vpop.permute.xlu0 %898
    %900 = vset.pattern.permute.xlu0 0
    %901 = vperm.xlu0 %900, %v870
    %v902 = vpop.permute.xlu0 %901
    %v903 = vlaneseq
    %v904 = vand.u32 %v903, 127
    %v905 = vlaneseq
    %v906 = vshrl.u32 %v905, 7
    %v907 = vsub.s32 %v904, %v906
    %v908 = vrot.slane %v881, %v907
    %v909 = vlaneseq
    %v910 = vshrl.u32 %v909, 7
    %v911 = vsub.s32 %v904, %v910
    %v912 = vrot.slane %v884, %v911
    %v913 = vlaneseq
    %v914 = vshrl.u32 %v913, 7
    %v915 = vsub.s32 %v904, %v914
    %v916 = vrot.slane %v887, %v915
    %v917 = vlaneseq
    %v918 = vshrl.u32 %v917, 7
    %v919 = vsub.s32 %v904, %v918
    %v920 = vrot.slane %v890, %v919
    %v921 = vlaneseq
    %v922 = vshrl.u32 %v921, 7
    %v923 = vsub.s32 %v904, %v922
    %v924 = vrot.slane %v893, %v923
    %v925 = vlaneseq
    %v926 = vshrl.u32 %v925, 7
    %v927 = vsub.s32 %v904, %v926
    %v928 = vrot.slane %v896, %v927
    %v929 = vlaneseq
    %v930 = vshrl.u32 %v929, 7
    %v931 = vsub.s32 %v904, %v930
    %v932 = vrot.slane %v899, %v931
    %v933 = vlaneseq
    %v934 = vshrl.u32 %v933, 7
    %v935 = vsub.s32 %v904, %v934
    %v936 = vrot.slane %v902, %v935
    %vm937 = vcmask 1041409
    %v938 = vsel %vm937, %v912, %v908
    %vm939 = vcmask 1042434
    %v940 = vsel %vm939, %v916, %v938
    %vm941 = vcmask 1043459
    %v942 = vsel %vm941, %v920, %v940
    %v943 = vsel %vm937, %v928, %v924
    %v944 = vsel %vm939, %v932, %v943
    %v945 = vsel %vm941, %v936, %v944
    %vm948 = vcmask 27648
    %v949 = vsel %vm948, %v942, -inf
    %950 = vmax.xlane.f32.xlu0 %v949
    %v951 = vpop.xlane.xlu0 %950
    %v952 = vsel %vm948, %v945, -inf
    %953 = vmax.xlane.f32.xlu0 %v952
    %v954 = vpop.xlane.xlu0 %953
    %v957 = vlaneseq
    %v958 = vshrl.u32 %v957, 7
    %v959 = vsub.s32 0, %v958
    %v960 = vrot.slane %v951, %v959
    %v961 = vlaneseq
    %v962 = vshrl.u32 %v961, 7
    %v963 = vsub.s32 1, %v962
    %v964 = vrot.slane %v951, %v963
    %v965 = vlaneseq
    %v966 = vshrl.u32 %v965, 7
    %v967 = vsub.s32 2, %v966
    %v968 = vrot.slane %v951, %v967
    %v969 = vlaneseq
    %v970 = vshrl.u32 %v969, 7
    %v971 = vsub.s32 3, %v970
    %v972 = vrot.slane %v951, %v971
    %v973 = vlaneseq
    %v974 = vshrl.u32 %v973, 7
    %v975 = vsub.s32 0, %v974
    %v976 = vrot.slane %v954, %v975
    %v977 = vlaneseq
    %v978 = vshrl.u32 %v977, 7
    %v979 = vsub.s32 1, %v978
    %v980 = vrot.slane %v954, %v979
    %v981 = vlaneseq
    %v982 = vshrl.u32 %v981, 7
    %v983 = vsub.s32 2, %v982
    %v984 = vrot.slane %v954, %v983
    %v985 = vlaneseq
    %v986 = vshrl.u32 %v985, 7
    %v987 = vsub.s32 3, %v986
    %v988 = vrot.slane %v954, %v987
    %v997 = vsub.f32 %v863, %v960
    %v998 = vsub.f32 %v864, %v964
    %v999 = vsub.f32 %v865, %v968
    %v1000 = vsub.f32 %v866, %v972
    %v1001 = vsub.f32 %v867, %v976
    %v1002 = vsub.f32 %v868, %v980
    %v1003 = vsub.f32 %v869, %v984
    %v1004 = vsub.f32 %v870, %v988
    %v1005 = vmul.f32 %v997, 1.442695
    %v1006 = vpow.pop %v1005
    %v1007 = vmul.f32 %v998, 1.442695
    %v1008 = vpow.pop %v1007
    %v1009 = vmul.f32 %v999, 1.442695
    %v1010 = vpow.pop %v1009
    %v1011 = vmul.f32 %v1000, 1.442695
    %v1012 = vpow.pop %v1011
    %v1013 = vmul.f32 %v1001, 1.442695
    %v1014 = vpow.pop %v1013
    %v1015 = vmul.f32 %v1002, 1.442695
    %v1016 = vpow.pop %v1015
    %v1017 = vmul.f32 %v1003, 1.442695
    %v1018 = vpow.pop %v1017
    %v1019 = vmul.f32 %v1004, 1.442695
    %v1020 = vpow.pop %v1019
    %1029 = vset.pattern.permute.xlu0 0
    %1030 = vperm.xlu0 %1029, %v1006
    %v1031 = vpop.permute.xlu0 %1030
    %1032 = vset.pattern.permute.xlu0 0
    %1033 = vperm.xlu0 %1032, %v1008
    %v1034 = vpop.permute.xlu0 %1033
    %1035 = vset.pattern.permute.xlu0 0
    %1036 = vperm.xlu0 %1035, %v1010
    %v1037 = vpop.permute.xlu0 %1036
    %1038 = vset.pattern.permute.xlu0 0
    %1039 = vperm.xlu0 %1038, %v1012
    %v1040 = vpop.permute.xlu0 %1039
    %1041 = vset.pattern.permute.xlu0 0
    %1042 = vperm.xlu0 %1041, %v1014
    %v1043 = vpop.permute.xlu0 %1042
    %1044 = vset.pattern.permute.xlu0 0
    %1045 = vperm.xlu0 %1044, %v1016
    %v1046 = vpop.permute.xlu0 %1045
    %1047 = vset.pattern.permute.xlu0 0
    %1048 = vperm.xlu0 %1047, %v1018
    %v1049 = vpop.permute.xlu0 %1048
    %1050 = vset.pattern.permute.xlu0 0
    %1051 = vperm.xlu0 %1050, %v1020
    %v1052 = vpop.permute.xlu0 %1051
    %v1053 = vlaneseq
    %v1054 = vshrl.u32 %v1053, 7
    %v1055 = vsub.s32 %v904, %v1054
    %v1056 = vrot.slane %v1031, %v1055
    %v1057 = vlaneseq
    %v1058 = vshrl.u32 %v1057, 7
    %v1059 = vsub.s32 %v904, %v1058
    %v1060 = vrot.slane %v1034, %v1059
    %v1061 = vlaneseq
    %v1062 = vshrl.u32 %v1061, 7
    %v1063 = vsub.s32 %v904, %v1062
    %v1064 = vrot.slane %v1037, %v1063
    %v1065 = vlaneseq
    %v1066 = vshrl.u32 %v1065, 7
    %v1067 = vsub.s32 %v904, %v1066
    %v1068 = vrot.slane %v1040, %v1067
    %v1069 = vlaneseq
    %v1070 = vshrl.u32 %v1069, 7
    %v1071 = vsub.s32 %v904, %v1070
    %v1072 = vrot.slane %v1043, %v1071
    %v1073 = vlaneseq
    %v1074 = vshrl.u32 %v1073, 7
    %v1075 = vsub.s32 %v904, %v1074
    %v1076 = vrot.slane %v1046, %v1075
    %v1077 = vlaneseq
    %v1078 = vshrl.u32 %v1077, 7
    %v1079 = vsub.s32 %v904, %v1078
    %v1080 = vrot.slane %v1049, %v1079
    %v1081 = vlaneseq
    %v1082 = vshrl.u32 %v1081, 7
    %v1083 = vsub.s32 %v904, %v1082
    %v1084 = vrot.slane %v1052, %v1083
    %v1085 = vsel %vm937, %v1060, %v1056
    %v1086 = vsel %vm939, %v1064, %v1085
    %v1087 = vsel %vm941, %v1068, %v1086
    %v1088 = vsel %vm937, %v1076, %v1072
    %v1089 = vsel %vm939, %v1080, %v1088
    %v1090 = vsel %vm941, %v1084, %v1089
    %v1093 = vsel %vm948, %v1087, 0.0
    %1094 = vadd.xlane.f32.xlu0 %v1093
    %v1095 = vpop.xlane.xlu0 %1094
    %v1096 = vsel %vm948, %v1090, 0.0
    %1097 = vadd.xlane.f32.xlu0 %v1096
    %v1098 = vpop.xlane.xlu0 %1097
    %v1101 = vlaneseq
    %v1102 = vshrl.u32 %v1101, 7
    %v1103 = vsub.s32 0, %v1102
    %v1104 = vrot.slane %v1095, %v1103
    %v1105 = vlaneseq
    %v1106 = vshrl.u32 %v1105, 7
    %v1107 = vsub.s32 1, %v1106
    %v1108 = vrot.slane %v1095, %v1107
    %v1109 = vlaneseq
    %v1110 = vshrl.u32 %v1109, 7
    %v1111 = vsub.s32 2, %v1110
    %v1112 = vrot.slane %v1095, %v1111
    %v1113 = vlaneseq
    %v1114 = vshrl.u32 %v1113, 7
    %v1115 = vsub.s32 3, %v1114
    %v1116 = vrot.slane %v1095, %v1115
    %v1117 = vlaneseq
    %v1118 = vshrl.u32 %v1117, 7
    %v1119 = vsub.s32 0, %v1118
    %v1120 = vrot.slane %v1098, %v1119
    %v1121 = vlaneseq
    %v1122 = vshrl.u32 %v1121, 7
    %v1123 = vsub.s32 1, %v1122
    %v1124 = vrot.slane %v1098, %v1123
    %v1125 = vlaneseq
    %v1126 = vshrl.u32 %v1125, 7
    %v1127 = vsub.s32 2, %v1126
    %v1128 = vrot.slane %v1098, %v1127
    %v1129 = vlaneseq
    %v1130 = vshrl.u32 %v1129, 7
    %v1131 = vsub.s32 3, %v1130
    %v1132 = vrot.slane %v1098, %v1131
    %v1141 = vrcp.pop %v1104
    %v1142 = vmul.f32 %v1006, %v1141
    %v1143 = vrcp.pop %v1108
    %v1144 = vmul.f32 %v1008, %v1143
    %v1145 = vrcp.pop %v1112
    %v1146 = vmul.f32 %v1010, %v1145
    %v1147 = vrcp.pop %v1116
    %v1148 = vmul.f32 %v1012, %v1147
    %v1149 = vrcp.pop %v1120
    %v1150 = vmul.f32 %v1014, %v1149
    %v1151 = vrcp.pop %v1124
    %v1152 = vmul.f32 %v1016, %v1151
    %v1153 = vrcp.pop %v1128
    %v1154 = vmul.f32 %v1018, %v1153
    %v1155 = vrcp.pop %v1132
    %v1156 = vmul.f32 %v1020, %v1155
    %1158 = vset.pattern.permute.xlu0 0
    %1159 = vperm.xlu0 %1158, %v1142
    %v1160 = vpop.permute.xlu0 %1159
    %1163 = vset.pattern.permute.xlu0 0
    %1164 = vperm.xlu0 %1163, %v1144
    %v1165 = vpop.permute.xlu0 %1164
    %1168 = vset.pattern.permute.xlu0 0
    %1169 = vperm.xlu0 %1168, %v1146
    %v1170 = vpop.permute.xlu0 %1169
    %1173 = vset.pattern.permute.xlu0 0
    %1174 = vperm.xlu0 %1173, %v1148
    %v1175 = vpop.permute.xlu0 %1174
    %1178 = vset.pattern.permute.xlu0 0
    %1179 = vperm.xlu0 %1178, %v1150
    %v1180 = vpop.permute.xlu0 %1179
    %1183 = vset.pattern.permute.xlu0 0
    %1184 = vperm.xlu0 %1183, %v1152
    %v1185 = vpop.permute.xlu0 %1184
    %1188 = vset.pattern.permute.xlu0 0
    %1189 = vperm.xlu0 %1188, %v1154
    %v1190 = vpop.permute.xlu0 %1189
    %1193 = vset.pattern.permute.xlu0 0
    %1194 = vperm.xlu0 %1193, %v1156
    %v1195 = vpop.permute.xlu0 %1194
    %v1197 = vmul.f32 %v1160, %v339
    %v1198 = vmul.f32 %v1165, %v339
    %v1199 = vmul.f32 %v1170, %v339
    %v1200 = vmul.f32 %v1175, %v339
    %v1201 = vmul.f32 %v1180, %v584
    %v1202 = vmul.f32 %v1185, %v584
    %v1203 = vmul.f32 %v1190, %v584
    %v1204 = vmul.f32 %v1195, %v584
    %v1205 = vsel %vm734, %v1197, 0.0
    %v1206 = vrot.slane %v1205, 4
    %v1207 = vadd.f32 %v1205, %v1206
    %v1208 = vrot.slane %v1207, 2
    %v1209 = vadd.f32 %v1207, %v1208
    %v1210 = vrot.slane %v1209, 1
    %v1211 = vadd.f32 %v1209, %v1210
    %v1212 = vsel %vm734, %v1198, 0.0
    %v1213 = vrot.slane %v1212, 4
    %v1214 = vadd.f32 %v1212, %v1213
    %v1215 = vrot.slane %v1214, 2
    %v1216 = vadd.f32 %v1214, %v1215
    %v1217 = vrot.slane %v1216, 1
    %v1218 = vadd.f32 %v1216, %v1217
    %v1219 = vsel %vm734, %v1199, 0.0
    %v1220 = vrot.slane %v1219, 4
    %v1221 = vadd.f32 %v1219, %v1220
    %v1222 = vrot.slane %v1221, 2
    %v1223 = vadd.f32 %v1221, %v1222
    %v1224 = vrot.slane %v1223, 1
    %v1225 = vadd.f32 %v1223, %v1224
    %v1226 = vsel %vm734, %v1200, 0.0
    %v1227 = vrot.slane %v1226, 4
    %v1228 = vadd.f32 %v1226, %v1227
    %v1229 = vrot.slane %v1228, 2
    %v1230 = vadd.f32 %v1228, %v1229
    %v1231 = vrot.slane %v1230, 1
    %v1232 = vadd.f32 %v1230, %v1231
    %v1233 = vsel %vm734, %v1201, 0.0
    %v1234 = vrot.slane %v1233, 4
    %v1235 = vadd.f32 %v1233, %v1234
    %v1236 = vrot.slane %v1235, 2
    %v1237 = vadd.f32 %v1235, %v1236
    %v1238 = vrot.slane %v1237, 1
    %v1239 = vadd.f32 %v1237, %v1238
    %v1240 = vsel %vm734, %v1202, 0.0
    %v1241 = vrot.slane %v1240, 4
    %v1242 = vadd.f32 %v1240, %v1241
    %v1243 = vrot.slane %v1242, 2
    %v1244 = vadd.f32 %v1242, %v1243
    %v1245 = vrot.slane %v1244, 1
    %v1246 = vadd.f32 %v1244, %v1245
    %v1247 = vsel %vm734, %v1203, 0.0
    %v1248 = vrot.slane %v1247, 4
    %v1249 = vadd.f32 %v1247, %v1248
    %v1250 = vrot.slane %v1249, 2
    %v1251 = vadd.f32 %v1249, %v1250
    %v1252 = vrot.slane %v1251, 1
    %v1253 = vadd.f32 %v1251, %v1252
    %v1254 = vsel %vm734, %v1204, 0.0
    %v1255 = vrot.slane %v1254, 4
    %v1256 = vadd.f32 %v1254, %v1255
    %v1257 = vrot.slane %v1256, 2
    %v1258 = vadd.f32 %v1256, %v1257
    %v1259 = vrot.slane %v1258, 1
    %v1260 = vadd.f32 %v1258, %v1259
    %v1269 = vsel %vm937, %v1218, %v1211
    %v1270 = vsel %vm939, %v1225, %v1269
    %v1271 = vsel %vm941, %v1232, %v1270
    %v1272 = vsel %vm937, %v1246, %v1239
    %v1273 = vsel %vm939, %v1253, %v1272
    %v1274 = vsel %vm941, %v1260, %v1273
    %v1277 = vsel %vm734, %v1271, 0.0
    %1278 = vadd.xlane.f32.xlu0 %v1277
    %v1279 = vpop.xlane.xlu0 %1278
    %v1280 = vsel %vm734, %v1274, 0.0
    %1281 = vadd.xlane.f32.xlu0 %v1280
    %v1282 = vpop.xlane.xlu0 %1281
    %v1283 = vrcp.pop 128.0
    %v1284 = vmul.f32 %v1279, %v1283
    %v1285 = vmul.f32 %v1282, %v1283
    %v1286 = vsel %vm734, %v1284, 0.0
    %v1287 = vsel %vm734, %v1285, 0.0
    %v1288 = vadd.f32 %v1286, %v1287
    %v1289 = vrcp.pop 2.0
    %v1290 = vmul.f32 %v1288, %v1289
    %v1292 = vrot.slane %v1290, 1
    %v1293 = vrot.slane %v1290, 2
    %v1294 = vrot.slane %v1290, 3
    %v1299 = vsub.f32 %v1211, %v1290
    %v1300 = vsub.f32 %v1218, %v1292
    %v1301 = vsub.f32 %v1225, %v1293
    %v1302 = vsub.f32 %v1232, %v1294
    %v1303 = vsub.f32 %v1239, %v1290
    %v1304 = vsub.f32 %v1246, %v1292
    %v1305 = vsub.f32 %v1253, %v1293
    %v1306 = vsub.f32 %v1260, %v1294
    %v1307 = vmul.f32 %v1299, %v1299
    %v1308 = vmul.f32 %v1300, %v1300
    %v1309 = vmul.f32 %v1301, %v1301
    %v1310 = vmul.f32 %v1302, %v1302
    %v1311 = vmul.f32 %v1303, %v1303
    %v1312 = vmul.f32 %v1304, %v1304
    %v1313 = vmul.f32 %v1305, %v1305
    %v1314 = vmul.f32 %v1306, %v1306
    %v1323 = vrot.slane %v1308, 7
    %v1324 = vsel %vm937, %v1323, %v1307
    %v1325 = vrot.slane %v1309, 6
    %v1326 = vsel %vm939, %v1325, %v1324
    %v1327 = vrot.slane %v1310, 5
    %v1328 = vsel %vm941, %v1327, %v1326
    %v1329 = vrot.slane %v1312, 7
    %v1330 = vsel %vm937, %v1329, %v1311
    %v1331 = vrot.slane %v1313, 6
    %v1332 = vsel %vm939, %v1331, %v1330
    %v1333 = vrot.slane %v1314, 5
    %v1334 = vsel %vm941, %v1333, %v1332
    %v1337 = vsel %vm734, %v1328, 0.0
    %1338 = vadd.xlane.f32.xlu0 %v1337
    %v1339 = vpop.xlane.xlu0 %1338
    %v1340 = vsel %vm734, %v1334, 0.0
    %1341 = vadd.xlane.f32.xlu0 %v1340
    %v1342 = vpop.xlane.xlu0 %1341
    %v1343 = vmul.f32 %v1339, %v1283
    %v1344 = vmul.f32 %v1342, %v1283
    %v1345 = vsel %vm734, %v1343, 0.0
    %v1346 = vsel %vm734, %v1344, 0.0
    %v1347 = vadd.f32 %v1345, %v1346
    %v1348 = vmul.f32 %v1347, %v1289
    %v1349 = vadd.f32 %v1348, 1e-05
    %v1350 = vrsqrt.pop %v1349
    %v1352 = vrot.slane %v1350, 1
    %v1353 = vrot.slane %v1350, 2
    %v1354 = vrot.slane %v1350, 3
    %v1359 = vmul.f32 %v1299, %v1350
    %v1360 = vmul.f32 %v1300, %v1352
    %v1361 = vmul.f32 %v1301, %v1353
    %v1362 = vmul.f32 %v1302, %v1354
    %v1363 = vmul.f32 %v1303, %v1350
    %v1364 = vmul.f32 %v1304, %v1352
    %v1365 = vmul.f32 %v1305, %v1353
    %v1366 = vmul.f32 %v1306, %v1354
    %v1375 = vrot.slane %v1360, 7
    %v1376 = vsel %vm937, %v1375, %v1359
    %v1377 = vrot.slane %v1361, 6
    %v1378 = vsel %vm939, %v1377, %v1376
    %v1379 = vrot.slane %v1362, 5
    %v1380 = vsel %vm941, %v1379, %v1378
    %v1381 = vrot.slane %v1364, 7
    %v1382 = vsel %vm937, %v1381, %v1363
    %v1383 = vrot.slane %v1365, 6
    %v1384 = vsel %vm939, %v1383, %v1382
    %v1385 = vrot.slane %v1366, 5
    %v1386 = vsel %vm941, %v1385, %v1384
    %v1389 = vadd.f32 %v181, %v1380
    %v1390 = vadd.f32 %v182, %v1386
    %vm1391 = vcmp.gt.f32.partialorder %v1389, 0.0
    %vm1392 = vcmp.gt.f32.partialorder %v1390, 0.0
    %v1393 = vmin.f32 %v1389, 0.0
    %v1394 = vmin.f32 %v1390, 0.0
    %v1395 = vmul.f32 %v1393, 1.442695
    %v1396 = vpow.pop %v1395
    %v1397 = vmul.f32 %v1394, 1.442695
    %v1398 = vpow.pop %v1397
    %v1399 = vsub.f32 %v1396, 1.0
    %v1400 = vsub.f32 %v1398, 1.0
    %v1401 = vsel %vm1391, %v1389, %v1399
    %v1402 = vsel %vm1392, %v1390, %v1400
    %v1411 = vcombine.low %v720, %v721
    %v1412 = vcombine.low %v722, %v723
    %v1413 = vcombine.low %v724, %v725
    %v1414 = vcombine.low %v726, %v727
    %1419 = vadd.xlane.f32.xlu0 %v1411
    %v1420 = vpop.xlane.xlu0 %1419
    %1421 = vadd.xlane.f32.xlu0 %v1412
    %v1422 = vpop.xlane.xlu0 %1421
    %1423 = vadd.xlane.f32.xlu0 %v1413
    %v1424 = vpop.xlane.xlu0 %1423
    %1425 = vadd.xlane.f32.xlu0 %v1414
    %v1426 = vpop.xlane.xlu0 %1425
    %v1427 = vmul.f32 %v1420, %v1283
    %v1428 = vmul.f32 %v1422, %v1283
    %v1429 = vmul.f32 %v1424, %v1283
    %v1430 = vmul.f32 %v1426, %v1283
    %v1431 = vadd.f32 %v1427, %v1429
    %v1432 = vadd.f32 %v1428, %v1430
    %v1433 = vmul.f32 %v1431, %v1289
    %v1434 = vmul.f32 %v1432, %v1289
    %v1438 = vunpack.c.l.s4 839922192
    %v1439 = vunpack.c.0.s8 %v1438
    %v1440 = vlaneseq
    %v1441 = vshrl.u32 %v1440, 7
    %v1442 = vsub.s32 %v1439, %v1441
    %v1443 = vrot.slane %v1433, %v1442
    %v1445 = vunpack.c.l.s4 1985246804
    %v1446 = vunpack.c.0.s8 %v1445
    %v1447 = vlaneseq
    %v1448 = vshrl.u32 %v1447, 7
    %v1449 = vsub.s32 %v1446, %v1448
    %v1450 = vrot.slane %v1433, %v1449
    %v1452 = vunpack.c.l.s4 839922192
    %v1453 = vunpack.c.0.s8 %v1452
    %v1454 = vlaneseq
    %v1455 = vshrl.u32 %v1454, 7
    %v1456 = vsub.s32 %v1453, %v1455
    %v1457 = vrot.slane %v1434, %v1456
    %v1459 = vunpack.c.l.s4 1985246804
    %v1460 = vunpack.c.0.s8 %v1459
    %v1461 = vlaneseq
    %v1462 = vshrl.u32 %v1461, 7
    %v1463 = vsub.s32 %v1460, %v1462
    %v1464 = vrot.slane %v1434, %v1463
    %v1469 = vsub.f32 %v720, %v1443
    %v1470 = vsub.f32 %v721, %v1450
    %v1471 = vsub.f32 %v722, %v1457
    %v1472 = vsub.f32 %v723, %v1464
    %v1473 = vsub.f32 %v724, %v1443
    %v1474 = vsub.f32 %v725, %v1450
    %v1475 = vsub.f32 %v726, %v1457
    %v1476 = vsub.f32 %v727, %v1464
    %v1477 = vmul.f32 %v1469, %v1469
    %v1478 = vmul.f32 %v1470, %v1470
    %v1479 = vmul.f32 %v1471, %v1471
    %v1480 = vmul.f32 %v1472, %v1472
    %v1481 = vmul.f32 %v1473, %v1473
    %v1482 = vmul.f32 %v1474, %v1474
    %v1483 = vmul.f32 %v1475, %v1475
    %v1484 = vmul.f32 %v1476, %v1476
    %v1493 = vcombine.low %v1477, %v1478
    %v1494 = vcombine.low %v1479, %v1480
    %v1495 = vcombine.low %v1481, %v1482
    %v1496 = vcombine.low %v1483, %v1484
    %1501 = vadd.xlane.f32.xlu0 %v1493
    %v1502 = vpop.xlane.xlu0 %1501
    %1503 = vadd.xlane.f32.xlu0 %v1494
    %v1504 = vpop.xlane.xlu0 %1503
    %1505 = vadd.xlane.f32.xlu0 %v1495
    %v1506 = vpop.xlane.xlu0 %1505
    %1507 = vadd.xlane.f32.xlu0 %v1496
    %v1508 = vpop.xlane.xlu0 %1507
    %v1509 = vmul.f32 %v1502, %v1283
    %v1510 = vmul.f32 %v1504, %v1283
    %v1511 = vmul.f32 %v1506, %v1283
    %v1512 = vmul.f32 %v1508, %v1283
    %v1513 = vadd.f32 %v1509, %v1511
    %v1514 = vadd.f32 %v1510, %v1512
    %v1515 = vmul.f32 %v1513, %v1289
    %v1516 = vmul.f32 %v1514, %v1289
    %v1517 = vadd.f32 %v1515, 1e-05
    %v1518 = vadd.f32 %v1516, 1e-05
    %v1519 = vrsqrt.pop %v1517
    %v1520 = vrsqrt.pop %v1518
    %v1524 = vunpack.c.l.s4 839922192
    %v1525 = vunpack.c.0.s8 %v1524
    %v1526 = vlaneseq
    %v1527 = vshrl.u32 %v1526, 7
    %v1528 = vsub.s32 %v1525, %v1527
    %v1529 = vrot.slane %v1519, %v1528
    %v1531 = vunpack.c.l.s4 1985246804
    %v1532 = vunpack.c.0.s8 %v1531
    %v1533 = vlaneseq
    %v1534 = vshrl.u32 %v1533, 7
    %v1535 = vsub.s32 %v1532, %v1534
    %v1536 = vrot.slane %v1519, %v1535
    %v1538 = vunpack.c.l.s4 839922192
    %v1539 = vunpack.c.0.s8 %v1538
    %v1540 = vlaneseq
    %v1541 = vshrl.u32 %v1540, 7
    %v1542 = vsub.s32 %v1539, %v1541
    %v1543 = vrot.slane %v1520, %v1542
    %v1545 = vunpack.c.l.s4 1985246804
    %v1546 = vunpack.c.0.s8 %v1545
    %v1547 = vlaneseq
    %v1548 = vshrl.u32 %v1547, 7
    %v1549 = vsub.s32 %v1546, %v1548
    %v1550 = vrot.slane %v1520, %v1549
    %v1555 = vmul.f32 %v1469, %v1529
    %v1556 = vmul.f32 %v1470, %v1536
    %v1557 = vmul.f32 %v1471, %v1543
    %v1558 = vmul.f32 %v1472, %v1550
    %v1559 = vmul.f32 %v1473, %v1529
    %v1560 = vmul.f32 %v1474, %v1536
    %v1561 = vmul.f32 %v1475, %v1543
    %v1562 = vmul.f32 %v1476, %v1550
    %vm1563 = vcmp.gt.f32.partialorder %v1555, 0.0
    %vm1564 = vcmp.gt.f32.partialorder %v1556, 0.0
    %vm1565 = vcmp.gt.f32.partialorder %v1557, 0.0
    %vm1566 = vcmp.gt.f32.partialorder %v1558, 0.0
    %vm1567 = vcmp.gt.f32.partialorder %v1559, 0.0
    %vm1568 = vcmp.gt.f32.partialorder %v1560, 0.0
    %vm1569 = vcmp.gt.f32.partialorder %v1561, 0.0
    %vm1570 = vcmp.gt.f32.partialorder %v1562, 0.0
    %v1571 = vmin.f32 %v1555, 0.0
    %v1572 = vmin.f32 %v1556, 0.0
    %v1573 = vmin.f32 %v1557, 0.0
    %v1574 = vmin.f32 %v1558, 0.0
    %v1575 = vmin.f32 %v1559, 0.0
    %v1576 = vmin.f32 %v1560, 0.0
    %v1577 = vmin.f32 %v1561, 0.0
    %v1578 = vmin.f32 %v1562, 0.0
    %v1579 = vmul.f32 %v1571, 1.442695
    %v1580 = vpow.pop %v1579
    %v1581 = vmul.f32 %v1572, 1.442695
    %v1582 = vpow.pop %v1581
    %v1583 = vmul.f32 %v1573, 1.442695
    %v1584 = vpow.pop %v1583
    %v1585 = vmul.f32 %v1574, 1.442695
    %v1586 = vpow.pop %v1585
    %v1587 = vmul.f32 %v1575, 1.442695
    %v1588 = vpow.pop %v1587
    %v1589 = vmul.f32 %v1576, 1.442695
    %v1590 = vpow.pop %v1589
    %v1591 = vmul.f32 %v1577, 1.442695
    %v1592 = vpow.pop %v1591
    %v1593 = vmul.f32 %v1578, 1.442695
    %v1594 = vpow.pop %v1593
    %v1595 = vsub.f32 %v1580, 1.0
    %v1596 = vsub.f32 %v1582, 1.0
    %v1597 = vsub.f32 %v1584, 1.0
    %v1598 = vsub.f32 %v1586, 1.0
    %v1599 = vsub.f32 %v1588, 1.0
    %v1600 = vsub.f32 %v1590, 1.0
    %v1601 = vsub.f32 %v1592, 1.0
    %v1602 = vsub.f32 %v1594, 1.0
    %v1603 = vsel %vm1563, %v1555, %v1595
    %v1604 = vsel %vm1564, %v1556, %v1596
    %v1605 = vsel %vm1565, %v1557, %v1597
    %v1606 = vsel %vm1566, %v1558, %v1598
    %v1607 = vsel %vm1567, %v1559, %v1599
    %v1608 = vsel %vm1568, %v1560, %v1600
    %v1609 = vsel %vm1569, %v1561, %v1601
    %v1610 = vsel %vm1570, %v1562, %v1602
    %v1611 = vld [vmem:[#allocation13] sm:$0xff]
    %v1612 = vld [vmem:[#allocation13 + $0x8] sm:$0xff]
    %v1613 = vld [vmem:[#allocation13 + $0x10] sm:$0xff]
    %v1614 = vld [vmem:[#allocation13 + $0x18] sm:$0xff]
    %v1615 = vld [vmem:[#allocation13 + $0x20] sm:$0xff]
    %v1616 = vld [vmem:[#allocation13 + $0x28] sm:$0xff]
    %v1617 = vld [vmem:[#allocation13 + $0x30] sm:$0xff]
    %v1618 = vld [vmem:[#allocation13 + $0x38] sm:$0xff]
    %v1619 = vld [vmem:[#allocation13 + $0x40] sm:$0xff]
    %v1620 = vld [vmem:[#allocation13 + $0x48] sm:$0xff]
    %v1621 = vld [vmem:[#allocation13 + $0x50] sm:$0xff]
    %v1622 = vld [vmem:[#allocation13 + $0x58] sm:$0xff]
    %v1623 = vld [vmem:[#allocation13 + $0x60] sm:$0xff]
    %v1624 = vld [vmem:[#allocation13 + $0x68] sm:$0xff]
    %v1625 = vld [vmem:[#allocation13 + $0x70] sm:$0xff]
    %v1626 = vld [vmem:[#allocation13 + $0x78] sm:$0xff]
    %v1627 = vld [vmem:[#allocation14] sm:$0xff]
    %v1628 = vld [vmem:[#allocation14 + $0x8] sm:$0xff]
    %v1629 = vld [vmem:[#allocation14 + $0x10] sm:$0xff]
    %v1630 = vld [vmem:[#allocation14 + $0x18] sm:$0xff]
    %v1631 = vld [vmem:[#allocation14 + $0x20] sm:$0xff]
    %v1632 = vld [vmem:[#allocation14 + $0x28] sm:$0xff]
    %v1633 = vld [vmem:[#allocation14 + $0x30] sm:$0xff]
    %v1634 = vld [vmem:[#allocation14 + $0x38] sm:$0xff]
    %v1635 = vld [vmem:[#allocation14 + $0x40] sm:$0xff]
    %v1636 = vld [vmem:[#allocation14 + $0x48] sm:$0xff]
    %v1637 = vld [vmem:[#allocation14 + $0x50] sm:$0xff]
    %v1638 = vld [vmem:[#allocation14 + $0x58] sm:$0xff]
    %v1639 = vld [vmem:[#allocation14 + $0x60] sm:$0xff]
    %v1640 = vld [vmem:[#allocation14 + $0x68] sm:$0xff]
    %v1641 = vld [vmem:[#allocation14 + $0x70] sm:$0xff]
    %v1642 = vld [vmem:[#allocation14 + $0x78] sm:$0xff]
    %v1643 = vld [vmem:[#allocation16] sm:$0xff]
    %v1644 = vld [vmem:[#allocation16 + $0x8] sm:$0xff]
    %v1645 = vld [vmem:[#allocation16 + $0x10] sm:$0xff]
    %v1646 = vld [vmem:[#allocation16 + $0x18] sm:$0xff]
    %v1647 = vld [vmem:[#allocation16 + $0x20] sm:$0xff]
    %v1648 = vld [vmem:[#allocation16 + $0x28] sm:$0xff]
    %v1649 = vld [vmem:[#allocation16 + $0x30] sm:$0xff]
    %v1650 = vld [vmem:[#allocation16 + $0x38] sm:$0xff]
    %v1651 = vld [vmem:[#allocation16 + $0x40] sm:$0xff]
    %v1652 = vld [vmem:[#allocation16 + $0x48] sm:$0xff]
    %v1653 = vld [vmem:[#allocation16 + $0x50] sm:$0xff]
    %v1654 = vld [vmem:[#allocation16 + $0x58] sm:$0xff]
    %v1655 = vld [vmem:[#allocation16 + $0x60] sm:$0xff]
    %v1656 = vld [vmem:[#allocation16 + $0x68] sm:$0xff]
    %v1657 = vld [vmem:[#allocation16 + $0x70] sm:$0xff]
    %v1658 = vld [vmem:[#allocation16 + $0x78] sm:$0xff]
    %v1659 = vld [vmem:[#allocation16 + $0x80] sm:$0xff]
    %v1660 = vld [vmem:[#allocation16 + $0x88] sm:$0xff]
    %v1661 = vld [vmem:[#allocation16 + $0x90] sm:$0xff]
    %v1662 = vld [vmem:[#allocation16 + $0x98] sm:$0xff]
    %v1663 = vld [vmem:[#allocation16 + $0xa0] sm:$0xff]
    %v1664 = vld [vmem:[#allocation16 + $0xa8] sm:$0xff]
    %v1665 = vld [vmem:[#allocation16 + $0xb0] sm:$0xff]
    %v1666 = vld [vmem:[#allocation16 + $0xb8] sm:$0xff]
    %v1667 = vld [vmem:[#allocation16 + $0xc0] sm:$0xff]
    %v1668 = vld [vmem:[#allocation16 + $0xc8] sm:$0xff]
    %v1669 = vld [vmem:[#allocation16 + $0xd0] sm:$0xff]
    %v1670 = vld [vmem:[#allocation16 + $0xd8] sm:$0xff]
    %v1671 = vld [vmem:[#allocation16 + $0xe0] sm:$0xff]
    %v1672 = vld [vmem:[#allocation16 + $0xe8] sm:$0xff]
    %v1673 = vld [vmem:[#allocation16 + $0xf0] sm:$0xff]
    %v1674 = vld [vmem:[#allocation16 + $0xf8] sm:$0xff]
    %v1675 = vld [vmem:[#allocation17] sm:$0xff]
    %v1676 = vld [vmem:[#allocation17 + $0x8] sm:$0xff]
    %v1677 = vld [vmem:[#allocation17 + $0x10] sm:$0xff]
    %v1678 = vld [vmem:[#allocation17 + $0x18] sm:$0xff]
    %v1679 = vld [vmem:[#allocation17 + $0x20] sm:$0xff]
    %v1680 = vld [vmem:[#allocation17 + $0x28] sm:$0xff]
    %v1681 = vld [vmem:[#allocation17 + $0x30] sm:$0xff]
    %v1682 = vld [vmem:[#allocation17 + $0x38] sm:$0xff]
    %v1683 = vld [vmem:[#allocation17 + $0x40] sm:$0xff]
    %v1684 = vld [vmem:[#allocation17 + $0x48] sm:$0xff]
    %v1685 = vld [vmem:[#allocation17 + $0x50] sm:$0xff]
    %v1686 = vld [vmem:[#allocation17 + $0x58] sm:$0xff]
    %v1687 = vld [vmem:[#allocation17 + $0x60] sm:$0xff]
    %v1688 = vld [vmem:[#allocation17 + $0x68] sm:$0xff]
    %v1689 = vld [vmem:[#allocation17 + $0x70] sm:$0xff]
    %v1690 = vld [vmem:[#allocation17 + $0x78] sm:$0xff]
    %v1691 = vld [vmem:[%s11] sm:$0x7]
    %v1694 = vcombine.low %v1401, %v1402
    %1696 = vmatprep.subr.mxu0 0.0
    %1697 = vmatpush1.msra.mxu0 %v1626
    %1698 = vmatprep.subr.mxu0 0.0
    %1699 = vmatpush1.msra.mxu0 %v1625
    %1700 = vmatprep.subr.mxu0 0.0
    %1701 = vmatpush1.msra.mxu0 %v1624
    %1702 = vmatprep.subr.mxu0 0.0
    %1703 = vmatpush1.msra.mxu0 %v1623
    %1704 = vmatprep.subr.mxu0 0.0
    %1705 = vmatpush1.msra.mxu0 %v1622
    %1706 = vmatprep.subr.mxu0 0.0
    %1707 = vmatpush1.msra.mxu0 %v1621
    %1708 = vmatprep.subr.mxu0 0.0
    %1709 = vmatpush1.msra.mxu0 %v1620
    %1710 = vmatprep.subr.mxu0 0.0
    %1711 = vmatpush1.msra.mxu0 %v1619
    %1712 = vmatprep.subr.mxu0 0.0
    %1713 = vmatpush1.msra.mxu0 %v1618
    %1714 = vmatprep.subr.mxu0 0.0
    %1715 = vmatpush1.msra.mxu0 %v1617
    %1716 = vmatprep.subr.mxu0 0.0
    %1717 = vmatpush1.msra.mxu0 %v1616
    %1718 = vmatprep.subr.mxu0 0.0
    %1719 = vmatpush1.msra.mxu0 %v1615
    %1720 = vmatprep.subr.mxu0 0.0
    %1721 = vmatpush1.msra.mxu0 %v1614
    %1722 = vmatprep.subr.mxu0 0.0
    %1723 = vmatpush1.msra.mxu0 %v1613
    %1724 = vmatprep.subr.mxu0 0.0
    %1725 = vmatpush1.msra.mxu0 %v1612
    %1726 = vmatprep.subr.mxu0 0.0
    %1727 = vmatpush1.msra.mxu0 %v1611
    %1728 = vmatprep.subr.mxu0 0.0
    %1729 = vmatpush2.msra.mxu0 0.0
    %1730 = vmatprep.subr.mxu0 0.0
    %1731 = vmatpush2.msra.mxu0 0.0
    %1732 = vmatprep.subr.mxu0 0.0
    %1733 = vmatpush2.msra.mxu0 0.0
    %1734 = vmatprep.subr.mxu0 0.0
    %1735 = vmatpush2.msra.mxu0 0.0
    %1736 = vmatprep.subr.mxu0 0.0
    %1737 = vmatpush2.msra.mxu0 0.0
    %1738 = vmatprep.subr.mxu0 0.0
    %1739 = vmatpush2.msra.mxu0 0.0
    %1740 = vmatprep.subr.mxu0 0.0
    %1741 = vmatpush2.msra.mxu0 0.0
    %1742 = vmatprep.subr.mxu0 0.0
    %1743 = vmatpush2.msra.mxu0 0.0
    %1744 = vmatprep.subr.mxu0 0.0
    %1745 = vmatpush2.msra.mxu0 0.0
    %1746 = vmatprep.subr.mxu0 0.0
    %1747 = vmatpush2.msra.mxu0 0.0
    %1748 = vmatprep.subr.mxu0 0.0
    %1749 = vmatpush2.msra.mxu0 0.0
    %1750 = vmatprep.subr.mxu0 0.0
    %1751 = vmatpush2.msra.mxu0 0.0
    %1752 = vmatprep.subr.mxu0 0.0
    %1753 = vmatpush2.msra.mxu0 0.0
    %1754 = vmatprep.subr.mxu0 0.0
    %1755 = vmatpush2.msra.mxu0 0.0
    %1756 = vmatprep.subr.mxu0 0.0
    %1757 = vmatpush2.msra.mxu0 0.0
    %1758 = vmatprep.subr.mxu0 0.0
    %1759 = vmatpush2.msra.mxu0 0.0
    %1760 = vmatprep.mubr.f32.mxu0 0.0
    %1761 = vmatmul.mubr.f32.gmra.mxu0 %v1694
    %v1762 = vpop.f32.mrf.mxu0
    %v1763 = vadd.f32 0.0, %v1762
    %v1764 = vpop.f32.mrf.mxu0
    %1765 = vdwg.mxu0
    %v1774 = vcombine.low %v1603, %v1604
    %v1775 = vcombine.low %v1605, %v1606
    %v1776 = vcombine.low %v1607, %v1608
    %v1777 = vcombine.low %v1609, %v1610
    %1782 = vmatprep.subr.mxu0 0.0
    %1783 = vmatpush1.msra.mxu0 %v1642
    %1784 = vmatprep.subr.mxu0 0.0
    %1785 = vmatpush1.msra.mxu0 %v1641
    %1786 = vmatprep.subr.mxu0 0.0
    %1787 = vmatpush1.msra.mxu0 %v1640
    %1788 = vmatprep.subr.mxu0 0.0
    %1789 = vmatpush1.msra.mxu0 %v1639
    %1790 = vmatprep.subr.mxu0 0.0
    %1791 = vmatpush1.msra.mxu0 %v1638
    %1792 = vmatprep.subr.mxu0 0.0
    %1793 = vmatpush1.msra.mxu0 %v1637
    %1794 = vmatprep.subr.mxu0 0.0
    %1795 = vmatpush1.msra.mxu0 %v1636
    %1796 = vmatprep.subr.mxu0 0.0
    %1797 = vmatpush1.msra.mxu0 %v1635
    %1798 = vmatprep.subr.mxu0 0.0
    %1799 = vmatpush1.msra.mxu0 %v1634
    %1800 = vmatprep.subr.mxu0 0.0
    %1801 = vmatpush1.msra.mxu0 %v1633
    %1802 = vmatprep.subr.mxu0 0.0
    %1803 = vmatpush1.msra.mxu0 %v1632
    %1804 = vmatprep.subr.mxu0 0.0
    %1805 = vmatpush1.msra.mxu0 %v1631
    %1806 = vmatprep.subr.mxu0 0.0
    %1807 = vmatpush1.msra.mxu0 %v1630
    %1808 = vmatprep.subr.mxu0 0.0
    %1809 = vmatpush1.msra.mxu0 %v1629
    %1810 = vmatprep.subr.mxu0 0.0
    %1811 = vmatpush1.msra.mxu0 %v1628
    %1812 = vmatprep.subr.mxu0 0.0
    %1813 = vmatpush1.msra.mxu0 %v1627
    %1814 = vmatprep.subr.mxu0 0.0
    %1815 = vmatpush2.msra.mxu0 0.0
    %1816 = vmatprep.subr.mxu0 0.0
    %1817 = vmatpush2.msra.mxu0 0.0
    %1818 = vmatprep.subr.mxu0 0.0
    %1819 = vmatpush2.msra.mxu0 0.0
    %1820 = vmatprep.subr.mxu0 0.0
    %1821 = vmatpush2.msra.mxu0 0.0
    %1822 = vmatprep.subr.mxu0 0.0
    %1823 = vmatpush2.msra.mxu0 0.0
    %1824 = vmatprep.subr.mxu0 0.0
    %1825 = vmatpush2.msra.mxu0 0.0
    %1826 = vmatprep.subr.mxu0 0.0
    %1827 = vmatpush2.msra.mxu0 0.0
    %1828 = vmatprep.subr.mxu0 0.0
    %1829 = vmatpush2.msra.mxu0 0.0
    %1830 = vmatprep.subr.mxu0 0.0
    %1831 = vmatpush2.msra.mxu0 0.0
    %1832 = vmatprep.subr.mxu0 0.0
    %1833 = vmatpush2.msra.mxu0 0.0
    %1834 = vmatprep.subr.mxu0 0.0
    %1835 = vmatpush2.msra.mxu0 0.0
    %1836 = vmatprep.subr.mxu0 0.0
    %1837 = vmatpush2.msra.mxu0 0.0
    %1838 = vmatprep.subr.mxu0 0.0
    %1839 = vmatpush2.msra.mxu0 0.0
    %1840 = vmatprep.subr.mxu0 0.0
    %1841 = vmatpush2.msra.mxu0 0.0
    %1842 = vmatprep.subr.mxu0 0.0
    %1843 = vmatpush2.msra.mxu0 0.0
    %1844 = vmatprep.subr.mxu0 0.0
    %1845 = vmatpush2.msra.mxu0 0.0
    %1846 = vmatprep.mubr.f32.mxu0 0.0
    %1847 = vmatmul.mubr.f32.gmra.mxu0 %v1774
    %v1848 = vpop.f32.mrf.mxu0
    %v1849 = vadd.f32 0.0, %v1848
    %v1850 = vpop.f32.mrf.mxu0
    %1851 = vmatprep.mubr.f32.mxu0 0.0
    %1852 = vmatmul.mubr.f32.gmra.mxu0 %v1775
    %v1853 = vpop.f32.mrf.mxu0
    %v1854 = vadd.f32 0.0, %v1853
    %v1855 = vpop.f32.mrf.mxu0
    %1856 = vmatprep.mubr.f32.mxu0 0.0
    %1857 = vmatmul.mubr.f32.gmra.mxu0 %v1776
    %v1858 = vpop.f32.mrf.mxu0
    %v1859 = vadd.f32 0.0, %v1858
    %v1860 = vpop.f32.mrf.mxu0
    %1861 = vmatprep.mubr.f32.mxu0 0.0
    %1862 = vmatmul.mubr.f32.gmra.mxu0 %v1777
    %v1863 = vpop.f32.mrf.mxu0
    %v1864 = vadd.f32 0.0, %v1863
    %v1865 = vpop.f32.mrf.mxu0
    %1866 = vdwg.mxu0
    %1867 = vmatprep.subr.mxu0 %v1674
    %1868 = vmatpush1.msra.mxu0 %v1673
    %1869 = vmatprep.subr.mxu0 %v1672
    %1870 = vmatpush1.msra.mxu0 %v1671
    %1871 = vmatprep.subr.mxu0 %v1670
    %1872 = vmatpush1.msra.mxu0 %v1669
    %1873 = vmatprep.subr.mxu0 %v1668
    %1874 = vmatpush1.msra.mxu0 %v1667
    %1875 = vmatprep.subr.mxu0 %v1666
    %1876 = vmatpush1.msra.mxu0 %v1665
    %1877 = vmatprep.subr.mxu0 %v1664
    %1878 = vmatpush1.msra.mxu0 %v1663
    %1879 = vmatprep.subr.mxu0 %v1662
    %1880 = vmatpush1.msra.mxu0 %v1661
    %1881 = vmatprep.subr.mxu0 %v1660
    %1882 = vmatpush1.msra.mxu0 %v1659
    %1883 = vmatprep.subr.mxu0 %v1658
    %1884 = vmatpush1.msra.mxu0 %v1657
    %1885 = vmatprep.subr.mxu0 %v1656
    %1886 = vmatpush1.msra.mxu0 %v1655
    %1887 = vmatprep.subr.mxu0 %v1654
    %1888 = vmatpush1.msra.mxu0 %v1653
    %1889 = vmatprep.subr.mxu0 %v1652
    %1890 = vmatpush1.msra.mxu0 %v1651
    %1891 = vmatprep.subr.mxu0 %v1650
    %1892 = vmatpush1.msra.mxu0 %v1649
    %1893 = vmatprep.subr.mxu0 %v1648
    %1894 = vmatpush1.msra.mxu0 %v1647
    %1895 = vmatprep.subr.mxu0 %v1646
    %1896 = vmatpush1.msra.mxu0 %v1645
    %1897 = vmatprep.subr.mxu0 %v1644
    %1898 = vmatpush1.msra.mxu0 %v1643
    %1899 = vmatprep.subr.mxu0 0.0
    %1900 = vmatpush2.msra.mxu0 0.0
    %1901 = vmatprep.subr.mxu0 0.0
    %1902 = vmatpush2.msra.mxu0 0.0
    %1903 = vmatprep.subr.mxu0 0.0
    %1904 = vmatpush2.msra.mxu0 0.0
    %1905 = vmatprep.subr.mxu0 0.0
    %1906 = vmatpush2.msra.mxu0 0.0
    %1907 = vmatprep.subr.mxu0 0.0
    %1908 = vmatpush2.msra.mxu0 0.0
    %1909 = vmatprep.subr.mxu0 0.0
    %1910 = vmatpush2.msra.mxu0 0.0
    %1911 = vmatprep.subr.mxu0 0.0
    %1912 = vmatpush2.msra.mxu0 0.0
    %1913 = vmatprep.subr.mxu0 0.0
    %1914 = vmatpush2.msra.mxu0 0.0
    %1915 = vmatprep.subr.mxu0 0.0
    %1916 = vmatpush2.msra.mxu0 0.0
    %1917 = vmatprep.subr.mxu0 0.0
    %1918 = vmatpush2.msra.mxu0 0.0
    %1919 = vmatprep.subr.mxu0 0.0
    %1920 = vmatpush2.msra.mxu0 0.0
    %1921 = vmatprep.subr.mxu0 0.0
    %1922 = vmatpush2.msra.mxu0 0.0
    %1923 = vmatprep.subr.mxu0 0.0
    %1924 = vmatpush2.msra.mxu0 0.0
    %1925 = vmatprep.subr.mxu0 0.0
    %1926 = vmatpush2.msra.mxu0 0.0
    %1927 = vmatprep.subr.mxu0 0.0
    %1928 = vmatpush2.msra.mxu0 0.0
    %1929 = vmatprep.subr.mxu0 0.0
    %1930 = vmatpush2.msra.mxu0 0.0
    %1931 = vmatprep.mubr.f32.mxu0 0.0
    %1932 = vmatmul.mubr.f32.gmra.mxu0 %v1763
    %v1933 = vpop.f32.mrf.mxu0
    %v1934 = vadd.f32 0.0, %v1933
    %v1935 = vpop.f32.mrf.mxu0
    %v1936 = vadd.f32 0.0, %v1935
    %1937 = vdwg.mxu0
    %1938 = vmatprep.subr.mxu0 0.0
    %1939 = vmatpush1.msra.mxu0 %v1690
    %1940 = vmatprep.subr.mxu0 0.0
    %1941 = vmatpush1.msra.mxu0 %v1689
    %1942 = vmatprep.subr.mxu0 0.0
    %1943 = vmatpush1.msra.mxu0 %v1688
    %1944 = vmatprep.subr.mxu0 0.0
    %1945 = vmatpush1.msra.mxu0 %v1687
    %1946 = vmatprep.subr.mxu0 0.0
    %1947 = vmatpush1.msra.mxu0 %v1686
    %1948 = vmatprep.subr.mxu0 0.0
    %1949 = vmatpush1.msra.mxu0 %v1685
    %1950 = vmatprep.subr.mxu0 0.0
    %1951 = vmatpush1.msra.mxu0 %v1684
    %1952 = vmatprep.subr.mxu0 0.0
    %1953 = vmatpush1.msra.mxu0 %v1683
    %1954 = vmatprep.subr.mxu0 0.0
    %1955 = vmatpush1.msra.mxu0 %v1682
    %1956 = vmatprep.subr.mxu0 0.0
    %1957 = vmatpush1.msra.mxu0 %v1681
    %1958 = vmatprep.subr.mxu0 0.0
    %1959 = vmatpush1.msra.mxu0 %v1680
    %1960 = vmatprep.subr.mxu0 0.0
    %1961 = vmatpush1.msra.mxu0 %v1679
    %1962 = vmatprep.subr.mxu0 0.0
    %1963 = vmatpush1.msra.mxu0 %v1678
    %1964 = vmatprep.subr.mxu0 0.0
    %1965 = vmatpush1.msra.mxu0 %v1677
    %1966 = vmatprep.subr.mxu0 0.0
    %1967 = vmatpush1.msra.mxu0 %v1676
    %1968 = vmatprep.subr.mxu0 0.0
    %1969 = vmatpush1.msra.mxu0 %v1675
    %1970 = vmatprep.subr.mxu0 0.0
    %1971 = vmatpush2.msra.mxu0 0.0
    %1972 = vmatprep.subr.mxu0 0.0
    %1973 = vmatpush2.msra.mxu0 0.0
    %1974 = vmatprep.subr.mxu0 0.0
    %1975 = vmatpush2.msra.mxu0 0.0
    %1976 = vmatprep.subr.mxu0 0.0
    %1977 = vmatpush2.msra.mxu0 0.0
    %1978 = vmatprep.subr.mxu0 0.0
    %1979 = vmatpush2.msra.mxu0 0.0
    %1980 = vmatprep.subr.mxu0 0.0
    %1981 = vmatpush2.msra.mxu0 0.0
    %1982 = vmatprep.subr.mxu0 0.0
    %1983 = vmatpush2.msra.mxu0 0.0
    %1984 = vmatprep.subr.mxu0 0.0
    %1985 = vmatpush2.msra.mxu0 0.0
    %1986 = vmatprep.subr.mxu0 0.0
    %1987 = vmatpush2.msra.mxu0 0.0
    %1988 = vmatprep.subr.mxu0 0.0
    %1989 = vmatpush2.msra.mxu0 0.0
    %1990 = vmatprep.subr.mxu0 0.0
    %1991 = vmatpush2.msra.mxu0 0.0
    %1992 = vmatprep.subr.mxu0 0.0
    %1993 = vmatpush2.msra.mxu0 0.0
    %1994 = vmatprep.subr.mxu0 0.0
    %1995 = vmatpush2.msra.mxu0 0.0
    %1996 = vmatprep.subr.mxu0 0.0
    %1997 = vmatpush2.msra.mxu0 0.0
    %1998 = vmatprep.subr.mxu0 0.0
    %1999 = vmatpush2.msra.mxu0 0.0
    %2000 = vmatprep.subr.mxu0 0.0
    %2001 = vmatpush2.msra.mxu0 0.0
    %2002 = vmatprep.mubr.f32.mxu0 0.0
    %2003 = vmatmul.mubr.f32.gmra.mxu0 %v1849
    %v2004 = vpop.f32.mrf.mxu0
    %v2005 = vadd.f32 0.0, %v2004
    %v2006 = vpop.f32.mrf.mxu0
    %2007 = vmatprep.mubr.f32.mxu0 0.0
    %2008 = vmatmul.mubr.f32.gmra.mxu0 %v1854
    %v2009 = vpop.f32.mrf.mxu0
    %v2010 = vadd.f32 0.0, %v2009
    %v2011 = vpop.f32.mrf.mxu0
    %2012 = vmatprep.mubr.f32.mxu0 0.0
    %2013 = vmatmul.mubr.f32.gmra.mxu0 %v1859
    %v2014 = vpop.f32.mrf.mxu0
    %v2015 = vadd.f32 0.0, %v2014
    %v2016 = vpop.f32.mrf.mxu0
    %2017 = vmatprep.mubr.f32.mxu0 0.0
    %2018 = vmatmul.mubr.f32.gmra.mxu0 %v1864
    %v2019 = vpop.f32.mrf.mxu0
    %v2020 = vadd.f32 0.0, %v2019
    %v2021 = vpop.f32.mrf.mxu0
    %2022 = vdwg.mxu0
    %v2024 = vcombine.high %v1763, %v1763
    %v2030 = vcombine.high %v1849, %v1849
    %v2031 = vcombine.high %v1854, %v1854
    %v2032 = vcombine.high %v1859, %v1859
    %v2033 = vcombine.high %v1864, %v1864
    %v2040 = vcombine.low %v1934, %v1936
    %v2041 = vcombine.high %v1934, %v1936
    %v2045 = vunpack.c.l.s4 1966171168
    %v2046 = vunpack.c.0.s8 %v2045
    %v2047 = vlaneseq
    %v2048 = vshrl.u32 %v2047, 7
    %v2049 = vsub.s32 %v2046, %v2048
    %v2050 = vrot.slane %v2040, %v2049
    %v2051 = vcombine.high %v2050, %v2050
    %v2053 = vunpack.c.l.s4 1966171168
    %v2054 = vunpack.c.0.s8 %v2053
    %v2055 = vlaneseq
    %v2056 = vshrl.u32 %v2055, 7
    %v2057 = vsub.s32 %v2054, %v2056
    %v2058 = vrot.slane %v2050, %v2057
    %v2060 = vunpack.c.l.s4 1966171168
    %v2061 = vunpack.c.0.s8 %v2060
    %v2062 = vlaneseq
    %v2063 = vshrl.u32 %v2062, 7
    %v2064 = vsub.s32 %v2061, %v2063
    %v2065 = vrot.slane %v2051, %v2064
    %v2066 = vcombine.high %v2058, %v2058
    %v2067 = vcombine.high %v2065, %v2065
    %v2069 = vunpack.c.l.s4 1966171168
    %v2070 = vunpack.c.0.s8 %v2069
    %v2071 = vlaneseq
    %v2072 = vshrl.u32 %v2071, 7
    %v2073 = vsub.s32 %v2070, %v2072
    %v2074 = vrot.slane %v2041, %v2073
    %v2075 = vcombine.high %v2074, %v2074
    %v2077 = vunpack.c.l.s4 1966171168
    %v2078 = vunpack.c.0.s8 %v2077
    %v2079 = vlaneseq
    %v2080 = vshrl.u32 %v2079, 7
    %v2081 = vsub.s32 %v2078, %v2080
    %v2082 = vrot.slane %v2074, %v2081
    %v2084 = vunpack.c.l.s4 1966171168
    %v2085 = vunpack.c.0.s8 %v2084
    %v2086 = vlaneseq
    %v2087 = vshrl.u32 %v2086, 7
    %v2088 = vsub.s32 %v2085, %v2087
    %v2089 = vrot.slane %v2075, %v2088
    %v2090 = vcombine.high %v2082, %v2082
    %v2091 = vcombine.high %v2089, %v2089
    %v2092 = vrot.slane %v2058, 1
    %v2093 = vrot.slane %v2065, 1
    %v2094 = vrot.slane %v2066, 1
    %v2095 = vrot.slane %v2067, 1
    %v2096 = vrot.slane %v2082, 1
    %v2097 = vrot.slane %v2089, 1
    %v2098 = vrot.slane %v2090, 1
    %v2099 = vrot.slane %v2091, 1
    %v2100 = vlaneseq
    %v2101 = vshrl.u32 %v2100, 7
    %v2102 = vsub.s32 0, %v2101
    %v2103 = vrot.slane %v2092, %v2102
    %v2104 = vlaneseq
    %v2105 = vshrl.u32 %v2104, 7
    %v2106 = vsub.s32 0, %v2105
    %v2107 = vrot.slane %v2093, %v2106
    %v2108 = vlaneseq
    %v2109 = vshrl.u32 %v2108, 7
    %v2110 = vsub.s32 0, %v2109
    %v2111 = vrot.slane %v2094, %v2110
    %v2112 = vlaneseq
    %v2113 = vshrl.u32 %v2112, 7
    %v2114 = vsub.s32 0, %v2113
    %v2115 = vrot.slane %v2095, %v2114
    %v2116 = vlaneseq
    %v2117 = vshrl.u32 %v2116, 7
    %v2118 = vsub.s32 0, %v2117
    %v2119 = vrot.slane %v2096, %v2118
    %v2120 = vlaneseq
    %v2121 = vshrl.u32 %v2120, 7
    %v2122 = vsub.s32 0, %v2121
    %v2123 = vrot.slane %v2097, %v2122
    %v2124 = vlaneseq
    %v2125 = vshrl.u32 %v2124, 7
    %v2126 = vsub.s32 0, %v2125
    %v2127 = vrot.slane %v2098, %v2126
    %v2128 = vlaneseq
    %v2129 = vshrl.u32 %v2128, 7
    %v2130 = vsub.s32 0, %v2129
    %v2131 = vrot.slane %v2099, %v2130
    %v2140 = vadd.f32 %v2040, %v2103
    %v2141 = vadd.f32 %v2040, %v2107
    %v2142 = vadd.f32 %v2040, %v2111
    %v2143 = vadd.f32 %v2040, %v2115
    %v2144 = vadd.f32 %v2041, %v2119
    %v2145 = vadd.f32 %v2041, %v2123
    %v2146 = vadd.f32 %v2041, %v2127
    %v2147 = vadd.f32 %v2041, %v2131
    %v2152 = vcombine.high %v2005, %v2005
    %v2153 = vcombine.high %v2010, %v2010
    %v2154 = vcombine.high %v2015, %v2015
    %v2155 = vcombine.high %v2020, %v2020
    %v2160 = vadd.f32 %v2140, %v2005
    %v2161 = vadd.f32 %v2141, %v2152
    %v2162 = vadd.f32 %v2142, %v2010
    %v2163 = vadd.f32 %v2143, %v2153
    %v2164 = vadd.f32 %v2144, %v2015
    %v2165 = vadd.f32 %v2145, %v2154
    %v2166 = vadd.f32 %v2146, %v2020
    %v2167 = vadd.f32 %v2147, %v2155
    %v2168 = vlaneseq
    %v2169 = vshrl.u32 %v2168, 7
    %v2170 = vsub.s32 0, %v2169
    %v2171 = vrot.slane %v1691, %v2170
    %v2172 = vmul.f32 %v1763, %v2171
    %v2173 = vmul.f32 %v2024, %v2171
    %v2174 = vsel %vm734, %v2172, 0.0
    %2175 = vadd.xlane.f32.xlu0 %v2174
    %v2176 = vpop.xlane.xlu0 %2175
    %v2177 = vsel %vm734, %v2173, 0.0
    %2178 = vadd.xlane.f32.xlu0 %v2177
    %v2179 = vpop.xlane.xlu0 %2178
    %v2180 = vlaneseq
    %v2181 = vshrl.u32 %v2180, 7
    %v2182 = vsub.s32 1, %v2181
    %v2183 = vrot.slane %v1691, %v2182
    %v2184 = vmul.f32 %v1763, %v2183
    %v2185 = vmul.f32 %v2024, %v2183
    %v2186 = vsel %vm734, %v2184, 0.0
    %2187 = vadd.xlane.f32.xlu0 %v2186
    %v2188 = vpop.xlane.xlu0 %2187
    %v2189 = vsel %vm734, %v2185, 0.0
    %2190 = vadd.xlane.f32.xlu0 %v2189
    %v2191 = vpop.xlane.xlu0 %2190
    %v2192 = vlaneseq
    %v2193 = vshrl.u32 %v2192, 7
    %v2194 = vsub.s32 2, %v2193
    %v2195 = vrot.slane %v1691, %v2194
    %v2196 = vmul.f32 %v1849, %v2195
    %v2197 = vmul.f32 %v2030, %v2195
    %v2198 = vmul.f32 %v1854, %v2195
    %v2199 = vmul.f32 %v2031, %v2195
    %v2200 = vmul.f32 %v1859, %v2195
    %v2201 = vmul.f32 %v2032, %v2195
    %v2202 = vmul.f32 %v1864, %v2195
    %v2203 = vmul.f32 %v2033, %v2195
    %v2204 = vsel %vm734, %v2196, 0.0
    %2205 = vadd.xlane.f32.xlu0 %v2204
    %v2206 = vpop.xlane.xlu0 %2205
    %v2207 = vsel %vm734, %v2197, 0.0
    %2208 = vadd.xlane.f32.xlu0 %v2207
    %v2209 = vpop.xlane.xlu0 %2208
    %v2210 = vsel %vm734, %v2198, 0.0
    %2211 = vadd.xlane.f32.xlu0 %v2210
    %v2212 = vpop.xlane.xlu0 %2211
    %v2213 = vsel %vm734, %v2199, 0.0
    %2214 = vadd.xlane.f32.xlu0 %v2213
    %v2215 = vpop.xlane.xlu0 %2214
    %v2216 = vsel %vm734, %v2200, 0.0
    %2217 = vadd.xlane.f32.xlu0 %v2216
    %v2218 = vpop.xlane.xlu0 %2217
    %v2219 = vsel %vm734, %v2201, 0.0
    %2220 = vadd.xlane.f32.xlu0 %v2219
    %v2221 = vpop.xlane.xlu0 %2220
    %v2222 = vsel %vm734, %v2202, 0.0
    %2223 = vadd.xlane.f32.xlu0 %v2222
    %v2224 = vpop.xlane.xlu0 %2223
    %v2225 = vsel %vm734, %v2203, 0.0
    %2226 = vadd.xlane.f32.xlu0 %v2225
    %v2227 = vpop.xlane.xlu0 %2226
    %v2230 = vlaneseq
    %v2231 = vshrl.u32 %v2230, 7
    %v2232 = vsub.s32 0, %v2231
    %v2233 = vrot.slane %v2188, %v2232
    %v2234 = vlaneseq
    %v2235 = vshrl.u32 %v2234, 7
    %v2236 = vsub.s32 1, %v2235
    %v2237 = vrot.slane %v2188, %v2236
    %v2238 = vlaneseq
    %v2239 = vshrl.u32 %v2238, 7
    %v2240 = vsub.s32 2, %v2239
    %v2241 = vrot.slane %v2188, %v2240
    %v2242 = vlaneseq
    %v2243 = vshrl.u32 %v2242, 7
    %v2244 = vsub.s32 3, %v2243
    %v2245 = vrot.slane %v2188, %v2244
    %v2246 = vlaneseq
    %v2247 = vshrl.u32 %v2246, 7
    %v2248 = vsub.s32 0, %v2247
    %v2249 = vrot.slane %v2191, %v2248
    %v2250 = vlaneseq
    %v2251 = vshrl.u32 %v2250, 7
    %v2252 = vsub.s32 1, %v2251
    %v2253 = vrot.slane %v2191, %v2252
    %v2254 = vlaneseq
    %v2255 = vshrl.u32 %v2254, 7
    %v2256 = vsub.s32 2, %v2255
    %v2257 = vrot.slane %v2191, %v2256
    %v2258 = vlaneseq
    %v2259 = vshrl.u32 %v2258, 7
    %v2260 = vsub.s32 3, %v2259
    %v2261 = vrot.slane %v2191, %v2260
    %v2270 = vadd.f32 %v2176, %v2233
    %v2271 = vadd.f32 %v2176, %v2237
    %v2272 = vadd.f32 %v2176, %v2241
    %v2273 = vadd.f32 %v2176, %v2245
    %v2274 = vadd.f32 %v2179, %v2249
    %v2275 = vadd.f32 %v2179, %v2253
    %v2276 = vadd.f32 %v2179, %v2257
    %v2277 = vadd.f32 %v2179, %v2261
    %v2278 = vadd.f32 %v2270, %v2206
    %v2279 = vadd.f32 %v2271, %v2209
    %v2280 = vadd.f32 %v2272, %v2212
    %v2281 = vadd.f32 %v2273, %v2215
    %v2282 = vadd.f32 %v2274, %v2218
    %v2283 = vadd.f32 %v2275, %v2221
    %v2284 = vadd.f32 %v2276, %v2224
    %v2285 = vadd.f32 %v2277, %v2227
    %vm2286 = vcmp.gt.f32.partialorder %v2278, 0.0
    %vm2287 = vcmp.gt.f32.partialorder %v2279, 0.0
    %vm2288 = vcmp.gt.f32.partialorder %v2280, 0.0
    %vm2289 = vcmp.gt.f32.partialorder %v2281, 0.0
    %vm2290 = vcmp.gt.f32.partialorder %v2282, 0.0
    %vm2291 = vcmp.gt.f32.partialorder %v2283, 0.0
    %vm2292 = vcmp.gt.f32.partialorder %v2284, 0.0
    %vm2293 = vcmp.gt.f32.partialorder %v2285, 0.0
    %v2294 = vmul.f32 %v2278, 0.01
    %v2295 = vmul.f32 %v2279, 0.01
    %v2296 = vmul.f32 %v2280, 0.01
    %v2297 = vmul.f32 %v2281, 0.01
    %v2298 = vmul.f32 %v2282, 0.01
    %v2299 = vmul.f32 %v2283, 0.01
    %v2300 = vmul.f32 %v2284, 0.01
    %v2301 = vmul.f32 %v2285, 0.01
    %v2302 = vsel %vm2286, %v2278, %v2294
    %v2303 = vsel %vm2287, %v2279, %v2295
    %v2304 = vsel %vm2288, %v2280, %v2296
    %v2305 = vsel %vm2289, %v2281, %v2297
    %v2306 = vsel %vm2290, %v2282, %v2298
    %v2307 = vsel %vm2291, %v2283, %v2299
    %v2308 = vsel %vm2292, %v2284, %v2300
    %v2309 = vsel %vm2293, %v2285, %v2301
    %2318 = vset.pattern.permute.xlu0 0
    %2319 = vperm.xlu0 %2318, %v2302
    %v2320 = vpop.permute.xlu0 %2319
    %2321 = vset.pattern.permute.xlu0 0
    %2322 = vperm.xlu0 %2321, %v2303
    %v2323 = vpop.permute.xlu0 %2322
    %2324 = vset.pattern.permute.xlu0 0
    %2325 = vperm.xlu0 %2324, %v2304
    %v2326 = vpop.permute.xlu0 %2325
    %2327 = vset.pattern.permute.xlu0 0
    %2328 = vperm.xlu0 %2327, %v2305
    %v2329 = vpop.permute.xlu0 %2328
    %2330 = vset.pattern.permute.xlu0 0
    %2331 = vperm.xlu0 %2330, %v2306
    %v2332 = vpop.permute.xlu0 %2331
    %2333 = vset.pattern.permute.xlu0 0
    %2334 = vperm.xlu0 %2333, %v2307
    %v2335 = vpop.permute.xlu0 %2334
    %2336 = vset.pattern.permute.xlu0 0
    %2337 = vperm.xlu0 %2336, %v2308
    %v2338 = vpop.permute.xlu0 %2337
    %2339 = vset.pattern.permute.xlu0 0
    %2340 = vperm.xlu0 %2339, %v2309
    %v2341 = vpop.permute.xlu0 %2340
    %v2342 = vlaneseq
    %v2343 = vshrl.u32 %v2342, 7
    %v2344 = vsub.s32 %v904, %v2343
    %v2345 = vrot.slane %v2320, %v2344
    %v2346 = vlaneseq
    %v2347 = vshrl.u32 %v2346, 7
    %v2348 = vsub.s32 %v904, %v2347
    %v2349 = vrot.slane %v2323, %v2348
    %v2350 = vlaneseq
    %v2351 = vshrl.u32 %v2350, 7
    %v2352 = vsub.s32 %v904, %v2351
    %v2353 = vrot.slane %v2326, %v2352
    %v2354 = vlaneseq
    %v2355 = vshrl.u32 %v2354, 7
    %v2356 = vsub.s32 %v904, %v2355
    %v2357 = vrot.slane %v2329, %v2356
    %v2358 = vlaneseq
    %v2359 = vshrl.u32 %v2358, 7
    %v2360 = vsub.s32 %v904, %v2359
    %v2361 = vrot.slane %v2332, %v2360
    %v2362 = vlaneseq
    %v2363 = vshrl.u32 %v2362, 7
    %v2364 = vsub.s32 %v904, %v2363
    %v2365 = vrot.slane %v2335, %v2364
    %v2366 = vlaneseq
    %v2367 = vshrl.u32 %v2366, 7
    %v2368 = vsub.s32 %v904, %v2367
    %v2369 = vrot.slane %v2338, %v2368
    %v2370 = vlaneseq
    %v2371 = vshrl.u32 %v2370, 7
    %v2372 = vsub.s32 %v904, %v2371
    %v2373 = vrot.slane %v2341, %v2372
    %v2374 = vsel %vm937, %v2349, %v2345
    %v2375 = vsel %vm939, %v2353, %v2374
    %v2376 = vsel %vm941, %v2357, %v2375
    %v2377 = vsel %vm937, %v2365, %v2361
    %v2378 = vsel %vm939, %v2369, %v2377
    %v2379 = vsel %vm941, %v2373, %v2378
    %v2382 = vsel %vm948, %v2376, -inf
    %2383 = vmax.xlane.f32.xlu0 %v2382
    %v2384 = vpop.xlane.xlu0 %2383
    %v2385 = vsel %vm948, %v2379, -inf
    %2386 = vmax.xlane.f32.xlu0 %v2385
    %v2387 = vpop.xlane.xlu0 %2386
    %v2390 = vlaneseq
    %v2391 = vshrl.u32 %v2390, 7
    %v2392 = vsub.s32 0, %v2391
    %v2393 = vrot.slane %v2384, %v2392
    %v2394 = vlaneseq
    %v2395 = vshrl.u32 %v2394, 7
    %v2396 = vsub.s32 1, %v2395
    %v2397 = vrot.slane %v2384, %v2396
    %v2398 = vlaneseq
    %v2399 = vshrl.u32 %v2398, 7
    %v2400 = vsub.s32 2, %v2399
    %v2401 = vrot.slane %v2384, %v2400
    %v2402 = vlaneseq
    %v2403 = vshrl.u32 %v2402, 7
    %v2404 = vsub.s32 3, %v2403
    %v2405 = vrot.slane %v2384, %v2404
    %v2406 = vlaneseq
    %v2407 = vshrl.u32 %v2406, 7
    %v2408 = vsub.s32 0, %v2407
    %v2409 = vrot.slane %v2387, %v2408
    %v2410 = vlaneseq
    %v2411 = vshrl.u32 %v2410, 7
    %v2412 = vsub.s32 1, %v2411
    %v2413 = vrot.slane %v2387, %v2412
    %v2414 = vlaneseq
    %v2415 = vshrl.u32 %v2414, 7
    %v2416 = vsub.s32 2, %v2415
    %v2417 = vrot.slane %v2387, %v2416
    %v2418 = vlaneseq
    %v2419 = vshrl.u32 %v2418, 7
    %v2420 = vsub.s32 3, %v2419
    %v2421 = vrot.slane %v2387, %v2420
    %v2430 = vsub.f32 %v2302, %v2393
    %v2431 = vsub.f32 %v2303, %v2397
    %v2432 = vsub.f32 %v2304, %v2401
    %v2433 = vsub.f32 %v2305, %v2405
    %v2434 = vsub.f32 %v2306, %v2409
    %v2435 = vsub.f32 %v2307, %v2413
    %v2436 = vsub.f32 %v2308, %v2417
    %v2437 = vsub.f32 %v2309, %v2421
    %v2438 = vmul.f32 %v2430, 1.442695
    %v2439 = vpow.pop %v2438
    %v2440 = vmul.f32 %v2431, 1.442695
    %v2441 = vpow.pop %v2440
    %v2442 = vmul.f32 %v2432, 1.442695
    %v2443 = vpow.pop %v2442
    %v2444 = vmul.f32 %v2433, 1.442695
    %v2445 = vpow.pop %v2444
    %v2446 = vmul.f32 %v2434, 1.442695
    %v2447 = vpow.pop %v2446
    %v2448 = vmul.f32 %v2435, 1.442695
    %v2449 = vpow.pop %v2448
    %v2450 = vmul.f32 %v2436, 1.442695
    %v2451 = vpow.pop %v2450
    %v2452 = vmul.f32 %v2437, 1.442695
    %v2453 = vpow.pop %v2452
    %2462 = vset.pattern.permute.xlu0 0
    %2463 = vperm.xlu0 %2462, %v2439
    %v2464 = vpop.permute.xlu0 %2463
    %2465 = vset.pattern.permute.xlu0 0
    %2466 = vperm.xlu0 %2465, %v2441
    %v2467 = vpop.permute.xlu0 %2466
    %2468 = vset.pattern.permute.xlu0 0
    %2469 = vperm.xlu0 %2468, %v2443
    %v2470 = vpop.permute.xlu0 %2469
    %2471 = vset.pattern.permute.xlu0 0
    %2472 = vperm.xlu0 %2471, %v2445
    %v2473 = vpop.permute.xlu0 %2472
    %2474 = vset.pattern.permute.xlu0 0
    %2475 = vperm.xlu0 %2474, %v2447
    %v2476 = vpop.permute.xlu0 %2475
    %2477 = vset.pattern.permute.xlu0 0
    %2478 = vperm.xlu0 %2477, %v2449
    %v2479 = vpop.permute.xlu0 %2478
    %2480 = vset.pattern.permute.xlu0 0
    %2481 = vperm.xlu0 %2480, %v2451
    %v2482 = vpop.permute.xlu0 %2481
    %2483 = vset.pattern.permute.xlu0 0
    %2484 = vperm.xlu0 %2483, %v2453
    %v2485 = vpop.permute.xlu0 %2484
    %v2486 = vlaneseq
    %v2487 = vshrl.u32 %v2486, 7
    %v2488 = vsub.s32 %v904, %v2487
    %v2489 = vrot.slane %v2464, %v2488
    %v2490 = vlaneseq
    %v2491 = vshrl.u32 %v2490, 7
    %v2492 = vsub.s32 %v904, %v2491
    %v2493 = vrot.slane %v2467, %v2492
    %v2494 = vlaneseq
    %v2495 = vshrl.u32 %v2494, 7
    %v2496 = vsub.s32 %v904, %v2495
    %v2497 = vrot.slane %v2470, %v2496
    %v2498 = vlaneseq
    %v2499 = vshrl.u32 %v2498, 7
    %v2500 = vsub.s32 %v904, %v2499
    %v2501 = vrot.slane %v2473, %v2500
    %v2502 = vlaneseq
    %v2503 = vshrl.u32 %v2502, 7
    %v2504 = vsub.s32 %v904, %v2503
    %v2505 = vrot.slane %v2476, %v2504
    %v2506 = vlaneseq
    %v2507 = vshrl.u32 %v2506, 7
    %v2508 = vsub.s32 %v904, %v2507
    %v2509 = vrot.slane %v2479, %v2508
    %v2510 = vlaneseq
    %v2511 = vshrl.u32 %v2510, 7
    %v2512 = vsub.s32 %v904, %v2511
    %v2513 = vrot.slane %v2482, %v2512
    %v2514 = vlaneseq
    %v2515 = vshrl.u32 %v2514, 7
    %v2516 = vsub.s32 %v904, %v2515
    %v2517 = vrot.slane %v2485, %v2516
    %v2518 = vsel %vm937, %v2493, %v2489
    %v2519 = vsel %vm939, %v2497, %v2518
    %v2520 = vsel %vm941, %v2501, %v2519
    %v2521 = vsel %vm937, %v2509, %v2505
    %v2522 = vsel %vm939, %v2513, %v2521
    %v2523 = vsel %vm941, %v2517, %v2522
    %v2526 = vsel %vm948, %v2520, 0.0
    %2527 = vadd.xlane.f32.xlu0 %v2526
    %v2528 = vpop.xlane.xlu0 %2527
    %v2529 = vsel %vm948, %v2523, 0.0
    %2530 = vadd.xlane.f32.xlu0 %v2529
    %v2531 = vpop.xlane.xlu0 %2530
    %v2534 = vlaneseq
    %v2535 = vshrl.u32 %v2534, 7
    %v2536 = vsub.s32 0, %v2535
    %v2537 = vrot.slane %v2528, %v2536
    %v2538 = vlaneseq
    %v2539 = vshrl.u32 %v2538, 7
    %v2540 = vsub.s32 1, %v2539
    %v2541 = vrot.slane %v2528, %v2540
    %v2542 = vlaneseq
    %v2543 = vshrl.u32 %v2542, 7
    %v2544 = vsub.s32 2, %v2543
    %v2545 = vrot.slane %v2528, %v2544
    %v2546 = vlaneseq
    %v2547 = vshrl.u32 %v2546, 7
    %v2548 = vsub.s32 3, %v2547
    %v2549 = vrot.slane %v2528, %v2548
    %v2550 = vlaneseq
    %v2551 = vshrl.u32 %v2550, 7
    %v2552 = vsub.s32 0, %v2551
    %v2553 = vrot.slane %v2531, %v2552
    %v2554 = vlaneseq
    %v2555 = vshrl.u32 %v2554, 7
    %v2556 = vsub.s32 1, %v2555
    %v2557 = vrot.slane %v2531, %v2556
    %v2558 = vlaneseq
    %v2559 = vshrl.u32 %v2558, 7
    %v2560 = vsub.s32 2, %v2559
    %v2561 = vrot.slane %v2531, %v2560
    %v2562 = vlaneseq
    %v2563 = vshrl.u32 %v2562, 7
    %v2564 = vsub.s32 3, %v2563
    %v2565 = vrot.slane %v2531, %v2564
    %v2574 = vrcp.pop %v2537
    %v2575 = vmul.f32 %v2439, %v2574
    %v2576 = vrcp.pop %v2541
    %v2577 = vmul.f32 %v2441, %v2576
    %v2578 = vrcp.pop %v2545
    %v2579 = vmul.f32 %v2443, %v2578
    %v2580 = vrcp.pop %v2549
    %v2581 = vmul.f32 %v2445, %v2580
    %v2582 = vrcp.pop %v2553
    %v2583 = vmul.f32 %v2447, %v2582
    %v2584 = vrcp.pop %v2557
    %v2585 = vmul.f32 %v2449, %v2584
    %v2586 = vrcp.pop %v2561
    %v2587 = vmul.f32 %v2451, %v2586
    %v2588 = vrcp.pop %v2565
    %v2589 = vmul.f32 %v2453, %v2588
    %2591 = vset.pattern.permute.xlu0 0
    %2592 = vperm.xlu0 %2591, %v2575
    %v2593 = vpop.permute.xlu0 %2592
    %2596 = vset.pattern.permute.xlu0 0
    %2597 = vperm.xlu0 %2596, %v2577
    %v2598 = vpop.permute.xlu0 %2597
    %2601 = vset.pattern.permute.xlu0 0
    %2602 = vperm.xlu0 %2601, %v2579
    %v2603 = vpop.permute.xlu0 %2602
    %2606 = vset.pattern.permute.xlu0 0
    %2607 = vperm.xlu0 %2606, %v2581
    %v2608 = vpop.permute.xlu0 %2607
    %2611 = vset.pattern.permute.xlu0 0
    %2612 = vperm.xlu0 %2611, %v2583
    %v2613 = vpop.permute.xlu0 %2612
    %2616 = vset.pattern.permute.xlu0 0
    %2617 = vperm.xlu0 %2616, %v2585
    %v2618 = vpop.permute.xlu0 %2617
    %2621 = vset.pattern.permute.xlu0 0
    %2622 = vperm.xlu0 %2621, %v2587
    %v2623 = vpop.permute.xlu0 %2622
    %2626 = vset.pattern.permute.xlu0 0
    %2627 = vperm.xlu0 %2626, %v2589
    %v2628 = vpop.permute.xlu0 %2627
    %v2630 = vmul.f32 %v2593, %v1763
    %v2631 = vmul.f32 %v2598, %v1763
    %v2632 = vmul.f32 %v2603, %v1763
    %v2633 = vmul.f32 %v2608, %v1763
    %v2634 = vmul.f32 %v2613, %v2024
    %v2635 = vmul.f32 %v2618, %v2024
    %v2636 = vmul.f32 %v2623, %v2024
    %v2637 = vmul.f32 %v2628, %v2024
    %v2638 = vsel %vm734, %v2630, 0.0
    %v2639 = vrot.slane %v2638, 4
    %v2640 = vadd.f32 %v2638, %v2639
    %v2641 = vrot.slane %v2640, 2
    %v2642 = vadd.f32 %v2640, %v2641
    %v2643 = vrot.slane %v2642, 1
    %v2644 = vadd.f32 %v2642, %v2643
    %v2645 = vsel %vm734, %v2631, 0.0
    %v2646 = vrot.slane %v2645, 4
    %v2647 = vadd.f32 %v2645, %v2646
    %v2648 = vrot.slane %v2647, 2
    %v2649 = vadd.f32 %v2647, %v2648
    %v2650 = vrot.slane %v2649, 1
    %v2651 = vadd.f32 %v2649, %v2650
    %v2652 = vsel %vm734, %v2632, 0.0
    %v2653 = vrot.slane %v2652, 4
    %v2654 = vadd.f32 %v2652, %v2653
    %v2655 = vrot.slane %v2654, 2
    %v2656 = vadd.f32 %v2654, %v2655
    %v2657 = vrot.slane %v2656, 1
    %v2658 = vadd.f32 %v2656, %v2657
    %v2659 = vsel %vm734, %v2633, 0.0
    %v2660 = vrot.slane %v2659, 4
    %v2661 = vadd.f32 %v2659, %v2660
    %v2662 = vrot.slane %v2661, 2
    %v2663 = vadd.f32 %v2661, %v2662
    %v2664 = vrot.slane %v2663, 1
    %v2665 = vadd.f32 %v2663, %v2664
    %v2666 = vsel %vm734, %v2634, 0.0
    %v2667 = vrot.slane %v2666, 4
    %v2668 = vadd.f32 %v2666, %v2667
    %v2669 = vrot.slane %v2668, 2
    %v2670 = vadd.f32 %v2668, %v2669
    %v2671 = vrot.slane %v2670, 1
    %v2672 = vadd.f32 %v2670, %v2671
    %v2673 = vsel %vm734, %v2635, 0.0
    %v2674 = vrot.slane %v2673, 4
    %v2675 = vadd.f32 %v2673, %v2674
    %v2676 = vrot.slane %v2675, 2
    %v2677 = vadd.f32 %v2675, %v2676
    %v2678 = vrot.slane %v2677, 1
    %v2679 = vadd.f32 %v2677, %v2678
    %v2680 = vsel %vm734, %v2636, 0.0
    %v2681 = vrot.slane %v2680, 4
    %v2682 = vadd.f32 %v2680, %v2681
    %v2683 = vrot.slane %v2682, 2
    %v2684 = vadd.f32 %v2682, %v2683
    %v2685 = vrot.slane %v2684, 1
    %v2686 = vadd.f32 %v2684, %v2685
    %v2687 = vsel %vm734, %v2637, 0.0
    %v2688 = vrot.slane %v2687, 4
    %v2689 = vadd.f32 %v2687, %v2688
    %v2690 = vrot.slane %v2689, 2
    %v2691 = vadd.f32 %v2689, %v2690
    %v2692 = vrot.slane %v2691, 1
    %v2693 = vadd.f32 %v2691, %v2692
    %v2702 = vsel %vm937, %v2651, %v2644
    %v2703 = vsel %vm939, %v2658, %v2702
    %v2704 = vsel %vm941, %v2665, %v2703
    %v2705 = vsel %vm937, %v2679, %v2672
    %v2706 = vsel %vm939, %v2686, %v2705
    %v2707 = vsel %vm941, %v2693, %v2706
    %v2710 = vsel %vm734, %v2704, 0.0
    %2711 = vadd.xlane.f32.xlu0 %v2710
    %v2712 = vpop.xlane.xlu0 %2711
    %v2713 = vsel %vm734, %v2707, 0.0
    %2714 = vadd.xlane.f32.xlu0 %v2713
    %v2715 = vpop.xlane.xlu0 %2714
    %v2716 = vmul.f32 %v2712, %v1283
    %v2717 = vmul.f32 %v2715, %v1283
    %v2718 = vsel %vm734, %v2716, 0.0
    %v2719 = vsel %vm734, %v2717, 0.0
    %v2720 = vadd.f32 %v2718, %v2719
    %v2721 = vmul.f32 %v2720, %v1289
    %v2723 = vrot.slane %v2721, 1
    %v2724 = vrot.slane %v2721, 2
    %v2725 = vrot.slane %v2721, 3
    %v2730 = vsub.f32 %v2644, %v2721
    %v2731 = vsub.f32 %v2651, %v2723
    %v2732 = vsub.f32 %v2658, %v2724
    %v2733 = vsub.f32 %v2665, %v2725
    %v2734 = vsub.f32 %v2672, %v2721
    %v2735 = vsub.f32 %v2679, %v2723
    %v2736 = vsub.f32 %v2686, %v2724
    %v2737 = vsub.f32 %v2693, %v2725
    %v2738 = vmul.f32 %v2730, %v2730
    %v2739 = vmul.f32 %v2731, %v2731
    %v2740 = vmul.f32 %v2732, %v2732
    %v2741 = vmul.f32 %v2733, %v2733
    %v2742 = vmul.f32 %v2734, %v2734
    %v2743 = vmul.f32 %v2735, %v2735
    %v2744 = vmul.f32 %v2736, %v2736
    %v2745 = vmul.f32 %v2737, %v2737
    %v2754 = vrot.slane %v2739, 7
    %v2755 = vsel %vm937, %v2754, %v2738
    %v2756 = vrot.slane %v2740, 6
    %v2757 = vsel %vm939, %v2756, %v2755
    %v2758 = vrot.slane %v2741, 5
    %v2759 = vsel %vm941, %v2758, %v2757
    %v2760 = vrot.slane %v2743, 7
    %v2761 = vsel %vm937, %v2760, %v2742
    %v2762 = vrot.slane %v2744, 6
    %v2763 = vsel %vm939, %v2762, %v2761
    %v2764 = vrot.slane %v2745, 5
    %v2765 = vsel %vm941, %v2764, %v2763
    %v2768 = vsel %vm734, %v2759, 0.0
    %2769 = vadd.xlane.f32.xlu0 %v2768
    %v2770 = vpop.xlane.xlu0 %2769
    %v2771 = vsel %vm734, %v2765, 0.0
    %2772 = vadd.xlane.f32.xlu0 %v2771
    %v2773 = vpop.xlane.xlu0 %2772
    %v2774 = vmul.f32 %v2770, %v1283
    %v2775 = vmul.f32 %v2773, %v1283
    %v2776 = vsel %vm734, %v2774, 0.0
    %v2777 = vsel %vm734, %v2775, 0.0
    %v2778 = vadd.f32 %v2776, %v2777
    %v2779 = vmul.f32 %v2778, %v1289
    %v2780 = vadd.f32 %v2779, 1e-05
    %v2781 = vrsqrt.pop %v2780
    %v2783 = vrot.slane %v2781, 1
    %v2784 = vrot.slane %v2781, 2
    %v2785 = vrot.slane %v2781, 3
    %v2790 = vmul.f32 %v2730, %v2781
    %v2791 = vmul.f32 %v2731, %v2783
    %v2792 = vmul.f32 %v2732, %v2784
    %v2793 = vmul.f32 %v2733, %v2785
    %v2794 = vmul.f32 %v2734, %v2781
    %v2795 = vmul.f32 %v2735, %v2783
    %v2796 = vmul.f32 %v2736, %v2784
    %v2797 = vmul.f32 %v2737, %v2785
    %v2806 = vrot.slane %v2791, 7
    %v2807 = vsel %vm937, %v2806, %v2790
    %v2808 = vrot.slane %v2792, 6
    %v2809 = vsel %vm939, %v2808, %v2807
    %v2810 = vrot.slane %v2793, 5
    %v2811 = vsel %vm941, %v2810, %v2809
    %v2812 = vrot.slane %v2795, 7
    %v2813 = vsel %vm937, %v2812, %v2794
    %v2814 = vrot.slane %v2796, 6
    %v2815 = vsel %vm939, %v2814, %v2813
    %v2816 = vrot.slane %v2797, 5
    %v2817 = vsel %vm941, %v2816, %v2815
    %v2820 = vadd.f32 %v1401, %v2811
    %v2821 = vadd.f32 %v1402, %v2817
    %vm2822 = vcmp.gt.f32.partialorder %v2820, 0.0
    %vm2823 = vcmp.gt.f32.partialorder %v2821, 0.0
    %v2824 = vmin.f32 %v2820, 0.0
    %v2825 = vmin.f32 %v2821, 0.0
    %v2826 = vmul.f32 %v2824, 1.442695
    %v2827 = vpow.pop %v2826
    %v2828 = vmul.f32 %v2825, 1.442695
    %v2829 = vpow.pop %v2828
    %v2830 = vsub.f32 %v2827, 1.0
    %v2831 = vsub.f32 %v2829, 1.0
    %v2832 = vsel %vm2822, %v2820, %v2830
    %v2833 = vsel %vm2823, %v2821, %v2831
    %v2842 = vcombine.low %v2160, %v2161
    %v2843 = vcombine.low %v2162, %v2163
    %v2844 = vcombine.low %v2164, %v2165
    %v2845 = vcombine.low %v2166, %v2167
    %2850 = vadd.xlane.f32.xlu0 %v2842
    %v2851 = vpop.xlane.xlu0 %2850
    %2852 = vadd.xlane.f32.xlu0 %v2843
    %v2853 = vpop.xlane.xlu0 %2852
    %2854 = vadd.xlane.f32.xlu0 %v2844
    %v2855 = vpop.xlane.xlu0 %2854
    %2856 = vadd.xlane.f32.xlu0 %v2845
    %v2857 = vpop.xlane.xlu0 %2856
    %v2858 = vmul.f32 %v2851, %v1283
    %v2859 = vmul.f32 %v2853, %v1283
    %v2860 = vmul.f32 %v2855, %v1283
    %v2861 = vmul.f32 %v2857, %v1283
    %v2862 = vadd.f32 %v2858, %v2860
    %v2863 = vadd.f32 %v2859, %v2861
    %v2864 = vmul.f32 %v2862, %v1289
    %v2865 = vmul.f32 %v2863, %v1289
    %v2869 = vunpack.c.l.s4 839922192
    %v2870 = vunpack.c.0.s8 %v2869
    %v2871 = vlaneseq
    %v2872 = vshrl.u32 %v2871, 7
    %v2873 = vsub.s32 %v2870, %v2872
    %v2874 = vrot.slane %v2864, %v2873
    %v2876 = vunpack.c.l.s4 1985246804
    %v2877 = vunpack.c.0.s8 %v2876
    %v2878 = vlaneseq
    %v2879 = vshrl.u32 %v2878, 7
    %v2880 = vsub.s32 %v2877, %v2879
    %v2881 = vrot.slane %v2864, %v2880
    %v2883 = vunpack.c.l.s4 839922192
    %v2884 = vunpack.c.0.s8 %v2883
    %v2885 = vlaneseq
    %v2886 = vshrl.u32 %v2885, 7
    %v2887 = vsub.s32 %v2884, %v2886
    %v2888 = vrot.slane %v2865, %v2887
    %v2890 = vunpack.c.l.s4 1985246804
    %v2891 = vunpack.c.0.s8 %v2890
    %v2892 = vlaneseq
    %v2893 = vshrl.u32 %v2892, 7
    %v2894 = vsub.s32 %v2891, %v2893
    %v2895 = vrot.slane %v2865, %v2894
    %v2900 = vsub.f32 %v2160, %v2874
    %v2901 = vsub.f32 %v2161, %v2881
    %v2902 = vsub.f32 %v2162, %v2888
    %v2903 = vsub.f32 %v2163, %v2895
    %v2904 = vsub.f32 %v2164, %v2874
    %v2905 = vsub.f32 %v2165, %v2881
    %v2906 = vsub.f32 %v2166, %v2888
    %v2907 = vsub.f32 %v2167, %v2895
    %v2908 = vmul.f32 %v2900, %v2900
    %v2909 = vmul.f32 %v2901, %v2901
    %v2910 = vmul.f32 %v2902, %v2902
    %v2911 = vmul.f32 %v2903, %v2903
    %v2912 = vmul.f32 %v2904, %v2904
    %v2913 = vmul.f32 %v2905, %v2905
    %v2914 = vmul.f32 %v2906, %v2906
    %v2915 = vmul.f32 %v2907, %v2907
    %v2924 = vcombine.low %v2908, %v2909
    %v2925 = vcombine.low %v2910, %v2911
    %v2926 = vcombine.low %v2912, %v2913
    %v2927 = vcombine.low %v2914, %v2915
    %2932 = vadd.xlane.f32.xlu0 %v2924
    %v2933 = vpop.xlane.xlu0 %2932
    %2934 = vadd.xlane.f32.xlu0 %v2925
    %v2935 = vpop.xlane.xlu0 %2934
    %2936 = vadd.xlane.f32.xlu0 %v2926
    %v2937 = vpop.xlane.xlu0 %2936
    %2938 = vadd.xlane.f32.xlu0 %v2927
    %v2939 = vpop.xlane.xlu0 %2938
    %v2940 = vmul.f32 %v2933, %v1283
    %v2941 = vmul.f32 %v2935, %v1283
    %v2942 = vmul.f32 %v2937, %v1283
    %v2943 = vmul.f32 %v2939, %v1283
    %v2944 = vadd.f32 %v2940, %v2942
    %v2945 = vadd.f32 %v2941, %v2943
    %v2946 = vmul.f32 %v2944, %v1289
    %v2947 = vmul.f32 %v2945, %v1289
    %v2948 = vadd.f32 %v2946, 1e-05
    %v2949 = vadd.f32 %v2947, 1e-05
    %v2950 = vrsqrt.pop %v2948
    %v2951 = vrsqrt.pop %v2949
    %v2955 = vunpack.c.l.s4 839922192
    %v2956 = vunpack.c.0.s8 %v2955
    %v2957 = vlaneseq
    %v2958 = vshrl.u32 %v2957, 7
    %v2959 = vsub.s32 %v2956, %v2958
    %v2960 = vrot.slane %v2950, %v2959
    %v2962 = vunpack.c.l.s4 1985246804
    %v2963 = vunpack.c.0.s8 %v2962
    %v2964 = vlaneseq
    %v2965 = vshrl.u32 %v2964, 7
    %v2966 = vsub.s32 %v2963, %v2965
    %v2967 = vrot.slane %v2950, %v2966
    %v2969 = vunpack.c.l.s4 839922192
    %v2970 = vunpack.c.0.s8 %v2969
    %v2971 = vlaneseq
    %v2972 = vshrl.u32 %v2971, 7
    %v2973 = vsub.s32 %v2970, %v2972
    %v2974 = vrot.slane %v2951, %v2973
    %v2976 = vunpack.c.l.s4 1985246804
    %v2977 = vunpack.c.0.s8 %v2976
    %v2978 = vlaneseq
    %v2979 = vshrl.u32 %v2978, 7
    %v2980 = vsub.s32 %v2977, %v2979
    %v2981 = vrot.slane %v2951, %v2980
    %v2986 = vmul.f32 %v2900, %v2960
    %v2987 = vmul.f32 %v2901, %v2967
    %v2988 = vmul.f32 %v2902, %v2974
    %v2989 = vmul.f32 %v2903, %v2981
    %v2990 = vmul.f32 %v2904, %v2960
    %v2991 = vmul.f32 %v2905, %v2967
    %v2992 = vmul.f32 %v2906, %v2974
    %v2993 = vmul.f32 %v2907, %v2981
    %vm2994 = vcmp.gt.f32.partialorder %v2986, 0.0
    %vm2995 = vcmp.gt.f32.partialorder %v2987, 0.0
    %vm2996 = vcmp.gt.f32.partialorder %v2988, 0.0
    %vm2997 = vcmp.gt.f32.partialorder %v2989, 0.0
    %vm2998 = vcmp.gt.f32.partialorder %v2990, 0.0
    %vm2999 = vcmp.gt.f32.partialorder %v2991, 0.0
    %vm3000 = vcmp.gt.f32.partialorder %v2992, 0.0
    %vm3001 = vcmp.gt.f32.partialorder %v2993, 0.0
    %v3002 = vmin.f32 %v2986, 0.0
    %v3003 = vmin.f32 %v2987, 0.0
    %v3004 = vmin.f32 %v2988, 0.0
    %v3005 = vmin.f32 %v2989, 0.0
    %v3006 = vmin.f32 %v2990, 0.0
    %v3007 = vmin.f32 %v2991, 0.0
    %v3008 = vmin.f32 %v2992, 0.0
    %v3009 = vmin.f32 %v2993, 0.0
    %v3010 = vmul.f32 %v3002, 1.442695
    %v3011 = vpow.pop %v3010
    %v3012 = vmul.f32 %v3003, 1.442695
    %v3013 = vpow.pop %v3012
    %v3014 = vmul.f32 %v3004, 1.442695
    %v3015 = vpow.pop %v3014
    %v3016 = vmul.f32 %v3005, 1.442695
    %v3017 = vpow.pop %v3016
    %v3018 = vmul.f32 %v3006, 1.442695
    %v3019 = vpow.pop %v3018
    %v3020 = vmul.f32 %v3007, 1.442695
    %v3021 = vpow.pop %v3020
    %v3022 = vmul.f32 %v3008, 1.442695
    %v3023 = vpow.pop %v3022
    %v3024 = vmul.f32 %v3009, 1.442695
    %v3025 = vpow.pop %v3024
    %v3026 = vsub.f32 %v3011, 1.0
    %v3027 = vsub.f32 %v3013, 1.0
    %v3028 = vsub.f32 %v3015, 1.0
    %v3029 = vsub.f32 %v3017, 1.0
    %v3030 = vsub.f32 %v3019, 1.0
    %v3031 = vsub.f32 %v3021, 1.0
    %v3032 = vsub.f32 %v3023, 1.0
    %v3033 = vsub.f32 %v3025, 1.0
    %v3034 = vsel %vm2994, %v2986, %v3026
    %v3035 = vsel %vm2995, %v2987, %v3027
    %v3036 = vsel %vm2996, %v2988, %v3028
    %v3037 = vsel %vm2997, %v2989, %v3029
    %v3038 = vsel %vm2998, %v2990, %v3030
    %v3039 = vsel %vm2999, %v2991, %v3031
    %v3040 = vsel %vm3000, %v2992, %v3032
    %v3041 = vsel %vm3001, %v2993, %v3033
    %3042 = vst [vmem:[#allocation19] sm:$0xf] %v2832
    %3043 = vst [vmem:[#allocation19 + $0x4] sm:$0xf] %v2833
    %v3052 = vcombine.low %v3034, %v3035
    %v3053 = vcombine.low %v3036, %v3037
    %v3054 = vcombine.low %v3038, %v3039
    %v3055 = vcombine.low %v3040, %v3041
    %3060 = vst [vmem:[#allocation20] sm:$0xff] %v3052
    %3061 = vst [vmem:[#allocation20 + $0x8] sm:$0xff] %v3053
    %3062 = vst [vmem:[#allocation20 + $0x10] sm:$0xff] %v3054
    %3063 = vst [vmem:[#allocation20 + $0x18] sm:$0xff] %v3055
    // Predicated region
    $region90: #{tpu_custom_call.1} parent=1 // pred_check
      _
    $region91: #{tpu_custom_call.1} parent=1 // pred_check_branch
      %3065 = sbr.rel (0) target = $region93
    $region92: #{tpu_custom_call.1} parent=1 // pred_region
      %s3067 = ssub.s32 128, 128
      %3068 = vsyncadd [#allocation4], %s3067
      %s3069 = sshll.u32 [#allocation19], 4
      %s3070 = int_to_ptr.vmem [resolvable:$true] %s3069
      %3075 = dma.vmem_to_hbm [thread:$0]  %s3070, 128, %s12, [#allocation4], 64, 64, 4
    $region93: #{tpu_custom_call.1} parent=1 // pred_fallthru
      _
    // Predicated region
    $region94: #{tpu_custom_call.1} parent=1 // pred_check
      _
    $region95: #{tpu_custom_call.1} parent=1 // pred_check_branch
      %3077 = sbr.rel (0) target = $region97
    $region96: #{tpu_custom_call.1} parent=1 // pred_region
      %s3079 = ssub.s32 512, 512
      %3080 = vsyncadd [#allocation21], %s3079
      %s3081 = sshll.u32 [#allocation20], 4
      %s3082 = int_to_ptr.vmem [resolvable:$true] %s3081
      %3087 = dma.vmem_to_hbm [thread:$0]  %s3082, 512, %s13, [#allocation21], 128, 128, 8
    $region97: #{tpu_custom_call.1} parent=1 // pred_fallthru
      _
    // Predicated region
    $region98: #{tpu_custom_call.1} parent=1 // pred_check
      _
    $region99: #{tpu_custom_call.1} parent=1 // pred_check_branch
      %3089 = sbr.rel (0) target = $region101
    $region100: #{tpu_custom_call.1} parent=1 // pred_region
      %3090 = dma.done [#allocation4], 128
    $region101: #{tpu_custom_call.1} parent=1 // pred_fallthru
      _
    // Predicated region
    $region102: #{tpu_custom_call.1} parent=1 // pred_check
      _
    $region103: #{tpu_custom_call.1} parent=1 // pred_check_branch
      %3092 = sbr.rel (0) target = $region105
    $region104: #{tpu_custom_call.1} parent=1 // pred_region
      %3093 = dma.done [#allocation21], 512
    $region105: #{tpu_custom_call.1} parent=1 // pred_fallthru
      _
    %3094 = vsyncpa [#allocation3], 1
    %3095 = vsyncpa [#allocation6], 1
    %3096 = vsyncpa [#allocation9], 1
    %3097 = vsyncpa [#allocation12], 1
    %3098 = vsyncpa [#allocation15], 1
    %3099 = vsyncpa [#allocation18], 1
    %3100 = vsyncpa [#allocation4], 1
    %3101 = vsyncpa [#allocation21], 1

</llo_original>
